<compile_context>
chip_gen: v7x
topology: tpu7x:2x2x1
jax: 0.10.0
libtpu: 0.0.40
codegen_flags: <defaults>
</compile_context>

<pallas_src>
import math
import functools

import jax
import jax.numpy as jnp
from jax.experimental import pallas as pl
from jax.experimental.pallas import tpu as pltpu

# ---------------- config ----------------
PATCH_SIZE = 4
IMAGE_SIZE = 16
C_IN = 3
PATCH_EMBD = PATCH_SIZE * PATCH_SIZE * C_IN            # 48 == d_model
PATCH_NUM = (IMAGE_SIZE // PATCH_SIZE) ** 2            # 16
NUM_HEADS = 8
HEAD_DIM = PATCH_EMBD // NUM_HEADS                     # 6
FF_HIDDEN = 64
NUM_ENCODER_LAYERS = 2
NUM_DECODER_LAYERS = 2
NUM_LAYERS = NUM_ENCODER_LAYERS + NUM_DECODER_LAYERS
MASK_RATIO = 0.5
NUM_MASKED = int(PATCH_NUM * MASK_RATIO)               # 8
NUM_VISIBLE = PATCH_NUM - NUM_MASKED                   # 8
LN_EPS = 1e-5                                          # PyTorch LayerNorm default
OUT_PAD = 128                                          # lane-dense output slab width


# ---------------- fused Pallas kernel ----------------
def _fused_mae_kernel(vis_ref, vispos_ref, encpos_ref, decpos_ref, mtok_ref,
                      wqkv_ref, bqkv_ref, wout_ref, w1_ref, b1_ref, w2_ref, vec_ref,
                      outw_ref, outb_ref,
                      sel_e_ref, vmask_e_ref, ones_e_ref,
                      sel_d_ref, vmask_d_ref, ones_d_ref,
                      o_ref, *, bb, num_enc, num_dec, num_heads, head_dim):
    """Whole MAE transformer forward for `bb` batch rows per grid step.

    Weight layouts (prepared in the wrapper):
      wqkv_ref : [L, D, 3D]   (q|k|v columns; 1/sqrt(hd) folded into the q columns)
      bqkv_ref : [L, 1, 3D]
      wout_ref : [L, D, D]
      w1_ref   : [L, D, F], b1_ref: [L, 1, F], w2_ref: [L, F, D]
      vec_ref  : [L, 6, D]   rows = (bout, b2, ln1_g, ln1_b, ln2_g, ln2_b)
      outw_ref : [D, 128] (zero-padded), outb_ref: [1, 128]
    Attention constants, per sequence length n (C = H*n):
      sel_*    : [C, n]   sel[h*n+m, m'] = (m == m')        (block expander)
      vmask_*  : [C, D]   vmask[c, d]    = (d//hd == c//n)  (head selector)
      ones_*   : [C, C]   ones[c, c']    = (c//n == c'//n)  (per-head row sums)
    """
    d_model = num_heads * head_dim
    p_full = decpos_ref.shape[0]

    def layer_norm(h, g, b):
        mu = jnp.mean(h, axis=-1, keepdims=True)
        var = jnp.mean((h - mu) ** 2, axis=-1, keepdims=True)
        return (h - mu) * jax.lax.rsqrt(var + LN_EPS) * g + b

    def block(x, l, sel_ref, vmask_ref, ones_ref):
        vec = vec_ref[l]                                               # [6, D]
        # Fused QKV projection: one lane-dense MXU matmul + one bias row.
        qkv = jnp.dot(x, wqkv_ref[l], preferred_element_type=jnp.float32) + bqkv_ref[l]
        q = qkv[:, 0:d_model]                                          # [N, D] (pre-scaled)
        k = qkv[:, d_model:2 * d_model]
        v = qkv[:, 2 * d_model:3 * d_model]

        # "All heads at once" attention via block-diagonal masking (no per-head
        # slices, no transposes, no reshapes — the MXU does the data movement).
        k2 = (jnp.dot(sel_ref[...], k, preferred_element_type=jnp.float32)
              * vmask_ref[...])                                        # [C, D]
        s = jax.lax.dot_general(q, k2, (((1,), (1,)), ((), ())),
                                preferred_element_type=jnp.float32)   # [N, C] lane-dense
        # Row max is constant within each head block -> valid softmax shift per head.
        s = s - jnp.max(s, axis=-1, keepdims=True)
        p = jnp.exp(s)
        denom = jnp.dot(p, ones_ref[...], preferred_element_type=jnp.float32)
        p = p * pl.reciprocal(denom, approx=True)
        v2 = (jnp.dot(sel_ref[...], v, preferred_element_type=jnp.float32)
              * vmask_ref[...])                                        # [C, D]
        ctx = jnp.dot(p, v2, preferred_element_type=jnp.float32)      # [N, D], heads lane-concat
        attn = jnp.dot(ctx, wout_ref[l], preferred_element_type=jnp.float32) + vec[0:1, :]

        # residual + LayerNorm 1
        h1 = layer_norm(x + attn, vec[2:3, :], vec[3:4, :])
        # FFN: Linear -> ReLU -> [Dropout=id] -> Linear -> [Dropout=id]
        f = jnp.dot(h1, w1_ref[l], preferred_element_type=jnp.float32) + b1_ref[l]
        f = jnp.maximum(f, 0.0)
        f = jnp.dot(f, w2_ref[l], preferred_element_type=jnp.float32) + vec[1:2, :]
        # residual + LayerNorm 2
        return layer_norm(h1 + f, vec[4:5, :], vec[5:6, :])

    for bi in range(bb):
        # ---- encoder over visible patches ----
        x = vis_ref[bi] + encpos_ref[...]                              # [Nv, D]
        for l in range(num_enc):
            x = block(x, l, sel_e_ref, vmask_e_ref, ones_e_ref)

        # ---- re-assemble full sequence: in-kernel one-hot + mask tokens + dec pos ----
        pos = vispos_ref[bi]                                           # [1, Nv] int32
        patch_ids = jax.lax.broadcasted_iota(jnp.int32, (p_full, pos.shape[-1]), 0)
        s_mat = (patch_ids == pos).astype(jnp.float32)                 # [P, Nv]
        is_masked = 1.0 - jnp.sum(s_mat, axis=-1, keepdims=True)       # [P, 1]
        y = (jnp.dot(s_mat, x, preferred_element_type=jnp.float32)
             + is_masked * mtok_ref[...] + decpos_ref[...])            # [P, D]

        # ---- decoder over the full sequence ----
        for l in range(num_enc, num_enc + num_dec):
            y = block(y, l, sel_d_ref, vmask_d_ref, ones_d_ref)

        # ---- output projection into a lane-dense (128-wide) slab ----
        o_ref[bi] = (jnp.dot(y, outw_ref[...], preferred_element_type=jnp.float32)
                     + outb_ref[...])


def _replicated_spec(shape):
    nd = len(shape)
    return pl.BlockSpec(shape, lambda b, _nd=nd: (0,) * _nd)


def _batch_block(batch):
    """Batch rows per grid step: fold the batch on single-TC chips (v5e/v6e), keep one
    row per step (grid 'parallel' across TensorCores) otherwise (v7x, megacore, ...)."""
    try:
        kind = jax.devices()[0].device_kind.lower()
    except Exception:
        return 1
    single_tc = any(t in kind for t in
                    ("v5e", "v5 lite", "v5lite", "v6e", "v6 lite", "v6lite", "trillium"))
    return batch if single_tc else 1


def fused_transformer(visible, vis_pos, packed):
    """One pallas_call running the full network."""
    B, Nv, D = visible.shape
    P = PATCH_NUM
    bb = _batch_block(B)
    grid = (B // bb,)

    kernel = functools.partial(
        _fused_mae_kernel, bb=bb,
        num_enc=NUM_ENCODER_LAYERS, num_dec=NUM_DECODER_LAYERS,
        num_heads=NUM_HEADS, head_dim=HEAD_DIM)

    rep_keys = ("enc_pos", "dec_pos", "mask_token", "wqkv", "bqkv", "wout",
                "w1", "b1", "w2", "vecd", "out_w", "out_b",
                "sel_e", "vmask_e", "ones_e", "sel_d", "vmask_d", "ones_d")
    rep_inputs = [packed[k] for k in rep_keys]

    in_specs = ([pl.BlockSpec((bb, Nv, D), lambda b: (b, 0, 0)),     # visible patches
                 pl.BlockSpec((bb, 1, Nv), lambda b: (b, 0, 0))]     # sorted visible positions
                + [_replicated_spec(a.shape) for a in rep_inputs])

    out_padded = pl.pallas_call(
        kernel,
        out_shape=jax.ShapeDtypeStruct((B, P, OUT_PAD), jnp.float32),
        grid=grid,
        in_specs=in_specs,
        out_specs=pl.BlockSpec((bb, P, OUT_PAD), lambda b: (b, 0, 0)),
        compiler_params=pltpu.CompilerParams(dimension_semantics=("parallel",)),
    )(visible, vis_pos, *rep_inputs)
    return out_padded[..., :PATCH_EMBD]


# ---------------- parameter packing (plain JAX, outside the kernel) ----------------
def _attn_constants(n):
    """Constant matrices for the block-diagonal (all-heads-at-once) attention."""
    c = NUM_HEADS * n
    cid = jnp.arange(c)
    did = jnp.arange(PATCH_EMBD)
    mid = jnp.arange(n)
    sel = (cid[:, None] % n == mid[None, :]).astype(jnp.float32)                   # [C, n]
    vmask = ((did[None, :] // HEAD_DIM) == (cid[:, None] // n)).astype(jnp.float32)  # [C, D]
    ones_blk = ((cid[:, None] // n) == (cid[None, :] // n)).astype(jnp.float32)    # [C, C]
    return sel, vmask, ones_blk


def pack_transformer_params(params):
    """Stack per-layer weights (few DMA descriptors, fetched once), fold the attention
    scale into Wq/bq, and zero-pad the output projection to a 128-lane slab."""
    D = PATCH_EMBD
    scale = 1.0 / math.sqrt(HEAD_DIM)
    col_scale = jnp.concatenate(
        [jnp.full((1, D), scale, jnp.float32), jnp.ones((1, 2 * D), jnp.float32)], axis=1)

    wqkv_l, bqkv_l, wout_l, w1_l, b1_l, w2_l, vec_l = [], [], [], [], [], [], []
    for (wqkv, bqkv, wout, bout, w1, b1, w2, b2, g1, be1, g2, be2) in (
            params["encoder_layers"] + params["decoder_layers"]):
        wqkv_l.append(wqkv * col_scale)            # [D, 3D], q columns pre-scaled
        bqkv_l.append(bqkv * col_scale)            # [1, 3D]
        wout_l.append(wout)                        # [D, D]
        w1_l.append(w1); b1_l.append(b1); w2_l.append(w2)
        vec_l.append(jnp.concatenate([bout, b2, g1, be1, g2, be2], axis=0))  # [6, D]

    sel_e, vmask_e, ones_e = _attn_constants(NUM_VISIBLE)
    sel_d, vmask_d, ones_d = _attn_constants(PATCH_NUM)

    return {
        "wqkv": jnp.stack(wqkv_l), "bqkv": jnp.stack(bqkv_l), "wout": jnp.stack(wout_l),
        "w1": jnp.stack(w1_l), "b1": jnp.stack(b1_l), "w2": jnp.stack(w2_l),
        "vecd": jnp.stack(vec_l),
        "out_w": jnp.pad(params["out_w"], ((0, 0), (0, OUT_PAD - D))),
        "out_b": jnp.pad(params["out_b"], ((0, 0), (0, OUT_PAD - D))),
        "mask_token": params["mask_token"].reshape(1, D),
        "enc_pos": params["encoder_pos_embedding"][0],     # [Nv, D]
        "dec_pos": params["decoder_pos_embedding"][0],     # [P, D]
        "sel_e": sel_e, "vmask_e": vmask_e, "ones_e": ones_e,
        "sel_d": sel_d, "vmask_d": vmask_d, "ones_d": ones_d,
    }


# ---------------- plain-JAX glue (reshapes / masking) ----------------
def get_patch_embedding(images, patch_size=PATCH_SIZE):
    # NCHW; per patch the feature layout is (C, ph, pw) flattened, matching
    # torch unfold+permute+view.
    B, C, H, W = images.shape
    assert H % patch_size == 0 and W % patch_size == 0
    nh, nw = H // patch_size, W // patch_size
    p = images.reshape(B, C, nh, patch_size, nw, patch_size)
    p = p.transpose(0, 2, 4, 1, 3, 5)              # [B, nh, nw, C, ps, ps]
    return p.reshape(B, nh * nw, C * patch_size * patch_size)


def separate_mask_and_patches(x, key, mask_ratio=MASK_RATIO):
    # TODO(synk): torch.randperm (global torch RNG) replaced by jax.random.permutation
    # with per-batch keys; same semantics, different random stream.
    B, N, D = x.shape
    num_masked = int(N * mask_ratio)
    keys = jax.random.split(key, B)
    perms = jnp.stack([jax.random.permutation(k, N) for k in keys])      # [B, N]
    masked_idx = perms[:, :num_masked]                                   # [B, Nm]
    visible_idx = perms[:, num_masked:]                                  # [B, Nv]
    visible = jnp.take_along_axis(x, visible_idx[:, :, None], axis=1)
    masked = jnp.take_along_axis(x, masked_idx[:, :, None], axis=1)
    mask = jnp.zeros((B, N), dtype=bool)
    mask = jax.vmap(lambda m, idx: m.at[idx].set(True))(mask, masked_idx)
    return visible, masked, mask, visible_idx


def transformer_forward(params, images, mask_key):
    patches = get_patch_embedding(images)                         # [B, P, D]
    visible, _masked, _mask, visible_idx = separate_mask_and_patches(patches, mask_key)

    # PyTorch `full_sequence[mask == 0] = visible_patches` fills mask==0 positions in
    # ascending index order with the permutation-ordered visible rows; the sorted
    # visible positions drive an in-kernel one-hot scatter.
    B = visible.shape[0]
    vis_pos_sorted = jnp.sort(visible_idx, axis=1).astype(jnp.int32)          # [B, Nv]
    vis_pos_sorted = vis_pos_sorted.reshape(B, 1, NUM_VISIBLE)

    packed = pack_transformer_params(params)
    return fused_transformer(visible, vis_pos_sorted, packed)


# ---------------- deterministic parameter init ----------------
def init_block_params(key, d_model, ff_hidden):
    ks = jax.random.split(key, 8)
    s = 0.02
    wqkv = jax.random.normal(ks[0], (d_model, 3 * d_model), jnp.float32) * s
    bqkv = jax.random.normal(ks[1], (1, 3 * d_model), jnp.float32) * s
    wout = jax.random.normal(ks[2], (d_model, d_model), jnp.float32) * s
    bout = jax.random.normal(ks[3], (1, d_model), jnp.float32) * s
    w1 = jax.random.normal(ks[4], (d_model, ff_hidden), jnp.float32) * s
    b1 = jax.random.normal(ks[5], (1, ff_hidden), jnp.float32) * s
    w2 = jax.random.normal(ks[6], (ff_hidden, d_model), jnp.float32) * s
    b2 = jax.random.normal(ks[7], (1, d_model), jnp.float32) * s
    g1 = jnp.ones((1, d_model), jnp.float32)
    be1 = jnp.zeros((1, d_model), jnp.float32)
    g2 = jnp.ones((1, d_model), jnp.float32)
    be2 = jnp.zeros((1, d_model), jnp.float32)
    return (wqkv, bqkv, wout, bout, w1, b1, w2, b2, g1, be1, g2, be2)


def init_transformer_params(key):
    n_keys = NUM_ENCODER_LAYERS + NUM_DECODER_LAYERS + 5
    ks = jax.random.split(key, n_keys)
    enc = [init_block_params(ks[i], PATCH_EMBD, FF_HIDDEN)
           for i in range(NUM_ENCODER_LAYERS)]
    dec = [init_block_params(ks[NUM_ENCODER_LAYERS + i], PATCH_EMBD, FF_HIDDEN)
           for i in range(NUM_DECODER_LAYERS)]
    off = NUM_ENCODER_LAYERS + NUM_DECODER_LAYERS
    return {
        "encoder_layers": enc,
        "decoder_layers": dec,
        "out_w": jax.random.normal(ks[off], (PATCH_EMBD, PATCH_EMBD), jnp.float32) * 0.02,
        "out_b": jax.random.normal(ks[off + 1], (1, PATCH_EMBD), jnp.float32) * 0.02,
        "mask_token": jax.random.normal(ks[off + 2], (1, 1, PATCH_EMBD), jnp.float32),
        "encoder_pos_embedding": jax.random.normal(
            ks[off + 3], (1, NUM_VISIBLE, PATCH_EMBD), jnp.float32),
        "decoder_pos_embedding": jax.random.normal(
            ks[off + 4], (1, PATCH_NUM, PATCH_EMBD), jnp.float32),
    }


if __name__ == "__main__":
    root = jax.random.PRNGKey(0)
    k_params, k_input, k_mask = jax.random.split(root, 3)

    params = init_transformer_params(k_params)
    # images: [B, C, H, W] (NCHW), small shapes
    x = jax.random.normal(k_input, (2, C_IN, IMAGE_SIZE, IMAGE_SIZE), jnp.float32)

    out = transformer_forward(params, x, k_mask)
    out = jax.block_until_ready(out)
    assert out.shape == (2, PATCH_NUM, PATCH_EMBD)
    assert bool(jnp.all(jnp.isfinite(out)))
    print("KERNEL_OK")
</pallas_src>

<mosaic_0001>
module attributes {stable_mosaic.version = 11 : i64} {
  func.func @_fused_mae_kernel(%arg0: i32, %arg1: memref<1x8x48xf32, #tpu.memory_space<vmem>>, %arg2: memref<1x1x8xi32, #tpu.memory_space<vmem>>, %arg3: memref<8x48xf32, #tpu.memory_space<vmem>>, %arg4: memref<16x48xf32, #tpu.memory_space<vmem>>, %arg5: memref<1x48xf32, #tpu.memory_space<vmem>>, %arg6: memref<4x48x144xf32, #tpu.memory_space<vmem>>, %arg7: memref<4x1x144xf32, #tpu.memory_space<vmem>>, %arg8: memref<4x48x48xf32, #tpu.memory_space<vmem>>, %arg9: memref<4x48x64xf32, #tpu.memory_space<vmem>>, %arg10: memref<4x1x64xf32, #tpu.memory_space<vmem>>, %arg11: memref<4x64x48xf32, #tpu.memory_space<vmem>>, %arg12: memref<4x6x48xf32, #tpu.memory_space<vmem>>, %arg13: memref<48x128xf32, #tpu.memory_space<vmem>>, %arg14: memref<1x128xf32, #tpu.memory_space<vmem>>, %arg15: memref<64x8xf32, #tpu.memory_space<vmem>>, %arg16: memref<64x48xf32, #tpu.memory_space<vmem>>, %arg17: memref<64x64xf32, #tpu.memory_space<vmem>>, %arg18: memref<128x16xf32, #tpu.memory_space<vmem>>, %arg19: memref<128x48xf32, #tpu.memory_space<vmem>>, %arg20: memref<128x128xf32, #tpu.memory_space<vmem>>, %arg21: memref<1x16x128xf32, #tpu.memory_space<vmem>>) attributes {dimension_semantics = [#tpu.dimension_semantics<parallel>], iteration_bounds = array<i64: 2>, scalar_prefetch = 0 : i64, scratch_operands = 0 : i64, tpu.core_type = #tpu.core_type<tc>, window_params = [{transform_indices = @transform_0, window_bounds = array<i64: 1, 8, 48>}, {transform_indices = @transform_1, window_bounds = array<i64: 1, 1, 8>}, {pipeline_mode = #tpu.pipeline_mode<synchronous>, transform_indices = @transform_2, window_bounds = array<i64: 8, 48>}, {pipeline_mode = #tpu.pipeline_mode<synchronous>, transform_indices = @transform_3, window_bounds = array<i64: 16, 48>}, {pipeline_mode = #tpu.pipeline_mode<synchronous>, transform_indices = @transform_4, window_bounds = array<i64: 1, 48>}, {pipeline_mode = #tpu.pipeline_mode<synchronous>, transform_indices = @transform_5, window_bounds = array<i64: 4, 48, 144>}, {pipeline_mode = #tpu.pipeline_mode<synchronous>, transform_indices = @transform_6, window_bounds = array<i64: 4, 1, 144>}, {pipeline_mode = #tpu.pipeline_mode<synchronous>, transform_indices = @transform_7, window_bounds = array<i64: 4, 48, 48>}, {pipeline_mode = #tpu.pipeline_mode<synchronous>, transform_indices = @transform_8, window_bounds = array<i64: 4, 48, 64>}, {pipeline_mode = #tpu.pipeline_mode<synchronous>, transform_indices = @transform_9, window_bounds = array<i64: 4, 1, 64>}, {pipeline_mode = #tpu.pipeline_mode<synchronous>, transform_indices = @transform_10, window_bounds = array<i64: 4, 64, 48>}, {pipeline_mode = #tpu.pipeline_mode<synchronous>, transform_indices = @transform_11, window_bounds = array<i64: 4, 6, 48>}, {pipeline_mode = #tpu.pipeline_mode<synchronous>, transform_indices = @transform_12, window_bounds = array<i64: 48, 128>}, {pipeline_mode = #tpu.pipeline_mode<synchronous>, transform_indices = @transform_13, window_bounds = array<i64: 1, 128>}, {pipeline_mode = #tpu.pipeline_mode<synchronous>, transform_indices = @transform_14, window_bounds = array<i64: 64, 8>}, {pipeline_mode = #tpu.pipeline_mode<synchronous>, transform_indices = @transform_15, window_bounds = array<i64: 64, 48>}, {pipeline_mode = #tpu.pipeline_mode<synchronous>, transform_indices = @transform_16, window_bounds = array<i64: 64, 64>}, {pipeline_mode = #tpu.pipeline_mode<synchronous>, transform_indices = @transform_17, window_bounds = array<i64: 128, 16>}, {pipeline_mode = #tpu.pipeline_mode<synchronous>, transform_indices = @transform_18, window_bounds = array<i64: 128, 48>}, {pipeline_mode = #tpu.pipeline_mode<synchronous>, transform_indices = @transform_19, window_bounds = array<i64: 128, 128>}, {transform_indices = @transform_20, window_bounds = array<i64: 1, 16, 128>}]} {
    %c0 = arith.constant 0 : index
    %c0_0 = arith.constant 0 : index
    %c0_1 = arith.constant 0 : index
    %0 = vector.load %arg1[%c0, %c0_0, %c0_1] : memref<1x8x48xf32, #tpu.memory_space<vmem>>, vector<1x8x48xf32>
    %1 = vector.shape_cast %0 : vector<1x8x48xf32> to vector<8x48xf32>
    %c0_2 = arith.constant 0 : index
    %c0_3 = arith.constant 0 : index
    %2 = vector.load %arg3[%c0_2, %c0_3] : memref<8x48xf32, #tpu.memory_space<vmem>>, vector<8x48xf32>
    %3 = arith.addf %1, %2 : vector<8x48xf32>
    %c0_4 = arith.constant 0 : index
    %c0_5 = arith.constant 0 : index
    %c0_6 = arith.constant 0 : index
    %4 = vector.load %arg12[%c0_4, %c0_5, %c0_6] : memref<4x6x48xf32, #tpu.memory_space<vmem>>, vector<1x6x48xf32>
    %5 = vector.shape_cast %4 : vector<1x6x48xf32> to vector<6x48xf32>
    %c0_7 = arith.constant 0 : index
    %c0_8 = arith.constant 0 : index
    %c0_9 = arith.constant 0 : index
    %6 = vector.load %arg6[%c0_7, %c0_8, %c0_9] : memref<4x48x144xf32, #tpu.memory_space<vmem>>, vector<1x48x144xf32>
    %7 = vector.shape_cast %6 : vector<1x48x144xf32> to vector<48x144xf32>
    %cst = arith.constant dense<0.000000e+00> : vector<8x144xf32>
    %8 = tpu.matmul %3, %7, %cst {dimension_numbers = #tpu.dot_dimension_numbers<[1], [0], [0], [1], [0, 0, 1, 1], [], []>} : vector<8x48xf32>, vector<48x144xf32>, vector<8x144xf32> -> vector<8x144xf32>
    %c0_10 = arith.constant 0 : index
    %c0_11 = arith.constant 0 : index
    %c0_12 = arith.constant 0 : index
    %9 = vector.load %arg7[%c0_10, %c0_11, %c0_12] : memref<4x1x144xf32, #tpu.memory_space<vmem>>, vector<1x1x144xf32>
    %10 = vector.shape_cast %9 : vector<1x1x144xf32> to vector<1x144xf32>
    %11 = vector.broadcast %10 : vector<1x144xf32> to vector<8x144xf32>
    %12 = arith.addf %8, %11 : vector<8x144xf32>
    %13 = vector.extract_strided_slice %12 {offsets = [0, 0], sizes = [8, 48], strides = [1, 1]} : vector<8x144xf32> to vector<8x48xf32>
    %14 = vector.extract_strided_slice %12 {offsets = [0, 48], sizes = [8, 48], strides = [1, 1]} : vector<8x144xf32> to vector<8x48xf32>
    %15 = vector.extract_strided_slice %12 {offsets = [0, 96], sizes = [8, 48], strides = [1, 1]} : vector<8x144xf32> to vector<8x48xf32>
    %c0_13 = arith.constant 0 : index
    %c0_14 = arith.constant 0 : index
    %16 = vector.load %arg15[%c0_13, %c0_14] : memref<64x8xf32, #tpu.memory_space<vmem>>, vector<64x8xf32>
    %cst_15 = arith.constant dense<0.000000e+00> : vector<64x48xf32>
    %17 = tpu.matmul %16, %14, %cst_15 {dimension_numbers = #tpu.dot_dimension_numbers<[1], [0], [0], [1], [0, 0, 1, 1], [], []>} : vector<64x8xf32>, vector<8x48xf32>, vector<64x48xf32> -> vector<64x48xf32>
    %c0_16 = arith.constant 0 : index
    %c0_17 = arith.constant 0 : index
    %18 = vector.load %arg16[%c0_16, %c0_17] : memref<64x48xf32, #tpu.memory_space<vmem>>, vector<64x48xf32>
    %19 = arith.mulf %17, %18 : vector<64x48xf32>
    %cst_18 = arith.constant dense<0.000000e+00> : vector<8x64xf32>
    %20 = tpu.matmul %13, %19, %cst_18 {dimension_numbers = #tpu.dot_dimension_numbers<[1], [1], [0], [0], [0, 0, 1, 0], [], []>} : vector<8x48xf32>, vector<64x48xf32>, vector<8x64xf32> -> vector<8x64xf32>
    %cst_19 = arith.constant dense<0xFF800000> : vector<8xf32>
    %21 = vector.multi_reduction <maximumf>, %20, %cst_19 [1] : vector<8x64xf32> to vector<8xf32>
    %22 = vector.shape_cast %21 : vector<8xf32> to vector<8x1xf32>
    %23 = vector.broadcast %22 : vector<8x1xf32> to vector<8x64xf32>
    %24 = arith.subf %20, %23 : vector<8x64xf32>
    %25 = math.exp %24 : vector<8x64xf32>
    %c0_20 = arith.constant 0 : index
    %c0_21 = arith.constant 0 : index
    %26 = vector.load %arg17[%c0_20, %c0_21] : memref<64x64xf32, #tpu.memory_space<vmem>>, vector<64x64xf32>
    %cst_22 = arith.constant dense<0.000000e+00> : vector<8x64xf32>
    %27 = tpu.matmul %25, %26, %cst_22 {dimension_numbers = #tpu.dot_dimension_numbers<[1], [0], [0], [1], [0, 0, 1, 1], [], []>} : vector<8x64xf32>, vector<64x64xf32>, vector<8x64xf32> -> vector<8x64xf32>
    %28 = tpu.reciprocal %27 {approx = true} : vector<8x64xf32> -> vector<8x64xf32>
    %29 = arith.mulf %25, %28 : vector<8x64xf32>
    %c0_23 = arith.constant 0 : index
    %c0_24 = arith.constant 0 : index
    %30 = vector.load %arg15[%c0_23, %c0_24] : memref<64x8xf32, #tpu.memory_space<vmem>>, vector<64x8xf32>
    %cst_25 = arith.constant dense<0.000000e+00> : vector<64x48xf32>
    %31 = tpu.matmul %30, %15, %cst_25 {dimension_numbers = #tpu.dot_dimension_numbers<[1], [0], [0], [1], [0, 0, 1, 1], [], []>} : vector<64x8xf32>, vector<8x48xf32>, vector<64x48xf32> -> vector<64x48xf32>
    %c0_26 = arith.constant 0 : index
    %c0_27 = arith.constant 0 : index
    %32 = vector.load %arg16[%c0_26, %c0_27] : memref<64x48xf32, #tpu.memory_space<vmem>>, vector<64x48xf32>
    %33 = arith.mulf %31, %32 : vector<64x48xf32>
    %cst_28 = arith.constant dense<0.000000e+00> : vector<8x48xf32>
    %34 = tpu.matmul %29, %33, %cst_28 {dimension_numbers = #tpu.dot_dimension_numbers<[1], [0], [0], [1], [0, 0, 1, 1], [], []>} : vector<8x64xf32>, vector<64x48xf32>, vector<8x48xf32> -> vector<8x48xf32>
    %c0_29 = arith.constant 0 : index
    %c0_30 = arith.constant 0 : index
    %c0_31 = arith.constant 0 : index
    %35 = vector.load %arg8[%c0_29, %c0_30, %c0_31] : memref<4x48x48xf32, #tpu.memory_space<vmem>>, vector<1x48x48xf32>
    %36 = vector.shape_cast %35 : vector<1x48x48xf32> to vector<48x48xf32>
    %cst_32 = arith.constant dense<0.000000e+00> : vector<8x48xf32>
    %37 = tpu.matmul %34, %36, %cst_32 {dimension_numbers = #tpu.dot_dimension_numbers<[1], [0], [0], [1], [0, 0, 1, 1], [], []>} : vector<8x48xf32>, vector<48x48xf32>, vector<8x48xf32> -> vector<8x48xf32>
    %38 = vector.extract_strided_slice %5 {offsets = [0, 0], sizes = [1, 48], strides = [1, 1]} : vector<6x48xf32> to vector<1x48xf32>
    %39 = vector.broadcast %38 : vector<1x48xf32> to vector<8x48xf32>
    %40 = arith.addf %37, %39 : vector<8x48xf32>
    %41 = arith.addf %3, %40 : vector<8x48xf32>
    %42 = vector.extract_strided_slice %5 {offsets = [2, 0], sizes = [1, 48], strides = [1, 1]} : vector<6x48xf32> to vector<1x48xf32>
    %43 = vector.extract_strided_slice %5 {offsets = [3, 0], sizes = [1, 48], strides = [1, 1]} : vector<6x48xf32> to vector<1x48xf32>
    %cst_33 = arith.constant dense<0.000000e+00> : vector<8xf32>
    %44 = vector.multi_reduction <add>, %41, %cst_33 [1] : vector<8x48xf32> to vector<8xf32>
    %45 = vector.shape_cast %44 : vector<8xf32> to vector<8x1xf32>
    %cst_34 = arith.constant 4.800000e+01 : f32
    %46 = vector.broadcast %cst_34 : f32 to vector<8x1xf32>
    %47 = arith.divf %45, %46 : vector<8x1xf32>
    %48 = vector.broadcast %47 : vector<8x1xf32> to vector<8x48xf32>
    %49 = arith.subf %41, %48 : vector<8x48xf32>
    %50 = arith.mulf %49, %49 : vector<8x48xf32>
    %cst_35 = arith.constant dense<0.000000e+00> : vector<8xf32>
    %51 = vector.multi_reduction <add>, %50, %cst_35 [1] : vector<8x48xf32> to vector<8xf32>
    %52 = vector.shape_cast %51 : vector<8xf32> to vector<8x1xf32>
    %cst_36 = arith.constant 4.800000e+01 : f32
    %53 = vector.broadcast %cst_36 : f32 to vector<8x1xf32>
    %54 = arith.divf %52, %53 : vector<8x1xf32>
    %55 = vector.broadcast %47 : vector<8x1xf32> to vector<8x48xf32>
    %56 = arith.subf %41, %55 : vector<8x48xf32>
    %cst_37 = arith.constant 9.99999974E-6 : f32
    %57 = vector.broadcast %cst_37 : f32 to vector<8x1xf32>
    %58 = arith.addf %54, %57 : vector<8x1xf32>
    %59 = math.rsqrt %58 : vector<8x1xf32>
    %60 = vector.broadcast %59 : vector<8x1xf32> to vector<8x48xf32>
    %61 = arith.mulf %56, %60 : vector<8x48xf32>
    %62 = vector.broadcast %42 : vector<1x48xf32> to vector<8x48xf32>
    %63 = arith.mulf %61, %62 : vector<8x48xf32>
    %64 = vector.broadcast %43 : vector<1x48xf32> to vector<8x48xf32>
    %65 = arith.addf %63, %64 : vector<8x48xf32>
    %c0_38 = arith.constant 0 : index
    %c0_39 = arith.constant 0 : index
    %c0_40 = arith.constant 0 : index
    %66 = vector.load %arg9[%c0_38, %c0_39, %c0_40] : memref<4x48x64xf32, #tpu.memory_space<vmem>>, vector<1x48x64xf32>
    %67 = vector.shape_cast %66 : vector<1x48x64xf32> to vector<48x64xf32>
    %cst_41 = arith.constant dense<0.000000e+00> : vector<8x64xf32>
    %68 = tpu.matmul %65, %67, %cst_41 {dimension_numbers = #tpu.dot_dimension_numbers<[1], [0], [0], [1], [0, 0, 1, 1], [], []>} : vector<8x48xf32>, vector<48x64xf32>, vector<8x64xf32> -> vector<8x64xf32>
    %c0_42 = arith.constant 0 : index
    %c0_43 = arith.constant 0 : index
    %c0_44 = arith.constant 0 : index
    %69 = vector.load %arg10[%c0_42, %c0_43, %c0_44] : memref<4x1x64xf32, #tpu.memory_space<vmem>>, vector<1x1x64xf32>
    %70 = vector.shape_cast %69 : vector<1x1x64xf32> to vector<1x64xf32>
    %71 = vector.broadcast %70 : vector<1x64xf32> to vector<8x64xf32>
    %72 = arith.addf %68, %71 : vector<8x64xf32>
    %cst_45 = arith.constant 0.000000e+00 : f32
    %73 = vector.broadcast %cst_45 : f32 to vector<8x64xf32>
    %74 = arith.maximumf %72, %73 : vector<8x64xf32>
    %c0_46 = arith.constant 0 : index
    %c0_47 = arith.constant 0 : index
    %c0_48 = arith.constant 0 : index
    %75 = vector.load %arg11[%c0_46, %c0_47, %c0_48] : memref<4x64x48xf32, #tpu.memory_space<vmem>>, vector<1x64x48xf32>
    %76 = vector.shape_cast %75 : vector<1x64x48xf32> to vector<64x48xf32>
    %cst_49 = arith.constant dense<0.000000e+00> : vector<8x48xf32>
    %77 = tpu.matmul %74, %76, %cst_49 {dimension_numbers = #tpu.dot_dimension_numbers<[1], [0], [0], [1], [0, 0, 1, 1], [], []>} : vector<8x64xf32>, vector<64x48xf32>, vector<8x48xf32> -> vector<8x48xf32>
    %78 = vector.extract_strided_slice %5 {offsets = [1, 0], sizes = [1, 48], strides = [1, 1]} : vector<6x48xf32> to vector<1x48xf32>
    %79 = vector.broadcast %78 : vector<1x48xf32> to vector<8x48xf32>
    %80 = arith.addf %77, %79 : vector<8x48xf32>
    %81 = arith.addf %65, %80 : vector<8x48xf32>
    %82 = vector.extract_strided_slice %5 {offsets = [4, 0], sizes = [1, 48], strides = [1, 1]} : vector<6x48xf32> to vector<1x48xf32>
    %83 = vector.extract_strided_slice %5 {offsets = [5, 0], sizes = [1, 48], strides = [1, 1]} : vector<6x48xf32> to vector<1x48xf32>
    %cst_50 = arith.constant dense<0.000000e+00> : vector<8xf32>
    %84 = vector.multi_reduction <add>, %81, %cst_50 [1] : vector<8x48xf32> to vector<8xf32>
    %85 = vector.shape_cast %84 : vector<8xf32> to vector<8x1xf32>
    %cst_51 = arith.constant 4.800000e+01 : f32
    %86 = vector.broadcast %cst_51 : f32 to vector<8x1xf32>
    %87 = arith.divf %85, %86 : vector<8x1xf32>
    %88 = vector.broadcast %87 : vector<8x1xf32> to vector<8x48xf32>
    %89 = arith.subf %81, %88 : vector<8x48xf32>
    %90 = arith.mulf %89, %89 : vector<8x48xf32>
    %cst_52 = arith.constant dense<0.000000e+00> : vector<8xf32>
    %91 = vector.multi_reduction <add>, %90, %cst_52 [1] : vector<8x48xf32> to vector<8xf32>
    %92 = vector.shape_cast %91 : vector<8xf32> to vector<8x1xf32>
    %cst_53 = arith.constant 4.800000e+01 : f32
    %93 = vector.broadcast %cst_53 : f32 to vector<8x1xf32>
    %94 = arith.divf %92, %93 : vector<8x1xf32>
    %95 = vector.broadcast %87 : vector<8x1xf32> to vector<8x48xf32>
    %96 = arith.subf %81, %95 : vector<8x48xf32>
    %cst_54 = arith.constant 9.99999974E-6 : f32
    %97 = vector.broadcast %cst_54 : f32 to vector<8x1xf32>
    %98 = arith.addf %94, %97 : vector<8x1xf32>
    %99 = math.rsqrt %98 : vector<8x1xf32>
    %100 = vector.broadcast %99 : vector<8x1xf32> to vector<8x48xf32>
    %101 = arith.mulf %96, %100 : vector<8x48xf32>
    %102 = vector.broadcast %82 : vector<1x48xf32> to vector<8x48xf32>
    %103 = arith.mulf %101, %102 : vector<8x48xf32>
    %104 = vector.broadcast %83 : vector<1x48xf32> to vector<8x48xf32>
    %105 = arith.addf %103, %104 : vector<8x48xf32>
    %c1 = arith.constant 1 : index
    %c0_55 = arith.constant 0 : index
    %c0_56 = arith.constant 0 : index
    %106 = vector.load %arg12[%c1, %c0_55, %c0_56] : memref<4x6x48xf32, #tpu.memory_space<vmem>>, vector<1x6x48xf32>
    %107 = vector.shape_cast %106 : vector<1x6x48xf32> to vector<6x48xf32>
    %c1_57 = arith.constant 1 : index
    %c0_58 = arith.constant 0 : index
    %c0_59 = arith.constant 0 : index
    %108 = vector.load %arg6[%c1_57, %c0_58, %c0_59] : memref<4x48x144xf32, #tpu.memory_space<vmem>>, vector<1x48x144xf32>
    %109 = vector.shape_cast %108 : vector<1x48x144xf32> to vector<48x144xf32>
    %cst_60 = arith.constant dense<0.000000e+00> : vector<8x144xf32>
    %110 = tpu.matmul %105, %109, %cst_60 {dimension_numbers = #tpu.dot_dimension_numbers<[1], [0], [0], [1], [0, 0, 1, 1], [], []>} : vector<8x48xf32>, vector<48x144xf32>, vector<8x144xf32> -> vector<8x144xf32>
    %c1_61 = arith.constant 1 : index
    %c0_62 = arith.constant 0 : index
    %c0_63 = arith.constant 0 : index
    %111 = vector.load %arg7[%c1_61, %c0_62, %c0_63] : memref<4x1x144xf32, #tpu.memory_space<vmem>>, vector<1x1x144xf32>
    %112 = vector.shape_cast %111 : vector<1x1x144xf32> to vector<1x144xf32>
    %113 = vector.broadcast %112 : vector<1x144xf32> to vector<8x144xf32>
    %114 = arith.addf %110, %113 : vector<8x144xf32>
    %115 = vector.extract_strided_slice %114 {offsets = [0, 0], sizes = [8, 48], strides = [1, 1]} : vector<8x144xf32> to vector<8x48xf32>
    %116 = vector.extract_strided_slice %114 {offsets = [0, 48], sizes = [8, 48], strides = [1, 1]} : vector<8x144xf32> to vector<8x48xf32>
    %117 = vector.extract_strided_slice %114 {offsets = [0, 96], sizes = [8, 48], strides = [1, 1]} : vector<8x144xf32> to vector<8x48xf32>
    %c0_64 = arith.constant 0 : index
    %c0_65 = arith.constant 0 : index
    %118 = vector.load %arg15[%c0_64, %c0_65] : memref<64x8xf32, #tpu.memory_space<vmem>>, vector<64x8xf32>
    %cst_66 = arith.constant dense<0.000000e+00> : vector<64x48xf32>
    %119 = tpu.matmul %118, %116, %cst_66 {dimension_numbers = #tpu.dot_dimension_numbers<[1], [0], [0], [1], [0, 0, 1, 1], [], []>} : vector<64x8xf32>, vector<8x48xf32>, vector<64x48xf32> -> vector<64x48xf32>
    %c0_67 = arith.constant 0 : index
    %c0_68 = arith.constant 0 : index
    %120 = vector.load %arg16[%c0_67, %c0_68] : memref<64x48xf32, #tpu.memory_space<vmem>>, vector<64x48xf32>
    %121 = arith.mulf %119, %120 : vector<64x48xf32>
    %cst_69 = arith.constant dense<0.000000e+00> : vector<8x64xf32>
    %122 = tpu.matmul %115, %121, %cst_69 {dimension_numbers = #tpu.dot_dimension_numbers<[1], [1], [0], [0], [0, 0, 1, 0], [], []>} : vector<8x48xf32>, vector<64x48xf32>, vector<8x64xf32> -> vector<8x64xf32>
    %cst_70 = arith.constant dense<0xFF800000> : vector<8xf32>
    %123 = vector.multi_reduction <maximumf>, %122, %cst_70 [1] : vector<8x64xf32> to vector<8xf32>
    %124 = vector.shape_cast %123 : vector<8xf32> to vector<8x1xf32>
    %125 = vector.broadcast %124 : vector<8x1xf32> to vector<8x64xf32>
    %126 = arith.subf %122, %125 : vector<8x64xf32>
    %127 = math.exp %126 : vector<8x64xf32>
    %c0_71 = arith.constant 0 : index
    %c0_72 = arith.constant 0 : index
    %128 = vector.load %arg17[%c0_71, %c0_72] : memref<64x64xf32, #tpu.memory_space<vmem>>, vector<64x64xf32>
    %cst_73 = arith.constant dense<0.000000e+00> : vector<8x64xf32>
    %129 = tpu.matmul %127, %128, %cst_73 {dimension_numbers = #tpu.dot_dimension_numbers<[1], [0], [0], [1], [0, 0, 1, 1], [], []>} : vector<8x64xf32>, vector<64x64xf32>, vector<8x64xf32> -> vector<8x64xf32>
    %130 = tpu.reciprocal %129 {approx = true} : vector<8x64xf32> -> vector<8x64xf32>
    %131 = arith.mulf %127, %130 : vector<8x64xf32>
    %c0_74 = arith.constant 0 : index
    %c0_75 = arith.constant 0 : index
    %132 = vector.load %arg15[%c0_74, %c0_75] : memref<64x8xf32, #tpu.memory_space<vmem>>, vector<64x8xf32>
    %cst_76 = arith.constant dense<0.000000e+00> : vector<64x48xf32>
    %133 = tpu.matmul %132, %117, %cst_76 {dimension_numbers = #tpu.dot_dimension_numbers<[1], [0], [0], [1], [0, 0, 1, 1], [], []>} : vector<64x8xf32>, vector<8x48xf32>, vector<64x48xf32> -> vector<64x48xf32>
    %c0_77 = arith.constant 0 : index
    %c0_78 = arith.constant 0 : index
    %134 = vector.load %arg16[%c0_77, %c0_78] : memref<64x48xf32, #tpu.memory_space<vmem>>, vector<64x48xf32>
    %135 = arith.mulf %133, %134 : vector<64x48xf32>
    %cst_79 = arith.constant dense<0.000000e+00> : vector<8x48xf32>
    %136 = tpu.matmul %131, %135, %cst_79 {dimension_numbers = #tpu.dot_dimension_numbers<[1], [0], [0], [1], [0, 0, 1, 1], [], []>} : vector<8x64xf32>, vector<64x48xf32>, vector<8x48xf32> -> vector<8x48xf32>
    %c1_80 = arith.constant 1 : index
    %c0_81 = arith.constant 0 : index
    %c0_82 = arith.constant 0 : index
    %137 = vector.load %arg8[%c1_80, %c0_81, %c0_82] : memref<4x48x48xf32, #tpu.memory_space<vmem>>, vector<1x48x48xf32>
    %138 = vector.shape_cast %137 : vector<1x48x48xf32> to vector<48x48xf32>
    %cst_83 = arith.constant dense<0.000000e+00> : vector<8x48xf32>
    %139 = tpu.matmul %136, %138, %cst_83 {dimension_numbers = #tpu.dot_dimension_numbers<[1], [0], [0], [1], [0, 0, 1, 1], [], []>} : vector<8x48xf32>, vector<48x48xf32>, vector<8x48xf32> -> vector<8x48xf32>
    %140 = vector.extract_strided_slice %107 {offsets = [0, 0], sizes = [1, 48], strides = [1, 1]} : vector<6x48xf32> to vector<1x48xf32>
    %141 = vector.broadcast %140 : vector<1x48xf32> to vector<8x48xf32>
    %142 = arith.addf %139, %141 : vector<8x48xf32>
    %143 = arith.addf %105, %142 : vector<8x48xf32>
    %144 = vector.extract_strided_slice %107 {offsets = [2, 0], sizes = [1, 48], strides = [1, 1]} : vector<6x48xf32> to vector<1x48xf32>
    %145 = vector.extract_strided_slice %107 {offsets = [3, 0], sizes = [1, 48], strides = [1, 1]} : vector<6x48xf32> to vector<1x48xf32>
    %cst_84 = arith.constant dense<0.000000e+00> : vector<8xf32>
    %146 = vector.multi_reduction <add>, %143, %cst_84 [1] : vector<8x48xf32> to vector<8xf32>
    %147 = vector.shape_cast %146 : vector<8xf32> to vector<8x1xf32>
    %cst_85 = arith.constant 4.800000e+01 : f32
    %148 = vector.broadcast %cst_85 : f32 to vector<8x1xf32>
    %149 = arith.divf %147, %148 : vector<8x1xf32>
    %150 = vector.broadcast %149 : vector<8x1xf32> to vector<8x48xf32>
    %151 = arith.subf %143, %150 : vector<8x48xf32>
    %152 = arith.mulf %151, %151 : vector<8x48xf32>
    %cst_86 = arith.constant dense<0.000000e+00> : vector<8xf32>
    %153 = vector.multi_reduction <add>, %152, %cst_86 [1] : vector<8x48xf32> to vector<8xf32>
    %154 = vector.shape_cast %153 : vector<8xf32> to vector<8x1xf32>
    %cst_87 = arith.constant 4.800000e+01 : f32
    %155 = vector.broadcast %cst_87 : f32 to vector<8x1xf32>
    %156 = arith.divf %154, %155 : vector<8x1xf32>
    %157 = vector.broadcast %149 : vector<8x1xf32> to vector<8x48xf32>
    %158 = arith.subf %143, %157 : vector<8x48xf32>
    %cst_88 = arith.constant 9.99999974E-6 : f32
    %159 = vector.broadcast %cst_88 : f32 to vector<8x1xf32>
    %160 = arith.addf %156, %159 : vector<8x1xf32>
    %161 = math.rsqrt %160 : vector<8x1xf32>
    %162 = vector.broadcast %161 : vector<8x1xf32> to vector<8x48xf32>
    %163 = arith.mulf %158, %162 : vector<8x48xf32>
    %164 = vector.broadcast %144 : vector<1x48xf32> to vector<8x48xf32>
    %165 = arith.mulf %163, %164 : vector<8x48xf32>
    %166 = vector.broadcast %145 : vector<1x48xf32> to vector<8x48xf32>
    %167 = arith.addf %165, %166 : vector<8x48xf32>
    %c1_89 = arith.constant 1 : index
    %c0_90 = arith.constant 0 : index
    %c0_91 = arith.constant 0 : index
    %168 = vector.load %arg9[%c1_89, %c0_90, %c0_91] : memref<4x48x64xf32, #tpu.memory_space<vmem>>, vector<1x48x64xf32>
    %169 = vector.shape_cast %168 : vector<1x48x64xf32> to vector<48x64xf32>
    %cst_92 = arith.constant dense<0.000000e+00> : vector<8x64xf32>
    %170 = tpu.matmul %167, %169, %cst_92 {dimension_numbers = #tpu.dot_dimension_numbers<[1], [0], [0], [1], [0, 0, 1, 1], [], []>} : vector<8x48xf32>, vector<48x64xf32>, vector<8x64xf32> -> vector<8x64xf32>
    %c1_93 = arith.constant 1 : index
    %c0_94 = arith.constant 0 : index
    %c0_95 = arith.constant 0 : index
    %171 = vector.load %arg10[%c1_93, %c0_94, %c0_95] : memref<4x1x64xf32, #tpu.memory_space<vmem>>, vector<1x1x64xf32>
    %172 = vector.shape_cast %171 : vector<1x1x64xf32> to vector<1x64xf32>
    %173 = vector.broadcast %172 : vector<1x64xf32> to vector<8x64xf32>
    %174 = arith.addf %170, %173 : vector<8x64xf32>
    %cst_96 = arith.constant 0.000000e+00 : f32
    %175 = vector.broadcast %cst_96 : f32 to vector<8x64xf32>
    %176 = arith.maximumf %174, %175 : vector<8x64xf32>
    %c1_97 = arith.constant 1 : index
    %c0_98 = arith.constant 0 : index
    %c0_99 = arith.constant 0 : index
    %177 = vector.load %arg11[%c1_97, %c0_98, %c0_99] : memref<4x64x48xf32, #tpu.memory_space<vmem>>, vector<1x64x48xf32>
    %178 = vector.shape_cast %177 : vector<1x64x48xf32> to vector<64x48xf32>
    %cst_100 = arith.constant dense<0.000000e+00> : vector<8x48xf32>
    %179 = tpu.matmul %176, %178, %cst_100 {dimension_numbers = #tpu.dot_dimension_numbers<[1], [0], [0], [1], [0, 0, 1, 1], [], []>} : vector<8x64xf32>, vector<64x48xf32>, vector<8x48xf32> -> vector<8x48xf32>
    %180 = vector.extract_strided_slice %107 {offsets = [1, 0], sizes = [1, 48], strides = [1, 1]} : vector<6x48xf32> to vector<1x48xf32>
    %181 = vector.broadcast %180 : vector<1x48xf32> to vector<8x48xf32>
    %182 = arith.addf %179, %181 : vector<8x48xf32>
    %183 = arith.addf %167, %182 : vector<8x48xf32>
    %184 = vector.extract_strided_slice %107 {offsets = [4, 0], sizes = [1, 48], strides = [1, 1]} : vector<6x48xf32> to vector<1x48xf32>
    %185 = vector.extract_strided_slice %107 {offsets = [5, 0], sizes = [1, 48], strides = [1, 1]} : vector<6x48xf32> to vector<1x48xf32>
    %cst_101 = arith.constant dense<0.000000e+00> : vector<8xf32>
    %186 = vector.multi_reduction <add>, %183, %cst_101 [1] : vector<8x48xf32> to vector<8xf32>
    %187 = vector.shape_cast %186 : vector<8xf32> to vector<8x1xf32>
    %cst_102 = arith.constant 4.800000e+01 : f32
    %188 = vector.broadcast %cst_102 : f32 to vector<8x1xf32>
    %189 = arith.divf %187, %188 : vector<8x1xf32>
    %190 = vector.broadcast %189 : vector<8x1xf32> to vector<8x48xf32>
    %191 = arith.subf %183, %190 : vector<8x48xf32>
    %192 = arith.mulf %191, %191 : vector<8x48xf32>
    %cst_103 = arith.constant dense<0.000000e+00> : vector<8xf32>
    %193 = vector.multi_reduction <add>, %192, %cst_103 [1] : vector<8x48xf32> to vector<8xf32>
    %194 = vector.shape_cast %193 : vector<8xf32> to vector<8x1xf32>
    %cst_104 = arith.constant 4.800000e+01 : f32
    %195 = vector.broadcast %cst_104 : f32 to vector<8x1xf32>
    %196 = arith.divf %194, %195 : vector<8x1xf32>
    %197 = vector.broadcast %189 : vector<8x1xf32> to vector<8x48xf32>
    %198 = arith.subf %183, %197 : vector<8x48xf32>
    %cst_105 = arith.constant 9.99999974E-6 : f32
    %199 = vector.broadcast %cst_105 : f32 to vector<8x1xf32>
    %200 = arith.addf %196, %199 : vector<8x1xf32>
    %201 = math.rsqrt %200 : vector<8x1xf32>
    %202 = vector.broadcast %201 : vector<8x1xf32> to vector<8x48xf32>
    %203 = arith.mulf %198, %202 : vector<8x48xf32>
    %204 = vector.broadcast %184 : vector<1x48xf32> to vector<8x48xf32>
    %205 = arith.mulf %203, %204 : vector<8x48xf32>
    %206 = vector.broadcast %185 : vector<1x48xf32> to vector<8x48xf32>
    %207 = arith.addf %205, %206 : vector<8x48xf32>
    %c0_106 = arith.constant 0 : index
    %c0_107 = arith.constant 0 : index
    %c0_108 = arith.constant 0 : index
    %208 = vector.load %arg2[%c0_106, %c0_107, %c0_108] : memref<1x1x8xi32, #tpu.memory_space<vmem>>, vector<1x1x8xi32>
    %209 = vector.shape_cast %208 : vector<1x1x8xi32> to vector<1x8xi32>
    %210 = tpu.iota {dimensions = array<i32: 0>} : vector<16x8xi32>
    %211 = vector.broadcast %209 : vector<1x8xi32> to vector<16x8xi32>
    %212 = arith.cmpi eq, %210, %211 : vector<16x8xi32>
    %213 = arith.extui %212 : vector<16x8xi1> to vector<16x8xi32>
    %214 = arith.sitofp %213 : vector<16x8xi32> to vector<16x8xf32>
    %cst_109 = arith.constant dense<0.000000e+00> : vector<16xf32>
    %215 = vector.multi_reduction <add>, %214, %cst_109 [1] : vector<16x8xf32> to vector<16xf32>
    %216 = vector.shape_cast %215 : vector<16xf32> to vector<16x1xf32>
    %cst_110 = arith.constant 1.000000e+00 : f32
    %217 = vector.broadcast %cst_110 : f32 to vector<16x1xf32>
    %218 = arith.subf %217, %216 : vector<16x1xf32>
    %cst_111 = arith.constant dense<0.000000e+00> : vector<16x48xf32>
    %219 = tpu.matmul %214, %207, %cst_111 {dimension_numbers = #tpu.dot_dimension_numbers<[1], [0], [0], [1], [0, 0, 1, 1], [], []>} : vector<16x8xf32>, vector<8x48xf32>, vector<16x48xf32> -> vector<16x48xf32>
    %c0_112 = arith.constant 0 : index
    %c0_113 = arith.constant 0 : index
    %220 = vector.load %arg5[%c0_112, %c0_113] : memref<1x48xf32, #tpu.memory_space<vmem>>, vector<1x48xf32>
    %221 = vector.broadcast %218 : vector<16x1xf32> to vector<16x48xf32>
    %222 = vector.broadcast %220 : vector<1x48xf32> to vector<16x48xf32>
    %223 = arith.mulf %221, %222 : vector<16x48xf32>
    %224 = arith.addf %219, %223 : vector<16x48xf32>
    %c0_114 = arith.constant 0 : index
    %c0_115 = arith.constant 0 : index
    %225 = vector.load %arg4[%c0_114, %c0_115] : memref<16x48xf32, #tpu.memory_space<vmem>>, vector<16x48xf32>
    %226 = arith.addf %224, %225 : vector<16x48xf32>
    %c2 = arith.constant 2 : index
    %c0_116 = arith.constant 0 : index
    %c0_117 = arith.constant 0 : index
    %227 = vector.load %arg12[%c2, %c0_116, %c0_117] : memref<4x6x48xf32, #tpu.memory_space<vmem>>, vector<1x6x48xf32>
    %228 = vector.shape_cast %227 : vector<1x6x48xf32> to vector<6x48xf32>
    %c2_118 = arith.constant 2 : index
    %c0_119 = arith.constant 0 : index
    %c0_120 = arith.constant 0 : index
    %229 = vector.load %arg6[%c2_118, %c0_119, %c0_120] : memref<4x48x144xf32, #tpu.memory_space<vmem>>, vector<1x48x144xf32>
    %230 = vector.shape_cast %229 : vector<1x48x144xf32> to vector<48x144xf32>
    %cst_121 = arith.constant dense<0.000000e+00> : vector<16x144xf32>
    %231 = tpu.matmul %226, %230, %cst_121 {dimension_numbers = #tpu.dot_dimension_numbers<[1], [0], [0], [1], [0, 0, 1, 1], [], []>} : vector<16x48xf32>, vector<48x144xf32>, vector<16x144xf32> -> vector<16x144xf32>
    %c2_122 = arith.constant 2 : index
    %c0_123 = arith.constant 0 : index
    %c0_124 = arith.constant 0 : index
    %232 = vector.load %arg7[%c2_122, %c0_123, %c0_124] : memref<4x1x144xf32, #tpu.memory_space<vmem>>, vector<1x1x144xf32>
    %233 = vector.shape_cast %232 : vector<1x1x144xf32> to vector<1x144xf32>
    %234 = vector.broadcast %233 : vector<1x144xf32> to vector<16x144xf32>
    %235 = arith.addf %231, %234 : vector<16x144xf32>
    %236 = vector.extract_strided_slice %235 {offsets = [0, 0], sizes = [16, 48], strides = [1, 1]} : vector<16x144xf32> to vector<16x48xf32>
    %237 = vector.extract_strided_slice %235 {offsets = [0, 48], sizes = [16, 48], strides = [1, 1]} : vector<16x144xf32> to vector<16x48xf32>
    %238 = vector.extract_strided_slice %235 {offsets = [0, 96], sizes = [16, 48], strides = [1, 1]} : vector<16x144xf32> to vector<16x48xf32>
    %c0_125 = arith.constant 0 : index
    %c0_126 = arith.constant 0 : index
    %239 = vector.load %arg18[%c0_125, %c0_126] : memref<128x16xf32, #tpu.memory_space<vmem>>, vector<128x16xf32>
    %cst_127 = arith.constant dense<0.000000e+00> : vector<128x48xf32>
    %240 = tpu.matmul %239, %237, %cst_127 {dimension_numbers = #tpu.dot_dimension_numbers<[1], [0], [0], [1], [0, 0, 1, 1], [], []>} : vector<128x16xf32>, vector<16x48xf32>, vector<128x48xf32> -> vector<128x48xf32>
    %c0_128 = arith.constant 0 : index
    %c0_129 = arith.constant 0 : index
    %241 = vector.load %arg19[%c0_128, %c0_129] : memref<128x48xf32, #tpu.memory_space<vmem>>, vector<128x48xf32>
    %242 = arith.mulf %240, %241 : vector<128x48xf32>
    %cst_130 = arith.constant dense<0.000000e+00> : vector<16x128xf32>
    %243 = tpu.matmul %236, %242, %cst_130 {dimension_numbers = #tpu.dot_dimension_numbers<[1], [1], [0], [0], [0, 0, 1, 0], [], []>} : vector<16x48xf32>, vector<128x48xf32>, vector<16x128xf32> -> vector<16x128xf32>
    %cst_131 = arith.constant dense<0xFF800000> : vector<16xf32>
    %244 = vector.multi_reduction <maximumf>, %243, %cst_131 [1] : vector<16x128xf32> to vector<16xf32>
    %245 = vector.shape_cast %244 : vector<16xf32> to vector<16x1xf32>
    %246 = vector.broadcast %245 : vector<16x1xf32> to vector<16x128xf32>
    %247 = arith.subf %243, %246 : vector<16x128xf32>
    %248 = math.exp %247 : vector<16x128xf32>
    %c0_132 = arith.constant 0 : index
    %c0_133 = arith.constant 0 : index
    %249 = vector.load %arg20[%c0_132, %c0_133] : memref<128x128xf32, #tpu.memory_space<vmem>>, vector<128x128xf32>
    %cst_134 = arith.constant dense<0.000000e+00> : vector<16x128xf32>
    %250 = tpu.matmul %248, %249, %cst_134 {dimension_numbers = #tpu.dot_dimension_numbers<[1], [0], [0], [1], [0, 0, 1, 1], [], []>} : vector<16x128xf32>, vector<128x128xf32>, vector<16x128xf32> -> vector<16x128xf32>
    %251 = tpu.reciprocal %250 {approx = true} : vector<16x128xf32> -> vector<16x128xf32>
    %252 = arith.mulf %248, %251 : vector<16x128xf32>
    %c0_135 = arith.constant 0 : index
    %c0_136 = arith.constant 0 : index
    %253 = vector.load %arg18[%c0_135, %c0_136] : memref<128x16xf32, #tpu.memory_space<vmem>>, vector<128x16xf32>
    %cst_137 = arith.constant dense<0.000000e+00> : vector<128x48xf32>
    %254 = tpu.matmul %253, %238, %cst_137 {dimension_numbers = #tpu.dot_dimension_numbers<[1], [0], [0], [1], [0, 0, 1, 1], [], []>} : vector<128x16xf32>, vector<16x48xf32>, vector<128x48xf32> -> vector<128x48xf32>
    %c0_138 = arith.constant 0 : index
    %c0_139 = arith.constant 0 : index
    %255 = vector.load %arg19[%c0_138, %c0_139] : memref<128x48xf32, #tpu.memory_space<vmem>>, vector<128x48xf32>
    %256 = arith.mulf %254, %255 : vector<128x48xf32>
    %cst_140 = arith.constant dense<0.000000e+00> : vector<16x48xf32>
    %257 = tpu.matmul %252, %256, %cst_140 {dimension_numbers = #tpu.dot_dimension_numbers<[1], [0], [0], [1], [0, 0, 1, 1], [], []>} : vector<16x128xf32>, vector<128x48xf32>, vector<16x48xf32> -> vector<16x48xf32>
    %c2_141 = arith.constant 2 : index
    %c0_142 = arith.constant 0 : index
    %c0_143 = arith.constant 0 : index
    %258 = vector.load %arg8[%c2_141, %c0_142, %c0_143] : memref<4x48x48xf32, #tpu.memory_space<vmem>>, vector<1x48x48xf32>
    %259 = vector.shape_cast %258 : vector<1x48x48xf32> to vector<48x48xf32>
    %cst_144 = arith.constant dense<0.000000e+00> : vector<16x48xf32>
    %260 = tpu.matmul %257, %259, %cst_144 {dimension_numbers = #tpu.dot_dimension_numbers<[1], [0], [0], [1], [0, 0, 1, 1], [], []>} : vector<16x48xf32>, vector<48x48xf32>, vector<16x48xf32> -> vector<16x48xf32>
    %261 = vector.extract_strided_slice %228 {offsets = [0, 0], sizes = [1, 48], strides = [1, 1]} : vector<6x48xf32> to vector<1x48xf32>
    %262 = vector.broadcast %261 : vector<1x48xf32> to vector<16x48xf32>
    %263 = arith.addf %260, %262 : vector<16x48xf32>
    %264 = arith.addf %226, %263 : vector<16x48xf32>
    %265 = vector.extract_strided_slice %228 {offsets = [2, 0], sizes = [1, 48], strides = [1, 1]} : vector<6x48xf32> to vector<1x48xf32>
    %266 = vector.extract_strided_slice %228 {offsets = [3, 0], sizes = [1, 48], strides = [1, 1]} : vector<6x48xf32> to vector<1x48xf32>
    %cst_145 = arith.constant dense<0.000000e+00> : vector<16xf32>
    %267 = vector.multi_reduction <add>, %264, %cst_145 [1] : vector<16x48xf32> to vector<16xf32>
    %268 = vector.shape_cast %267 : vector<16xf32> to vector<16x1xf32>
    %cst_146 = arith.constant 4.800000e+01 : f32
    %269 = vector.broadcast %cst_146 : f32 to vector<16x1xf32>
    %270 = arith.divf %268, %269 : vector<16x1xf32>
    %271 = vector.broadcast %270 : vector<16x1xf32> to vector<16x48xf32>
    %272 = arith.subf %264, %271 : vector<16x48xf32>
    %273 = arith.mulf %272, %272 : vector<16x48xf32>
    %cst_147 = arith.constant dense<0.000000e+00> : vector<16xf32>
    %274 = vector.multi_reduction <add>, %273, %cst_147 [1] : vector<16x48xf32> to vector<16xf32>
    %275 = vector.shape_cast %274 : vector<16xf32> to vector<16x1xf32>
    %cst_148 = arith.constant 4.800000e+01 : f32
    %276 = vector.broadcast %cst_148 : f32 to vector<16x1xf32>
    %277 = arith.divf %275, %276 : vector<16x1xf32>
    %278 = vector.broadcast %270 : vector<16x1xf32> to vector<16x48xf32>
    %279 = arith.subf %264, %278 : vector<16x48xf32>
    %cst_149 = arith.constant 9.99999974E-6 : f32
    %280 = vector.broadcast %cst_149 : f32 to vector<16x1xf32>
    %281 = arith.addf %277, %280 : vector<16x1xf32>
    %282 = math.rsqrt %281 : vector<16x1xf32>
    %283 = vector.broadcast %282 : vector<16x1xf32> to vector<16x48xf32>
    %284 = arith.mulf %279, %283 : vector<16x48xf32>
    %285 = vector.broadcast %265 : vector<1x48xf32> to vector<16x48xf32>
    %286 = arith.mulf %284, %285 : vector<16x48xf32>
    %287 = vector.broadcast %266 : vector<1x48xf32> to vector<16x48xf32>
    %288 = arith.addf %286, %287 : vector<16x48xf32>
    %c2_150 = arith.constant 2 : index
    %c0_151 = arith.constant 0 : index
    %c0_152 = arith.constant 0 : index
    %289 = vector.load %arg9[%c2_150, %c0_151, %c0_152] : memref<4x48x64xf32, #tpu.memory_space<vmem>>, vector<1x48x64xf32>
    %290 = vector.shape_cast %289 : vector<1x48x64xf32> to vector<48x64xf32>
    %cst_153 = arith.constant dense<0.000000e+00> : vector<16x64xf32>
    %291 = tpu.matmul %288, %290, %cst_153 {dimension_numbers = #tpu.dot_dimension_numbers<[1], [0], [0], [1], [0, 0, 1, 1], [], []>} : vector<16x48xf32>, vector<48x64xf32>, vector<16x64xf32> -> vector<16x64xf32>
    %c2_154 = arith.constant 2 : index
    %c0_155 = arith.constant 0 : index
    %c0_156 = arith.constant 0 : index
    %292 = vector.load %arg10[%c2_154, %c0_155, %c0_156] : memref<4x1x64xf32, #tpu.memory_space<vmem>>, vector<1x1x64xf32>
    %293 = vector.shape_cast %292 : vector<1x1x64xf32> to vector<1x64xf32>
    %294 = vector.broadcast %293 : vector<1x64xf32> to vector<16x64xf32>
    %295 = arith.addf %291, %294 : vector<16x64xf32>
    %cst_157 = arith.constant 0.000000e+00 : f32
    %296 = vector.broadcast %cst_157 : f32 to vector<16x64xf32>
    %297 = arith.maximumf %295, %296 : vector<16x64xf32>
    %c2_158 = arith.constant 2 : index
    %c0_159 = arith.constant 0 : index
    %c0_160 = arith.constant 0 : index
    %298 = vector.load %arg11[%c2_158, %c0_159, %c0_160] : memref<4x64x48xf32, #tpu.memory_space<vmem>>, vector<1x64x48xf32>
    %299 = vector.shape_cast %298 : vector<1x64x48xf32> to vector<64x48xf32>
    %cst_161 = arith.constant dense<0.000000e+00> : vector<16x48xf32>
    %300 = tpu.matmul %297, %299, %cst_161 {dimension_numbers = #tpu.dot_dimension_numbers<[1], [0], [0], [1], [0, 0, 1, 1], [], []>} : vector<16x64xf32>, vector<64x48xf32>, vector<16x48xf32> -> vector<16x48xf32>
    %301 = vector.extract_strided_slice %228 {offsets = [1, 0], sizes = [1, 48], strides = [1, 1]} : vector<6x48xf32> to vector<1x48xf32>
    %302 = vector.broadcast %301 : vector<1x48xf32> to vector<16x48xf32>
    %303 = arith.addf %300, %302 : vector<16x48xf32>
    %304 = arith.addf %288, %303 : vector<16x48xf32>
    %305 = vector.extract_strided_slice %228 {offsets = [4, 0], sizes = [1, 48], strides = [1, 1]} : vector<6x48xf32> to vector<1x48xf32>
    %306 = vector.extract_strided_slice %228 {offsets = [5, 0], sizes = [1, 48], strides = [1, 1]} : vector<6x48xf32> to vector<1x48xf32>
    %cst_162 = arith.constant dense<0.000000e+00> : vector<16xf32>
    %307 = vector.multi_reduction <add>, %304, %cst_162 [1] : vector<16x48xf32> to vector<16xf32>
    %308 = vector.shape_cast %307 : vector<16xf32> to vector<16x1xf32>
    %cst_163 = arith.constant 4.800000e+01 : f32
    %309 = vector.broadcast %cst_163 : f32 to vector<16x1xf32>
    %310 = arith.divf %308, %309 : vector<16x1xf32>
    %311 = vector.broadcast %310 : vector<16x1xf32> to vector<16x48xf32>
    %312 = arith.subf %304, %311 : vector<16x48xf32>
    %313 = arith.mulf %312, %312 : vector<16x48xf32>
    %cst_164 = arith.constant dense<0.000000e+00> : vector<16xf32>
    %314 = vector.multi_reduction <add>, %313, %cst_164 [1] : vector<16x48xf32> to vector<16xf32>
    %315 = vector.shape_cast %314 : vector<16xf32> to vector<16x1xf32>
    %cst_165 = arith.constant 4.800000e+01 : f32
    %316 = vector.broadcast %cst_165 : f32 to vector<16x1xf32>
    %317 = arith.divf %315, %316 : vector<16x1xf32>
    %318 = vector.broadcast %310 : vector<16x1xf32> to vector<16x48xf32>
    %319 = arith.subf %304, %318 : vector<16x48xf32>
    %cst_166 = arith.constant 9.99999974E-6 : f32
    %320 = vector.broadcast %cst_166 : f32 to vector<16x1xf32>
    %321 = arith.addf %317, %320 : vector<16x1xf32>
    %322 = math.rsqrt %321 : vector<16x1xf32>
    %323 = vector.broadcast %322 : vector<16x1xf32> to vector<16x48xf32>
    %324 = arith.mulf %319, %323 : vector<16x48xf32>
    %325 = vector.broadcast %305 : vector<1x48xf32> to vector<16x48xf32>
    %326 = arith.mulf %324, %325 : vector<16x48xf32>
    %327 = vector.broadcast %306 : vector<1x48xf32> to vector<16x48xf32>
    %328 = arith.addf %326, %327 : vector<16x48xf32>
    %c3 = arith.constant 3 : index
    %c0_167 = arith.constant 0 : index
    %c0_168 = arith.constant 0 : index
    %329 = vector.load %arg12[%c3, %c0_167, %c0_168] : memref<4x6x48xf32, #tpu.memory_space<vmem>>, vector<1x6x48xf32>
    %330 = vector.shape_cast %329 : vector<1x6x48xf32> to vector<6x48xf32>
    %c3_169 = arith.constant 3 : index
    %c0_170 = arith.constant 0 : index
    %c0_171 = arith.constant 0 : index
    %331 = vector.load %arg6[%c3_169, %c0_170, %c0_171] : memref<4x48x144xf32, #tpu.memory_space<vmem>>, vector<1x48x144xf32>
    %332 = vector.shape_cast %331 : vector<1x48x144xf32> to vector<48x144xf32>
    %cst_172 = arith.constant dense<0.000000e+00> : vector<16x144xf32>
    %333 = tpu.matmul %328, %332, %cst_172 {dimension_numbers = #tpu.dot_dimension_numbers<[1], [0], [0], [1], [0, 0, 1, 1], [], []>} : vector<16x48xf32>, vector<48x144xf32>, vector<16x144xf32> -> vector<16x144xf32>
    %c3_173 = arith.constant 3 : index
    %c0_174 = arith.constant 0 : index
    %c0_175 = arith.constant 0 : index
    %334 = vector.load %arg7[%c3_173, %c0_174, %c0_175] : memref<4x1x144xf32, #tpu.memory_space<vmem>>, vector<1x1x144xf32>
    %335 = vector.shape_cast %334 : vector<1x1x144xf32> to vector<1x144xf32>
    %336 = vector.broadcast %335 : vector<1x144xf32> to vector<16x144xf32>
    %337 = arith.addf %333, %336 : vector<16x144xf32>
    %338 = vector.extract_strided_slice %337 {offsets = [0, 0], sizes = [16, 48], strides = [1, 1]} : vector<16x144xf32> to vector<16x48xf32>
    %339 = vector.extract_strided_slice %337 {offsets = [0, 48], sizes = [16, 48], strides = [1, 1]} : vector<16x144xf32> to vector<16x48xf32>
    %340 = vector.extract_strided_slice %337 {offsets = [0, 96], sizes = [16, 48], strides = [1, 1]} : vector<16x144xf32> to vector<16x48xf32>
    %c0_176 = arith.constant 0 : index
    %c0_177 = arith.constant 0 : index
    %341 = vector.load %arg18[%c0_176, %c0_177] : memref<128x16xf32, #tpu.memory_space<vmem>>, vector<128x16xf32>
    %cst_178 = arith.constant dense<0.000000e+00> : vector<128x48xf32>
    %342 = tpu.matmul %341, %339, %cst_178 {dimension_numbers = #tpu.dot_dimension_numbers<[1], [0], [0], [1], [0, 0, 1, 1], [], []>} : vector<128x16xf32>, vector<16x48xf32>, vector<128x48xf32> -> vector<128x48xf32>
    %c0_179 = arith.constant 0 : index
    %c0_180 = arith.constant 0 : index
    %343 = vector.load %arg19[%c0_179, %c0_180] : memref<128x48xf32, #tpu.memory_space<vmem>>, vector<128x48xf32>
    %344 = arith.mulf %342, %343 : vector<128x48xf32>
    %cst_181 = arith.constant dense<0.000000e+00> : vector<16x128xf32>
    %345 = tpu.matmul %338, %344, %cst_181 {dimension_numbers = #tpu.dot_dimension_numbers<[1], [1], [0], [0], [0, 0, 1, 0], [], []>} : vector<16x48xf32>, vector<128x48xf32>, vector<16x128xf32> -> vector<16x128xf32>
    %cst_182 = arith.constant dense<0xFF800000> : vector<16xf32>
    %346 = vector.multi_reduction <maximumf>, %345, %cst_182 [1] : vector<16x128xf32> to vector<16xf32>
    %347 = vector.shape_cast %346 : vector<16xf32> to vector<16x1xf32>
    %348 = vector.broadcast %347 : vector<16x1xf32> to vector<16x128xf32>
    %349 = arith.subf %345, %348 : vector<16x128xf32>
    %350 = math.exp %349 : vector<16x128xf32>
    %c0_183 = arith.constant 0 : index
    %c0_184 = arith.constant 0 : index
    %351 = vector.load %arg20[%c0_183, %c0_184] : memref<128x128xf32, #tpu.memory_space<vmem>>, vector<128x128xf32>
    %cst_185 = arith.constant dense<0.000000e+00> : vector<16x128xf32>
    %352 = tpu.matmul %350, %351, %cst_185 {dimension_numbers = #tpu.dot_dimension_numbers<[1], [0], [0], [1], [0, 0, 1, 1], [], []>} : vector<16x128xf32>, vector<128x128xf32>, vector<16x128xf32> -> vector<16x128xf32>
    %353 = tpu.reciprocal %352 {approx = true} : vector<16x128xf32> -> vector<16x128xf32>
    %354 = arith.mulf %350, %353 : vector<16x128xf32>
    %c0_186 = arith.constant 0 : index
    %c0_187 = arith.constant 0 : index
    %355 = vector.load %arg18[%c0_186, %c0_187] : memref<128x16xf32, #tpu.memory_space<vmem>>, vector<128x16xf32>
    %cst_188 = arith.constant dense<0.000000e+00> : vector<128x48xf32>
    %356 = tpu.matmul %355, %340, %cst_188 {dimension_numbers = #tpu.dot_dimension_numbers<[1], [0], [0], [1], [0, 0, 1, 1], [], []>} : vector<128x16xf32>, vector<16x48xf32>, vector<128x48xf32> -> vector<128x48xf32>
    %c0_189 = arith.constant 0 : index
    %c0_190 = arith.constant 0 : index
    %357 = vector.load %arg19[%c0_189, %c0_190] : memref<128x48xf32, #tpu.memory_space<vmem>>, vector<128x48xf32>
    %358 = arith.mulf %356, %357 : vector<128x48xf32>
    %cst_191 = arith.constant dense<0.000000e+00> : vector<16x48xf32>
    %359 = tpu.matmul %354, %358, %cst_191 {dimension_numbers = #tpu.dot_dimension_numbers<[1], [0], [0], [1], [0, 0, 1, 1], [], []>} : vector<16x128xf32>, vector<128x48xf32>, vector<16x48xf32> -> vector<16x48xf32>
    %c3_192 = arith.constant 3 : index
    %c0_193 = arith.constant 0 : index
    %c0_194 = arith.constant 0 : index
    %360 = vector.load %arg8[%c3_192, %c0_193, %c0_194] : memref<4x48x48xf32, #tpu.memory_space<vmem>>, vector<1x48x48xf32>
    %361 = vector.shape_cast %360 : vector<1x48x48xf32> to vector<48x48xf32>
    %cst_195 = arith.constant dense<0.000000e+00> : vector<16x48xf32>
    %362 = tpu.matmul %359, %361, %cst_195 {dimension_numbers = #tpu.dot_dimension_numbers<[1], [0], [0], [1], [0, 0, 1, 1], [], []>} : vector<16x48xf32>, vector<48x48xf32>, vector<16x48xf32> -> vector<16x48xf32>
    %363 = vector.extract_strided_slice %330 {offsets = [0, 0], sizes = [1, 48], strides = [1, 1]} : vector<6x48xf32> to vector<1x48xf32>
    %364 = vector.broadcast %363 : vector<1x48xf32> to vector<16x48xf32>
    %365 = arith.addf %362, %364 : vector<16x48xf32>
    %366 = arith.addf %328, %365 : vector<16x48xf32>
    %367 = vector.extract_strided_slice %330 {offsets = [2, 0], sizes = [1, 48], strides = [1, 1]} : vector<6x48xf32> to vector<1x48xf32>
    %368 = vector.extract_strided_slice %330 {offsets = [3, 0], sizes = [1, 48], strides = [1, 1]} : vector<6x48xf32> to vector<1x48xf32>
    %cst_196 = arith.constant dense<0.000000e+00> : vector<16xf32>
    %369 = vector.multi_reduction <add>, %366, %cst_196 [1] : vector<16x48xf32> to vector<16xf32>
    %370 = vector.shape_cast %369 : vector<16xf32> to vector<16x1xf32>
    %cst_197 = arith.constant 4.800000e+01 : f32
    %371 = vector.broadcast %cst_197 : f32 to vector<16x1xf32>
    %372 = arith.divf %370, %371 : vector<16x1xf32>
    %373 = vector.broadcast %372 : vector<16x1xf32> to vector<16x48xf32>
    %374 = arith.subf %366, %373 : vector<16x48xf32>
    %375 = arith.mulf %374, %374 : vector<16x48xf32>
    %cst_198 = arith.constant dense<0.000000e+00> : vector<16xf32>
    %376 = vector.multi_reduction <add>, %375, %cst_198 [1] : vector<16x48xf32> to vector<16xf32>
    %377 = vector.shape_cast %376 : vector<16xf32> to vector<16x1xf32>
    %cst_199 = arith.constant 4.800000e+01 : f32
    %378 = vector.broadcast %cst_199 : f32 to vector<16x1xf32>
    %379 = arith.divf %377, %378 : vector<16x1xf32>
    %380 = vector.broadcast %372 : vector<16x1xf32> to vector<16x48xf32>
    %381 = arith.subf %366, %380 : vector<16x48xf32>
    %cst_200 = arith.constant 9.99999974E-6 : f32
    %382 = vector.broadcast %cst_200 : f32 to vector<16x1xf32>
    %383 = arith.addf %379, %382 : vector<16x1xf32>
    %384 = math.rsqrt %383 : vector<16x1xf32>
    %385 = vector.broadcast %384 : vector<16x1xf32> to vector<16x48xf32>
    %386 = arith.mulf %381, %385 : vector<16x48xf32>
    %387 = vector.broadcast %367 : vector<1x48xf32> to vector<16x48xf32>
    %388 = arith.mulf %386, %387 : vector<16x48xf32>
    %389 = vector.broadcast %368 : vector<1x48xf32> to vector<16x48xf32>
    %390 = arith.addf %388, %389 : vector<16x48xf32>
    %c3_201 = arith.constant 3 : index
    %c0_202 = arith.constant 0 : index
    %c0_203 = arith.constant 0 : index
    %391 = vector.load %arg9[%c3_201, %c0_202, %c0_203] : memref<4x48x64xf32, #tpu.memory_space<vmem>>, vector<1x48x64xf32>
    %392 = vector.shape_cast %391 : vector<1x48x64xf32> to vector<48x64xf32>
    %cst_204 = arith.constant dense<0.000000e+00> : vector<16x64xf32>
    %393 = tpu.matmul %390, %392, %cst_204 {dimension_numbers = #tpu.dot_dimension_numbers<[1], [0], [0], [1], [0, 0, 1, 1], [], []>} : vector<16x48xf32>, vector<48x64xf32>, vector<16x64xf32> -> vector<16x64xf32>
    %c3_205 = arith.constant 3 : index
    %c0_206 = arith.constant 0 : index
    %c0_207 = arith.constant 0 : index
    %394 = vector.load %arg10[%c3_205, %c0_206, %c0_207] : memref<4x1x64xf32, #tpu.memory_space<vmem>>, vector<1x1x64xf32>
    %395 = vector.shape_cast %394 : vector<1x1x64xf32> to vector<1x64xf32>
    %396 = vector.broadcast %395 : vector<1x64xf32> to vector<16x64xf32>
    %397 = arith.addf %393, %396 : vector<16x64xf32>
    %cst_208 = arith.constant 0.000000e+00 : f32
    %398 = vector.broadcast %cst_208 : f32 to vector<16x64xf32>
    %399 = arith.maximumf %397, %398 : vector<16x64xf32>
    %c3_209 = arith.constant 3 : index
    %c0_210 = arith.constant 0 : index
    %c0_211 = arith.constant 0 : index
    %400 = vector.load %arg11[%c3_209, %c0_210, %c0_211] : memref<4x64x48xf32, #tpu.memory_space<vmem>>, vector<1x64x48xf32>
    %401 = vector.shape_cast %400 : vector<1x64x48xf32> to vector<64x48xf32>
    %cst_212 = arith.constant dense<0.000000e+00> : vector<16x48xf32>
    %402 = tpu.matmul %399, %401, %cst_212 {dimension_numbers = #tpu.dot_dimension_numbers<[1], [0], [0], [1], [0, 0, 1, 1], [], []>} : vector<16x64xf32>, vector<64x48xf32>, vector<16x48xf32> -> vector<16x48xf32>
    %403 = vector.extract_strided_slice %330 {offsets = [1, 0], sizes = [1, 48], strides = [1, 1]} : vector<6x48xf32> to vector<1x48xf32>
    %404 = vector.broadcast %403 : vector<1x48xf32> to vector<16x48xf32>
    %405 = arith.addf %402, %404 : vector<16x48xf32>
    %406 = arith.addf %390, %405 : vector<16x48xf32>
    %407 = vector.extract_strided_slice %330 {offsets = [4, 0], sizes = [1, 48], strides = [1, 1]} : vector<6x48xf32> to vector<1x48xf32>
    %408 = vector.extract_strided_slice %330 {offsets = [5, 0], sizes = [1, 48], strides = [1, 1]} : vector<6x48xf32> to vector<1x48xf32>
    %cst_213 = arith.constant dense<0.000000e+00> : vector<16xf32>
    %409 = vector.multi_reduction <add>, %406, %cst_213 [1] : vector<16x48xf32> to vector<16xf32>
    %410 = vector.shape_cast %409 : vector<16xf32> to vector<16x1xf32>
    %cst_214 = arith.constant 4.800000e+01 : f32
    %411 = vector.broadcast %cst_214 : f32 to vector<16x1xf32>
    %412 = arith.divf %410, %411 : vector<16x1xf32>
    %413 = vector.broadcast %412 : vector<16x1xf32> to vector<16x48xf32>
    %414 = arith.subf %406, %413 : vector<16x48xf32>
    %415 = arith.mulf %414, %414 : vector<16x48xf32>
    %cst_215 = arith.constant dense<0.000000e+00> : vector<16xf32>
    %416 = vector.multi_reduction <add>, %415, %cst_215 [1] : vector<16x48xf32> to vector<16xf32>
    %417 = vector.shape_cast %416 : vector<16xf32> to vector<16x1xf32>
    %cst_216 = arith.constant 4.800000e+01 : f32
    %418 = vector.broadcast %cst_216 : f32 to vector<16x1xf32>
    %419 = arith.divf %417, %418 : vector<16x1xf32>
    %420 = vector.broadcast %412 : vector<16x1xf32> to vector<16x48xf32>
    %421 = arith.subf %406, %420 : vector<16x48xf32>
    %cst_217 = arith.constant 9.99999974E-6 : f32
    %422 = vector.broadcast %cst_217 : f32 to vector<16x1xf32>
    %423 = arith.addf %419, %422 : vector<16x1xf32>
    %424 = math.rsqrt %423 : vector<16x1xf32>
    %425 = vector.broadcast %424 : vector<16x1xf32> to vector<16x48xf32>
    %426 = arith.mulf %421, %425 : vector<16x48xf32>
    %427 = vector.broadcast %407 : vector<1x48xf32> to vector<16x48xf32>
    %428 = arith.mulf %426, %427 : vector<16x48xf32>
    %429 = vector.broadcast %408 : vector<1x48xf32> to vector<16x48xf32>
    %430 = arith.addf %428, %429 : vector<16x48xf32>
    %c0_218 = arith.constant 0 : index
    %c0_219 = arith.constant 0 : index
    %431 = vector.load %arg13[%c0_218, %c0_219] : memref<48x128xf32, #tpu.memory_space<vmem>>, vector<48x128xf32>
    %cst_220 = arith.constant dense<0.000000e+00> : vector<16x128xf32>
    %432 = tpu.matmul %430, %431, %cst_220 {dimension_numbers = #tpu.dot_dimension_numbers<[1], [0], [0], [1], [0, 0, 1, 1], [], []>} : vector<16x48xf32>, vector<48x128xf32>, vector<16x128xf32> -> vector<16x128xf32>
    %c0_221 = arith.constant 0 : index
    %c0_222 = arith.constant 0 : index
    %433 = vector.load %arg14[%c0_221, %c0_222] : memref<1x128xf32, #tpu.memory_space<vmem>>, vector<1x128xf32>
    %434 = vector.broadcast %433 : vector<1x128xf32> to vector<16x128xf32>
    %435 = arith.addf %432, %434 : vector<16x128xf32>
    %c0_223 = arith.constant 0 : index
    %c0_224 = arith.constant 0 : index
    %c0_225 = arith.constant 0 : index
    %436 = vector.load %arg21[%c0_223, %c0_224, %c0_225] : memref<1x16x128xf32, #tpu.memory_space<vmem>>, vector<1x16x128xf32>
    %437 = vector.shape_cast %436 : vector<1x16x128xf32> to vector<16x128xf32>
    %438 = vector.shape_cast %435 : vector<16x128xf32> to vector<1x16x128xf32>
    tpu.vector_store %arg21[%c0_223, %c0_224, %c0_225], %438 {strides = array<i32>} : memref<1x16x128xf32, #tpu.memory_space<vmem>>, vector<1x16x128xf32>,
    return
  }
  func.func @transform_0(%arg0: i32) -> (i32, i32, i32) {
    %c0_i32 = arith.constant 0 : i32
    %c0_i32_0 = arith.constant 0 : i32
    %c0_i32_1 = arith.constant 0 : i32
    return %arg0, %c0_i32, %c0_i32_0 : i32, i32, i32
  }
  func.func @transform_1(%arg0: i32) -> (i32, i32, i32) {
    %c0_i32 = arith.constant 0 : i32
    %c0_i32_0 = arith.constant 0 : i32
    %c0_i32_1 = arith.constant 0 : i32
    return %arg0, %c0_i32, %c0_i32_0 : i32, i32, i32
  }
  func.func @transform_2(%arg0: i32) -> (i32, i32) {
    %c0_i32 = arith.constant 0 : i32
    %c0_i32_0 = arith.constant 0 : i32
    %c0_i32_1 = arith.constant 0 : i32
    return %c0_i32, %c0_i32_0 : i32, i32
  }
  func.func @transform_3(%arg0: i32) -> (i32, i32) {
    %c0_i32 = arith.constant 0 : i32
    %c0_i32_0 = arith.constant 0 : i32
    %c0_i32_1 = arith.constant 0 : i32
    return %c0_i32, %c0_i32_0 : i32, i32
  }
  func.func @transform_4(%arg0: i32) -> (i32, i32) {
    %c0_i32 = arith.constant 0 : i32
    %c0_i32_0 = arith.constant 0 : i32
    %c0_i32_1 = arith.constant 0 : i32
    return %c0_i32, %c0_i32_0 : i32, i32
  }
  func.func @transform_5(%arg0: i32) -> (i32, i32, i32) {
    %c0_i32 = arith.constant 0 : i32
    %c0_i32_0 = arith.constant 0 : i32
    %c0_i32_1 = arith.constant 0 : i32
    %c0_i32_2 = arith.constant 0 : i32
    return %c0_i32, %c0_i32_0, %c0_i32_1 : i32, i32, i32
  }
  func.func @transform_6(%arg0: i32) -> (i32, i32, i32) {
    %c0_i32 = arith.constant 0 : i32
    %c0_i32_0 = arith.constant 0 : i32
    %c0_i32_1 = arith.constant 0 : i32
    %c0_i32_2 = arith.constant 0 : i32
    return %c0_i32, %c0_i32_0, %c0_i32_1 : i32, i32, i32
  }
  func.func @transform_7(%arg0: i32) -> (i32, i32, i32) {
    %c0_i32 = arith.constant 0 : i32
    %c0_i32_0 = arith.constant 0 : i32
    %c0_i32_1 = arith.constant 0 : i32
    %c0_i32_2 = arith.constant 0 : i32
    return %c0_i32, %c0_i32_0, %c0_i32_1 : i32, i32, i32
  }
  func.func @transform_8(%arg0: i32) -> (i32, i32, i32) {
    %c0_i32 = arith.constant 0 : i32
    %c0_i32_0 = arith.constant 0 : i32
    %c0_i32_1 = arith.constant 0 : i32
    %c0_i32_2 = arith.constant 0 : i32
    return %c0_i32, %c0_i32_0, %c0_i32_1 : i32, i32, i32
  }
  func.func @transform_9(%arg0: i32) -> (i32, i32, i32) {
    %c0_i32 = arith.constant 0 : i32
    %c0_i32_0 = arith.constant 0 : i32
    %c0_i32_1 = arith.constant 0 : i32
    %c0_i32_2 = arith.constant 0 : i32
    return %c0_i32, %c0_i32_0, %c0_i32_1 : i32, i32, i32
  }
  func.func @transform_10(%arg0: i32) -> (i32, i32, i32) {
    %c0_i32 = arith.constant 0 : i32
    %c0_i32_0 = arith.constant 0 : i32
    %c0_i32_1 = arith.constant 0 : i32
    %c0_i32_2 = arith.constant 0 : i32
    return %c0_i32, %c0_i32_0, %c0_i32_1 : i32, i32, i32
  }
  func.func @transform_11(%arg0: i32) -> (i32, i32, i32) {
    %c0_i32 = arith.constant 0 : i32
    %c0_i32_0 = arith.constant 0 : i32
    %c0_i32_1 = arith.constant 0 : i32
    %c0_i32_2 = arith.constant 0 : i32
    return %c0_i32, %c0_i32_0, %c0_i32_1 : i32, i32, i32
  }
  func.func @transform_12(%arg0: i32) -> (i32, i32) {
    %c0_i32 = arith.constant 0 : i32
    %c0_i32_0 = arith.constant 0 : i32
    %c0_i32_1 = arith.constant 0 : i32
    return %c0_i32, %c0_i32_0 : i32, i32
  }
  func.func @transform_13(%arg0: i32) -> (i32, i32) {
    %c0_i32 = arith.constant 0 : i32
    %c0_i32_0 = arith.constant 0 : i32
    %c0_i32_1 = arith.constant 0 : i32
    return %c0_i32, %c0_i32_0 : i32, i32
  }
  func.func @transform_14(%arg0: i32) -> (i32, i32) {
    %c0_i32 = arith.constant 0 : i32
    %c0_i32_0 = arith.constant 0 : i32
    %c0_i32_1 = arith.constant 0 : i32
    return %c0_i32, %c0_i32_0 : i32, i32
  }
  func.func @transform_15(%arg0: i32) -> (i32, i32) {
    %c0_i32 = arith.constant 0 : i32
    %c0_i32_0 = arith.constant 0 : i32
    %c0_i32_1 = arith.constant 0 : i32
    return %c0_i32, %c0_i32_0 : i32, i32
  }
  func.func @transform_16(%arg0: i32) -> (i32, i32) {
    %c0_i32 = arith.constant 0 : i32
    %c0_i32_0 = arith.constant 0 : i32
    %c0_i32_1 = arith.constant 0 : i32
    return %c0_i32, %c0_i32_0 : i32, i32
  }
  func.func @transform_17(%arg0: i32) -> (i32, i32) {
    %c0_i32 = arith.constant 0 : i32
    %c0_i32_0 = arith.constant 0 : i32
    %c0_i32_1 = arith.constant 0 : i32
    return %c0_i32, %c0_i32_0 : i32, i32
  }
  func.func @transform_18(%arg0: i32) -> (i32, i32) {
    %c0_i32 = arith.constant 0 : i32
    %c0_i32_0 = arith.constant 0 : i32
    %c0_i32_1 = arith.constant 0 : i32
    return %c0_i32, %c0_i32_0 : i32, i32
  }
  func.func @transform_19(%arg0: i32) -> (i32, i32) {
    %c0_i32 = arith.constant 0 : i32
    %c0_i32_0 = arith.constant 0 : i32
    %c0_i32_1 = arith.constant 0 : i32
    return %c0_i32, %c0_i32_0 : i32, i32
  }
  func.func @transform_20(%arg0: i32) -> (i32, i32, i32) {
    %c0_i32 = arith.constant 0 : i32
    %c0_i32_0 = arith.constant 0 : i32
    %c0_i32_1 = arith.constant 0 : i32
    return %arg0, %c0_i32, %c0_i32_0 : i32, i32, i32
  }
}

</mosaic_0001>

<llo_original>
// kernel: tpu_custom_call.1
$region0: #{tpu_custom_call.1}
  #allocation0 [shape = 'u32[]', space=smem, size = 0x4, offset = 0x4, fixed_abs, tag = 'smem constant byte address 0x4 - core index']
  #allocation1 [shape = 'u32[144,128]{1,0:T(1,128)}', space=vmem, size = 0x12000, scoped, tag = 'internal scratch']
  %s0 = inlined_call_operand.hbm [shape: f32[2,8,48], index: 0, kind: input, shape index: {}]
  %s1 = inlined_call_operand.hbm [shape: s32[2,1,8], index: 1, kind: input, shape index: {}]
  %s2 = inlined_call_operand.hbm [shape: f32[8,48], index: 2, kind: input, shape index: {}]
  %s3 = inlined_call_operand.hbm [shape: f32[16,48], index: 3, kind: input, shape index: {}]
  %s4 = inlined_call_operand.hbm [shape: f32[1,48], index: 4, kind: input, shape index: {}]
  %s5 = inlined_call_operand.vmem [shape: f32[4,48,144], index: 5, kind: input, shape index: {}]
  %s6 = inlined_call_operand.hbm [shape: f32[4,1,144], index: 6, kind: input, shape index: {}]
  %s7 = inlined_call_operand.vmem [shape: f32[4,48,48], index: 7, kind: input, shape index: {}]
  %s8 = inlined_call_operand.vmem [shape: f32[4,48,64], index: 8, kind: input, shape index: {}]
  %s9 = inlined_call_operand.vmem [shape: f32[4,1,64], index: 9, kind: input, shape index: {}]
  %s10 = inlined_call_operand.vmem [shape: f32[4,64,48], index: 10, kind: input, shape index: {}]
  %s11 = inlined_call_operand.vmem [shape: f32[4,6,48], index: 11, kind: input, shape index: {}]
  %s12 = inlined_call_operand.hbm [shape: f32[48,128], index: 12, kind: input, shape index: {}]
  %s13 = inlined_call_operand.hbm [shape: f32[1,128], index: 13, kind: input, shape index: {}]
  %s14 = inlined_call_operand.vmem [shape: f32[64,8], index: 14, kind: input, shape index: {}]
  %s15 = inlined_call_operand.vmem [shape: f32[64,48], index: 15, kind: input, shape index: {}]
  %s16 = inlined_call_operand.vmem [shape: f32[64,64], index: 16, kind: input, shape index: {}]
  %s17 = inlined_call_operand.vmem [shape: f32[128,16], index: 17, kind: input, shape index: {}]
  %s18 = inlined_call_operand.vmem [shape: f32[128,48], index: 18, kind: input, shape index: {}]
  %s19 = inlined_call_operand.hbm [shape: f32[128,128], index: 19, kind: input, shape index: {}]
  %s20 = inlined_call_operand.hbm [shape: f32[2,16,128], index: 20, kind: output, shape index: {}]
  %s21 = sld [smem:[#allocation0]]
  $region149: #{tpu_custom_call.1} parent=0
    _
  %s23 = ssub.s32 1, %s21
  %s24 = scalar_select 0, %s23, %s21
  $region1: #{tpu_custom_call.1} parent=0
    #allocation2 [shape = 'u8[8192]{0}', space=vmem, size = 0x2000, scoped, tag = 'input window, operand 0']
    #allocation3 [shape = 's32[2]{0}', space=sflag, size = 0x8, scoped, tag = 'scoped memory for tpu_custom_call.1']
    #allocation4 [shape = 's32[2]{0}', space=sflag, size = 0x8, scoped, tag = 'scoped memory for tpu_custom_call.1']
    #allocation5 [shape = 'u8[1024]{0}', space=vmem, size = 0x400, scoped, tag = 'input window, operand 1']
    #allocation6 [shape = 's32[2]{0}', space=sflag, size = 0x8, scoped, tag = 'scoped memory for tpu_custom_call.1']
    #allocation7 [shape = 'u8[4096]{0}', space=vmem, size = 0x1000, scoped, tag = 'input window, operand 2, single buffered']
    #allocation8 [shape = 'u8[8192]{0}', space=vmem, size = 0x2000, scoped, tag = 'input window, operand 3, single buffered']
    #allocation9 [shape = 's32[1]{0}', space=sflag, size = 0x4, scoped, tag = 'scoped memory for tpu_custom_call.1']
    #allocation10 [shape = 'u8[512]{0}', space=vmem, size = 0x400, scoped, tag = 'input window, operand 4, single buffered']
    #allocation11 [shape = 'u8[4096]{0}', space=vmem, size = 0x1000, scoped, tag = 'input window, operand 6, single buffered']
    #allocation12 [shape = 's32[1]{0}', space=sflag, size = 0x4, scoped, tag = 'scoped memory for tpu_custom_call.1']
    #allocation13 [shape = 'u8[24576]{0}', space=vmem, size = 0x6000, scoped, tag = 'input window, operand 12, single buffered']
    #allocation14 [shape = 'u8[512]{0}', space=vmem, size = 0x400, scoped, tag = 'input window, operand 13, single buffered']
    #allocation15 [shape = 's32[1]{0}', space=sflag, size = 0x4, scoped, tag = 'scoped memory for tpu_custom_call.1']
    #allocation16 [shape = 'u8[65536]{0}', space=vmem, size = 0x10000, scoped, tag = 'input window, operand 19, single buffered']
    #allocation17 [shape = 'u8[16384]{0}', space=vmem, size = 0x4000, scoped, tag = 'output window, operand 0']
    %25 = vsyncpa [#allocation3], 0
    %s26 = scalar_lea.sflag [#allocation3], 1
    %27 = vsyncpa %s26, 0
    %28 = vsyncpa [#allocation6], 0
    %s29 = scalar_lea.sflag [#allocation6], 1
    %30 = vsyncpa %s29, 0
    %31 = vsyncpa [#allocation9], 0
    %32 = vsyncpa [#allocation12], 0
    %33 = vsyncpa [#allocation15], 0
    %34 = vsyncpa [#allocation4], 0
    %s35 = scalar_lea.sflag [#allocation4], 1
    %36 = vsyncpa %s35, 0
    loop: start=0, step=1, limit=4
    $region2: #{tpu_custom_call.1} parent=1 // loop_pre_header
      _
    $region3: #{tpu_custom_call.1} parent=1 // loop_header
      %s38 = sphi 0, %s42
      %p39 = scmp.ge.s32.totalorder %s38, 4
      %s48 = sphi 0, %s50
      %s51 = sphi 0, %s48
      %s52 = sphi 0, %s51
      %s68 = sphi 0, %s52
      %s74 = sphi 0, %s76
      %s77 = sphi 0, %s74
      %s78 = sphi 0, %s77
      %s94 = sphi 0, %s78
      %s98 = sphi 0, %s98
      %s100 = sphi 0, %s98
      %s101 = sphi 0, %s100
      %s115 = sphi 0, %s101
      %s119 = sphi 0, %s119
      %s121 = sphi 0, %s119
      %s122 = sphi 0, %s121
      %s136 = sphi 0, %s122
      %s140 = sphi 0, %s140
      %s142 = sphi 0, %s140
      %s143 = sphi 0, %s142
      %s157 = sphi 0, %s143
      %s161 = sphi 0, %s161
      %s163 = sphi 0, %s161
      %s164 = sphi 0, %s163
      %s178 = sphi 0, %s164
      %s182 = sphi 0, %s182
      %s184 = sphi 0, %s182
      %s185 = sphi 0, %s184
      %s199 = sphi 0, %s185
      %s203 = sphi 0, %s203
      %s205 = sphi 0, %s203
      %s206 = sphi 0, %s205
      %s220 = sphi 0, %s206
      %s224 = sphi 0, %s224
      %s226 = sphi 0, %s224
      %s227 = sphi 0, %s226
      %s241 = sphi 0, %s227
      %s245 = sphi 0, %s245
      %s247 = sphi 0, %s245
      %s248 = sphi 0, %s247
      %s262 = sphi 0, %s248
      %s266 = sphi 0, %s266
      %s268 = sphi 0, %s266
      %s269 = sphi 0, %s268
      %s283 = sphi 0, %s269
      %s287 = sphi 0, %s287
      %s289 = sphi 0, %s287
      %s290 = sphi 0, %s289
      %s304 = sphi 0, %s290
      %s308 = sphi 0, %s308
      %s310 = sphi 0, %s308
      %s311 = sphi 0, %s310
      %s325 = sphi 0, %s311
      %s329 = sphi 0, %s329
      %s331 = sphi 0, %s329
      %s332 = sphi 0, %s331
      %s346 = sphi 0, %s332
      %s350 = sphi 0, %s350
      %s352 = sphi 0, %s350
      %s353 = sphi 0, %s352
      %s367 = sphi 0, %s353
      %s371 = sphi 0, %s371
      %s373 = sphi 0, %s371
      %s374 = sphi 0, %s373
      %s388 = sphi 0, %s374
      %s392 = sphi 0, %s392
      %s394 = sphi 0, %s392
      %s395 = sphi 0, %s394
      %s409 = sphi 0, %s395
      %s413 = sphi 0, %s413
      %s415 = sphi 0, %s413
      %s416 = sphi 0, %s415
      %s430 = sphi 0, %s416
      %s434 = sphi 0, %s434
      %s436 = sphi 0, %s434
      %s437 = sphi 0, %s436
      %s451 = sphi 0, %s437
      %s455 = sphi 0, %s455
      %s457 = sphi 0, %s455
      %s458 = sphi 0, %s457
      %s472 = sphi 0, %s458
      %s478 = sphi 0, %s480
      %s481 = sphi 0, %s478
      %s482 = sphi 0, %s481
      %s498 = sphi 0, %s482
    $region4: #{tpu_custom_call.1} parent=1 // loop_header_branch
      %41 = sbr.rel (%p39) target = $region8
    $region5: #{tpu_custom_call.1} parent=1 // loop_body
      %s43 = ssub.s32 %s38, 1
      %s44 = ssub.s32 %s38, 2
      %s45 = sadd.s32 %s38, 1
      %s46 = ssub.s32 %s38, %s45
      %p47 = scmp.eq.s32.totalorder %s46, 0
      %s49 = sadd.s32 %s48, 1
      %s50 = scalar_select %p47, %s48, %s49
      %p53 = pneg %p47
      %p54 = scmp.eq.s32.totalorder %s38, 1
      %p55 = por %p53, %p54
      %p56 = scmp.ne.s32.totalorder %s48, %s51
      %p57 = scmp.eq.s32.totalorder %s38, 0
      %p58 = por %p56, %p57
      %p59 = scmp.ne.s32.totalorder %s48, %s51
      %p60 = scmp.eq.s32.totalorder %s43, 1
      %p61 = por %p59, %p60
      %p62 = scmp.ne.s32.totalorder %s51, %s52
      %p63 = scmp.eq.s32.totalorder %s43, 0
      %p64 = por %p62, %p63
      %p65 = scmp.ne.s32.totalorder %s51, %s52
      %p66 = scmp.eq.s32.totalorder %s44, 1
      %p67 = por %p65, %p66
      %p69 = scmp.ne.s32.totalorder %s52, %s68
      %p70 = scmp.eq.s32.totalorder %s44, 0
      %p71 = por %p69, %p70
      %s72 = ssub.s32 %s38, %s45
      %p73 = scmp.eq.s32.totalorder %s72, 0
      %s75 = sadd.s32 %s74, 1
      %s76 = scalar_select %p73, %s74, %s75
      %p79 = pneg %p73
      %p80 = scmp.eq.s32.totalorder %s38, 1
      %p81 = por %p79, %p80
      %p82 = scmp.ne.s32.totalorder %s74, %s77
      %p83 = scmp.eq.s32.totalorder %s38, 0
      %p84 = por %p82, %p83
      %p85 = scmp.ne.s32.totalorder %s74, %s77
      %p86 = scmp.eq.s32.totalorder %s43, 1
      %p87 = por %p85, %p86
      %p88 = scmp.ne.s32.totalorder %s77, %s78
      %p89 = scmp.eq.s32.totalorder %s43, 0
      %p90 = por %p88, %p89
      %p91 = scmp.ne.s32.totalorder %s77, %s78
      %p92 = scmp.eq.s32.totalorder %s44, 1
      %p93 = por %p91, %p92
      %p95 = scmp.ne.s32.totalorder %s78, %s94
      %p96 = scmp.eq.s32.totalorder %s44, 0
      %p97 = por %p95, %p96
      %s99 = sadd.s32 %s98, 1
      %p102 = scmp.eq.s32.totalorder %s38, 1
      %p103 = scmp.ne.s32.totalorder %s98, %s100
      %p104 = scmp.eq.s32.totalorder %s38, 0
      %p105 = por %p103, %p104
      %p106 = scmp.ne.s32.totalorder %s98, %s100
      %p107 = scmp.eq.s32.totalorder %s43, 1
      %p108 = por %p106, %p107
      %p109 = scmp.ne.s32.totalorder %s100, %s101
      %p110 = scmp.eq.s32.totalorder %s43, 0
      %p111 = por %p109, %p110
      %p112 = scmp.ne.s32.totalorder %s100, %s101
      %p113 = scmp.eq.s32.totalorder %s44, 1
      %p114 = por %p112, %p113
      %p116 = scmp.ne.s32.totalorder %s101, %s115
      %p117 = scmp.eq.s32.totalorder %s44, 0
      %p118 = por %p116, %p117
      %s120 = sadd.s32 %s119, 1
      %p123 = scmp.eq.s32.totalorder %s38, 1
      %p124 = scmp.ne.s32.totalorder %s119, %s121
      %p125 = scmp.eq.s32.totalorder %s38, 0
      %p126 = por %p124, %p125
      %p127 = scmp.ne.s32.totalorder %s119, %s121
      %p128 = scmp.eq.s32.totalorder %s43, 1
      %p129 = por %p127, %p128
      %p130 = scmp.ne.s32.totalorder %s121, %s122
      %p131 = scmp.eq.s32.totalorder %s43, 0
      %p132 = por %p130, %p131
      %p133 = scmp.ne.s32.totalorder %s121, %s122
      %p134 = scmp.eq.s32.totalorder %s44, 1
      %p135 = por %p133, %p134
      %p137 = scmp.ne.s32.totalorder %s122, %s136
      %p138 = scmp.eq.s32.totalorder %s44, 0
      %p139 = por %p137, %p138
      %s141 = sadd.s32 %s140, 1
      %p144 = scmp.eq.s32.totalorder %s38, 1
      %p145 = scmp.ne.s32.totalorder %s140, %s142
      %p146 = scmp.eq.s32.totalorder %s38, 0
      %p147 = por %p145, %p146
      %p148 = scmp.ne.s32.totalorder %s140, %s142
      %p149 = scmp.eq.s32.totalorder %s43, 1
      %p150 = por %p148, %p149
      %p151 = scmp.ne.s32.totalorder %s142, %s143
      %p152 = scmp.eq.s32.totalorder %s43, 0
      %p153 = por %p151, %p152
      %p154 = scmp.ne.s32.totalorder %s142, %s143
      %p155 = scmp.eq.s32.totalorder %s44, 1
      %p156 = por %p154, %p155
      %p158 = scmp.ne.s32.totalorder %s143, %s157
      %p159 = scmp.eq.s32.totalorder %s44, 0
      %p160 = por %p158, %p159
      %s162 = sadd.s32 %s161, 1
      %p165 = scmp.eq.s32.totalorder %s38, 1
      %p166 = scmp.ne.s32.totalorder %s161, %s163
      %p167 = scmp.eq.s32.totalorder %s38, 0
      %p168 = por %p166, %p167
      %p169 = scmp.ne.s32.totalorder %s161, %s163
      %p170 = scmp.eq.s32.totalorder %s43, 1
      %p171 = por %p169, %p170
      %p172 = scmp.ne.s32.totalorder %s163, %s164
      %p173 = scmp.eq.s32.totalorder %s43, 0
      %p174 = por %p172, %p173
      %p175 = scmp.ne.s32.totalorder %s163, %s164
      %p176 = scmp.eq.s32.totalorder %s44, 1
      %p177 = por %p175, %p176
      %p179 = scmp.ne.s32.totalorder %s164, %s178
      %p180 = scmp.eq.s32.totalorder %s44, 0
      %p181 = por %p179, %p180
      %s183 = sadd.s32 %s182, 1
      %p186 = scmp.eq.s32.totalorder %s38, 1
      %p187 = scmp.ne.s32.totalorder %s182, %s184
      %p188 = scmp.eq.s32.totalorder %s38, 0
      %p189 = por %p187, %p188
      %p190 = scmp.ne.s32.totalorder %s182, %s184
      %p191 = scmp.eq.s32.totalorder %s43, 1
      %p192 = por %p190, %p191
      %p193 = scmp.ne.s32.totalorder %s184, %s185
      %p194 = scmp.eq.s32.totalorder %s43, 0
      %p195 = por %p193, %p194
      %p196 = scmp.ne.s32.totalorder %s184, %s185
      %p197 = scmp.eq.s32.totalorder %s44, 1
      %p198 = por %p196, %p197
      %p200 = scmp.ne.s32.totalorder %s185, %s199
      %p201 = scmp.eq.s32.totalorder %s44, 0
      %p202 = por %p200, %p201
      %s204 = sadd.s32 %s203, 1
      %p207 = scmp.eq.s32.totalorder %s38, 1
      %p208 = scmp.ne.s32.totalorder %s203, %s205
      %p209 = scmp.eq.s32.totalorder %s38, 0
      %p210 = por %p208, %p209
      %p211 = scmp.ne.s32.totalorder %s203, %s205
      %p212 = scmp.eq.s32.totalorder %s43, 1
      %p213 = por %p211, %p212
      %p214 = scmp.ne.s32.totalorder %s205, %s206
      %p215 = scmp.eq.s32.totalorder %s43, 0
      %p216 = por %p214, %p215
      %p217 = scmp.ne.s32.totalorder %s205, %s206
      %p218 = scmp.eq.s32.totalorder %s44, 1
      %p219 = por %p217, %p218
      %p221 = scmp.ne.s32.totalorder %s206, %s220
      %p222 = scmp.eq.s32.totalorder %s44, 0
      %p223 = por %p221, %p222
      %s225 = sadd.s32 %s224, 1
      %p228 = scmp.eq.s32.totalorder %s38, 1
      %p229 = scmp.ne.s32.totalorder %s224, %s226
      %p230 = scmp.eq.s32.totalorder %s38, 0
      %p231 = por %p229, %p230
      %p232 = scmp.ne.s32.totalorder %s224, %s226
      %p233 = scmp.eq.s32.totalorder %s43, 1
      %p234 = por %p232, %p233
      %p235 = scmp.ne.s32.totalorder %s226, %s227
      %p236 = scmp.eq.s32.totalorder %s43, 0
      %p237 = por %p235, %p236
      %p238 = scmp.ne.s32.totalorder %s226, %s227
      %p239 = scmp.eq.s32.totalorder %s44, 1
      %p240 = por %p238, %p239
      %p242 = scmp.ne.s32.totalorder %s227, %s241
      %p243 = scmp.eq.s32.totalorder %s44, 0
      %p244 = por %p242, %p243
      %s246 = sadd.s32 %s245, 1
      %p249 = scmp.eq.s32.totalorder %s38, 1
      %p250 = scmp.ne.s32.totalorder %s245, %s247
      %p251 = scmp.eq.s32.totalorder %s38, 0
      %p252 = por %p250, %p251
      %p253 = scmp.ne.s32.totalorder %s245, %s247
      %p254 = scmp.eq.s32.totalorder %s43, 1
      %p255 = por %p253, %p254
      %p256 = scmp.ne.s32.totalorder %s247, %s248
      %p257 = scmp.eq.s32.totalorder %s43, 0
      %p258 = por %p256, %p257
      %p259 = scmp.ne.s32.totalorder %s247, %s248
      %p260 = scmp.eq.s32.totalorder %s44, 1
      %p261 = por %p259, %p260
      %p263 = scmp.ne.s32.totalorder %s248, %s262
      %p264 = scmp.eq.s32.totalorder %s44, 0
      %p265 = por %p263, %p264
      %s267 = sadd.s32 %s266, 1
      %p270 = scmp.eq.s32.totalorder %s38, 1
      %p271 = scmp.ne.s32.totalorder %s266, %s268
      %p272 = scmp.eq.s32.totalorder %s38, 0
      %p273 = por %p271, %p272
      %p274 = scmp.ne.s32.totalorder %s266, %s268
      %p275 = scmp.eq.s32.totalorder %s43, 1
      %p276 = por %p274, %p275
      %p277 = scmp.ne.s32.totalorder %s268, %s269
      %p278 = scmp.eq.s32.totalorder %s43, 0
      %p279 = por %p277, %p278
      %p280 = scmp.ne.s32.totalorder %s268, %s269
      %p281 = scmp.eq.s32.totalorder %s44, 1
      %p282 = por %p280, %p281
      %p284 = scmp.ne.s32.totalorder %s269, %s283
      %p285 = scmp.eq.s32.totalorder %s44, 0
      %p286 = por %p284, %p285
      %s288 = sadd.s32 %s287, 1
      %p291 = scmp.eq.s32.totalorder %s38, 1
      %p292 = scmp.ne.s32.totalorder %s287, %s289
      %p293 = scmp.eq.s32.totalorder %s38, 0
      %p294 = por %p292, %p293
      %p295 = scmp.ne.s32.totalorder %s287, %s289
      %p296 = scmp.eq.s32.totalorder %s43, 1
      %p297 = por %p295, %p296
      %p298 = scmp.ne.s32.totalorder %s289, %s290
      %p299 = scmp.eq.s32.totalorder %s43, 0
      %p300 = por %p298, %p299
      %p301 = scmp.ne.s32.totalorder %s289, %s290
      %p302 = scmp.eq.s32.totalorder %s44, 1
      %p303 = por %p301, %p302
      %p305 = scmp.ne.s32.totalorder %s290, %s304
      %p306 = scmp.eq.s32.totalorder %s44, 0
      %p307 = por %p305, %p306
      %s309 = sadd.s32 %s308, 1
      %p312 = scmp.eq.s32.totalorder %s38, 1
      %p313 = scmp.ne.s32.totalorder %s308, %s310
      %p314 = scmp.eq.s32.totalorder %s38, 0
      %p315 = por %p313, %p314
      %p316 = scmp.ne.s32.totalorder %s308, %s310
      %p317 = scmp.eq.s32.totalorder %s43, 1
      %p318 = por %p316, %p317
      %p319 = scmp.ne.s32.totalorder %s310, %s311
      %p320 = scmp.eq.s32.totalorder %s43, 0
      %p321 = por %p319, %p320
      %p322 = scmp.ne.s32.totalorder %s310, %s311
      %p323 = scmp.eq.s32.totalorder %s44, 1
      %p324 = por %p322, %p323
      %p326 = scmp.ne.s32.totalorder %s311, %s325
      %p327 = scmp.eq.s32.totalorder %s44, 0
      %p328 = por %p326, %p327
      %s330 = sadd.s32 %s329, 1
      %p333 = scmp.eq.s32.totalorder %s38, 1
      %p334 = scmp.ne.s32.totalorder %s329, %s331
      %p335 = scmp.eq.s32.totalorder %s38, 0
      %p336 = por %p334, %p335
      %p337 = scmp.ne.s32.totalorder %s329, %s331
      %p338 = scmp.eq.s32.totalorder %s43, 1
      %p339 = por %p337, %p338
      %p340 = scmp.ne.s32.totalorder %s331, %s332
      %p341 = scmp.eq.s32.totalorder %s43, 0
      %p342 = por %p340, %p341
      %p343 = scmp.ne.s32.totalorder %s331, %s332
      %p344 = scmp.eq.s32.totalorder %s44, 1
      %p345 = por %p343, %p344
      %p347 = scmp.ne.s32.totalorder %s332, %s346
      %p348 = scmp.eq.s32.totalorder %s44, 0
      %p349 = por %p347, %p348
      %s351 = sadd.s32 %s350, 1
      %p354 = scmp.eq.s32.totalorder %s38, 1
      %p355 = scmp.ne.s32.totalorder %s350, %s352
      %p356 = scmp.eq.s32.totalorder %s38, 0
      %p357 = por %p355, %p356
      %p358 = scmp.ne.s32.totalorder %s350, %s352
      %p359 = scmp.eq.s32.totalorder %s43, 1
      %p360 = por %p358, %p359
      %p361 = scmp.ne.s32.totalorder %s352, %s353
      %p362 = scmp.eq.s32.totalorder %s43, 0
      %p363 = por %p361, %p362
      %p364 = scmp.ne.s32.totalorder %s352, %s353
      %p365 = scmp.eq.s32.totalorder %s44, 1
      %p366 = por %p364, %p365
      %p368 = scmp.ne.s32.totalorder %s353, %s367
      %p369 = scmp.eq.s32.totalorder %s44, 0
      %p370 = por %p368, %p369
      %s372 = sadd.s32 %s371, 1
      %p375 = scmp.eq.s32.totalorder %s38, 1
      %p376 = scmp.ne.s32.totalorder %s371, %s373
      %p377 = scmp.eq.s32.totalorder %s38, 0
      %p378 = por %p376, %p377
      %p379 = scmp.ne.s32.totalorder %s371, %s373
      %p380 = scmp.eq.s32.totalorder %s43, 1
      %p381 = por %p379, %p380
      %p382 = scmp.ne.s32.totalorder %s373, %s374
      %p383 = scmp.eq.s32.totalorder %s43, 0
      %p384 = por %p382, %p383
      %p385 = scmp.ne.s32.totalorder %s373, %s374
      %p386 = scmp.eq.s32.totalorder %s44, 1
      %p387 = por %p385, %p386
      %p389 = scmp.ne.s32.totalorder %s374, %s388
      %p390 = scmp.eq.s32.totalorder %s44, 0
      %p391 = por %p389, %p390
      %s393 = sadd.s32 %s392, 1
      %p396 = scmp.eq.s32.totalorder %s38, 1
      %p397 = scmp.ne.s32.totalorder %s392, %s394
      %p398 = scmp.eq.s32.totalorder %s38, 0
      %p399 = por %p397, %p398
      %p400 = scmp.ne.s32.totalorder %s392, %s394
      %p401 = scmp.eq.s32.totalorder %s43, 1
      %p402 = por %p400, %p401
      %p403 = scmp.ne.s32.totalorder %s394, %s395
      %p404 = scmp.eq.s32.totalorder %s43, 0
      %p405 = por %p403, %p404
      %p406 = scmp.ne.s32.totalorder %s394, %s395
      %p407 = scmp.eq.s32.totalorder %s44, 1
      %p408 = por %p406, %p407
      %p410 = scmp.ne.s32.totalorder %s395, %s409
      %p411 = scmp.eq.s32.totalorder %s44, 0
      %p412 = por %p410, %p411
      %s414 = sadd.s32 %s413, 1
      %p417 = scmp.eq.s32.totalorder %s38, 1
      %p418 = scmp.ne.s32.totalorder %s413, %s415
      %p419 = scmp.eq.s32.totalorder %s38, 0
      %p420 = por %p418, %p419
      %p421 = scmp.ne.s32.totalorder %s413, %s415
      %p422 = scmp.eq.s32.totalorder %s43, 1
      %p423 = por %p421, %p422
      %p424 = scmp.ne.s32.totalorder %s415, %s416
      %p425 = scmp.eq.s32.totalorder %s43, 0
      %p426 = por %p424, %p425
      %p427 = scmp.ne.s32.totalorder %s415, %s416
      %p428 = scmp.eq.s32.totalorder %s44, 1
      %p429 = por %p427, %p428
      %p431 = scmp.ne.s32.totalorder %s416, %s430
      %p432 = scmp.eq.s32.totalorder %s44, 0
      %p433 = por %p431, %p432
      %s435 = sadd.s32 %s434, 1
      %p438 = scmp.eq.s32.totalorder %s38, 1
      %p439 = scmp.ne.s32.totalorder %s434, %s436
      %p440 = scmp.eq.s32.totalorder %s38, 0
      %p441 = por %p439, %p440
      %p442 = scmp.ne.s32.totalorder %s434, %s436
      %p443 = scmp.eq.s32.totalorder %s43, 1
      %p444 = por %p442, %p443
      %p445 = scmp.ne.s32.totalorder %s436, %s437
      %p446 = scmp.eq.s32.totalorder %s43, 0
      %p447 = por %p445, %p446
      %p448 = scmp.ne.s32.totalorder %s436, %s437
      %p449 = scmp.eq.s32.totalorder %s44, 1
      %p450 = por %p448, %p449
      %p452 = scmp.ne.s32.totalorder %s437, %s451
      %p453 = scmp.eq.s32.totalorder %s44, 0
      %p454 = por %p452, %p453
      %s456 = sadd.s32 %s455, 1
      %p459 = scmp.eq.s32.totalorder %s38, 1
      %p460 = scmp.ne.s32.totalorder %s455, %s457
      %p461 = scmp.eq.s32.totalorder %s38, 0
      %p462 = por %p460, %p461
      %p463 = scmp.ne.s32.totalorder %s455, %s457
      %p464 = scmp.eq.s32.totalorder %s43, 1
      %p465 = por %p463, %p464
      %p466 = scmp.ne.s32.totalorder %s457, %s458
      %p467 = scmp.eq.s32.totalorder %s43, 0
      %p468 = por %p466, %p467
      %p469 = scmp.ne.s32.totalorder %s457, %s458
      %p470 = scmp.eq.s32.totalorder %s44, 1
      %p471 = por %p469, %p470
      %p473 = scmp.ne.s32.totalorder %s458, %s472
      %p474 = scmp.eq.s32.totalorder %s44, 0
      %p475 = por %p473, %p474
      %s476 = ssub.s32 %s38, %s45
      %p477 = scmp.eq.s32.totalorder %s476, 0
      %s479 = sadd.s32 %s478, 1
      %s480 = scalar_select %p477, %s478, %s479
      %p483 = pneg %p477
      %p484 = scmp.eq.s32.totalorder %s38, 1
      %p485 = por %p483, %p484
      %p486 = scmp.ne.s32.totalorder %s478, %s481
      %p487 = scmp.eq.s32.totalorder %s38, 0
      %p488 = por %p486, %p487
      %p489 = scmp.ne.s32.totalorder %s478, %s481
      %p490 = scmp.eq.s32.totalorder %s43, 1
      %p491 = por %p489, %p490
      %p492 = scmp.ne.s32.totalorder %s481, %s482
      %p493 = scmp.eq.s32.totalorder %s43, 0
      %p494 = por %p492, %p493
      %p495 = scmp.ne.s32.totalorder %s481, %s482
      %p496 = scmp.eq.s32.totalorder %s44, 1
      %p497 = por %p495, %p496
      %p499 = scmp.ne.s32.totalorder %s482, %s498
      %p500 = scmp.eq.s32.totalorder %s44, 0
      %p501 = por %p499, %p500
      %p502 = scmp.le.s32.totalorder 1, %s38
      %p503 = scmp.lt.s32.totalorder %s38, 3
      %p504 = pnand %p502, %p503
      %p505 = pneg %p504
      // Predicated region
      $region9: #{tpu_custom_call.1} parent=5 // pred_check
        _
      $region10: #{tpu_custom_call.1} parent=5 // pred_check_branch
        %507 = sbr.rel (%p504) target = $region12
      $region11: #{tpu_custom_call.1} parent=5 // pred_region
        %s508 = ssub.s32 %s38, 1
        // Predicated region
        $region13: #{tpu_custom_call.1} parent=11 // pred_check
          %p509 = pneg %p111
        $region14: #{tpu_custom_call.1} parent=11 // pred_check_branch
          %511 = sbr.rel (%p509) target = $region16
        $region15: #{tpu_custom_call.1} parent=11 // pred_region
          %s513 = ssub.s32 128, 128
          %514 = vsyncadd [#allocation6], %s513
          %s516 = sshll.u32 [#allocation7], 4
          %s517 = int_to_ptr.vmem [resolvable:$true] %s516
          %519 = dma.hbm_to_vmem [thread:$0]  %s2, 128, %s517, [#allocation6]
        $region16: #{tpu_custom_call.1} parent=11 // pred_fallthru
          _
        // Predicated region
        $region17: #{tpu_custom_call.1} parent=11 // pred_check
          %p520 = pneg %p132
        $region18: #{tpu_custom_call.1} parent=11 // pred_check_branch
          %522 = sbr.rel (%p520) target = $region20
        $region19: #{tpu_custom_call.1} parent=11 // pred_region
          %s524 = ssub.s32 256, 256
          %525 = vsyncadd [#allocation9], %s524
          %s526 = sshll.u32 [#allocation8], 4
          %s527 = int_to_ptr.vmem [resolvable:$true] %s526
          %532 = dma.hbm_to_vmem [thread:$0]  %s3, 256, %s527, [#allocation9], 128, 128, 8
        $region20: #{tpu_custom_call.1} parent=11 // pred_fallthru
          _
        // Predicated region
        $region21: #{tpu_custom_call.1} parent=11 // pred_check
          %p533 = pneg %p153
        $region22: #{tpu_custom_call.1} parent=11 // pred_check_branch
          %535 = sbr.rel (%p533) target = $region24
        $region23: #{tpu_custom_call.1} parent=11 // pred_region
          %s537 = ssub.s32 16, 16
          %538 = vsyncadd [#allocation9], %s537
          %s540 = sshll.u32 [#allocation10], 4
          %s541 = int_to_ptr.vmem [resolvable:$true] %s540
          %543 = dma.hbm_to_vmem [thread:$0]  %s4, 16, %s541, [#allocation9]
        $region24: #{tpu_custom_call.1} parent=11 // pred_fallthru
          _
        // Predicated region
        $region25: #{tpu_custom_call.1} parent=11 // pred_check
          %p544 = pneg %p174
        $region26: #{tpu_custom_call.1} parent=11 // pred_check_branch
          %546 = sbr.rel (%p544) target = $region28
        $region27: #{tpu_custom_call.1} parent=11 // pred_region
          _
        $region28: #{tpu_custom_call.1} parent=11 // pred_fallthru
          _
        // Predicated region
        $region29: #{tpu_custom_call.1} parent=11 // pred_check
          %p547 = pneg %p195
        $region30: #{tpu_custom_call.1} parent=11 // pred_check_branch
          %549 = sbr.rel (%p547) target = $region32
        $region31: #{tpu_custom_call.1} parent=11 // pred_region
          %s551 = ssub.s32 128, 128
          %552 = vsyncadd [#allocation12], %s551
          %s553 = sshll.u32 [#allocation11], 4
          %s554 = int_to_ptr.vmem [resolvable:$true] %s553
          %559 = dma.hbm_to_vmem [thread:$0]  %s6, 128, %s554, [#allocation12], 32, 32, 2
        $region32: #{tpu_custom_call.1} parent=11 // pred_fallthru
          _
        // Predicated region
        $region33: #{tpu_custom_call.1} parent=11 // pred_check
          %p560 = pneg %p216
        $region34: #{tpu_custom_call.1} parent=11 // pred_check_branch
          %562 = sbr.rel (%p560) target = $region36
        $region35: #{tpu_custom_call.1} parent=11 // pred_region
          _
        $region36: #{tpu_custom_call.1} parent=11 // pred_fallthru
          _
        // Predicated region
        $region37: #{tpu_custom_call.1} parent=11 // pred_check
          %p563 = pneg %p237
        $region38: #{tpu_custom_call.1} parent=11 // pred_check_branch
          %565 = sbr.rel (%p563) target = $region40
        $region39: #{tpu_custom_call.1} parent=11 // pred_region
          _
        $region40: #{tpu_custom_call.1} parent=11 // pred_fallthru
          _
        // Predicated region
        $region41: #{tpu_custom_call.1} parent=11 // pred_check
          %p566 = pneg %p258
        $region42: #{tpu_custom_call.1} parent=11 // pred_check_branch
          %568 = sbr.rel (%p566) target = $region44
        $region43: #{tpu_custom_call.1} parent=11 // pred_region
          _
        $region44: #{tpu_custom_call.1} parent=11 // pred_fallthru
          _
        // Predicated region
        $region45: #{tpu_custom_call.1} parent=11 // pred_check
          %p569 = pneg %p279
        $region46: #{tpu_custom_call.1} parent=11 // pred_check_branch
          %571 = sbr.rel (%p569) target = $region48
        $region47: #{tpu_custom_call.1} parent=11 // pred_region
          _
        $region48: #{tpu_custom_call.1} parent=11 // pred_fallthru
          _
        // Predicated region
        $region49: #{tpu_custom_call.1} parent=11 // pred_check
          %p572 = pneg %p300
        $region50: #{tpu_custom_call.1} parent=11 // pred_check_branch
          %574 = sbr.rel (%p572) target = $region52
        $region51: #{tpu_custom_call.1} parent=11 // pred_region
          _
        $region52: #{tpu_custom_call.1} parent=11 // pred_fallthru
          _
        // Predicated region
        $region53: #{tpu_custom_call.1} parent=11 // pred_check
          %p575 = pneg %p321
        $region54: #{tpu_custom_call.1} parent=11 // pred_check_branch
          %577 = sbr.rel (%p575) target = $region56
        $region55: #{tpu_custom_call.1} parent=11 // pred_region
          %s579 = ssub.s32 768, 768
          %580 = vsyncadd [#allocation12], %s579
          %s581 = sshll.u32 [#allocation13], 4
          %s582 = int_to_ptr.vmem [resolvable:$true] %s581
          %587 = dma.hbm_to_vmem [thread:$0]  %s12, 768, %s582, [#allocation12], 128, 128, 8
        $region56: #{tpu_custom_call.1} parent=11 // pred_fallthru
          _
        // Predicated region
        $region57: #{tpu_custom_call.1} parent=11 // pred_check
          %p588 = pneg %p342
        $region58: #{tpu_custom_call.1} parent=11 // pred_check_branch
          %590 = sbr.rel (%p588) target = $region60
        $region59: #{tpu_custom_call.1} parent=11 // pred_region
          %s592 = ssub.s32 16, 16
          %593 = vsyncadd [#allocation15], %s592
          %s595 = sshll.u32 [#allocation14], 4
          %s596 = int_to_ptr.vmem [resolvable:$true] %s595
          %598 = dma.hbm_to_vmem [thread:$0]  %s13, 16, %s596, [#allocation15]
        $region60: #{tpu_custom_call.1} parent=11 // pred_fallthru
          _
        // Predicated region
        $region61: #{tpu_custom_call.1} parent=11 // pred_check
          %p599 = pneg %p363
        $region62: #{tpu_custom_call.1} parent=11 // pred_check_branch
          %601 = sbr.rel (%p599) target = $region64
        $region63: #{tpu_custom_call.1} parent=11 // pred_region
          _
        $region64: #{tpu_custom_call.1} parent=11 // pred_fallthru
          _
        // Predicated region
        $region65: #{tpu_custom_call.1} parent=11 // pred_check
          %p602 = pneg %p384
        $region66: #{tpu_custom_call.1} parent=11 // pred_check_branch
          %604 = sbr.rel (%p602) target = $region68
        $region67: #{tpu_custom_call.1} parent=11 // pred_region
          _
        $region68: #{tpu_custom_call.1} parent=11 // pred_fallthru
          _
        // Predicated region
        $region69: #{tpu_custom_call.1} parent=11 // pred_check
          %p605 = pneg %p405
        $region70: #{tpu_custom_call.1} parent=11 // pred_check_branch
          %607 = sbr.rel (%p605) target = $region72
        $region71: #{tpu_custom_call.1} parent=11 // pred_region
          _
        $region72: #{tpu_custom_call.1} parent=11 // pred_fallthru
          _
        // Predicated region
        $region73: #{tpu_custom_call.1} parent=11 // pred_check
          %p608 = pneg %p426
        $region74: #{tpu_custom_call.1} parent=11 // pred_check_branch
          %610 = sbr.rel (%p608) target = $region76
        $region75: #{tpu_custom_call.1} parent=11 // pred_region
          _
        $region76: #{tpu_custom_call.1} parent=11 // pred_fallthru
          _
        // Predicated region
        $region77: #{tpu_custom_call.1} parent=11 // pred_check
          %p611 = pneg %p447
        $region78: #{tpu_custom_call.1} parent=11 // pred_check_branch
          %613 = sbr.rel (%p611) target = $region80
        $region79: #{tpu_custom_call.1} parent=11 // pred_region
          _
        $region80: #{tpu_custom_call.1} parent=11 // pred_fallthru
          _
        // Predicated region
        $region81: #{tpu_custom_call.1} parent=11 // pred_check
          %p614 = pneg %p468
        $region82: #{tpu_custom_call.1} parent=11 // pred_check_branch
          %616 = sbr.rel (%p614) target = $region84
        $region83: #{tpu_custom_call.1} parent=11 // pred_region
          %s618 = ssub.s32 2048, 2048
          %619 = vsyncadd [#allocation15], %s618
          %s620 = sshll.u32 [#allocation16], 4
          %s621 = int_to_ptr.vmem [resolvable:$true] %s620
          %626 = dma.hbm_to_vmem [thread:$0]  %s19, 2048, %s621, [#allocation15], 128, 128, 8
        $region84: #{tpu_custom_call.1} parent=11 // pred_fallthru
          _
      $region12: #{tpu_custom_call.1} parent=5 // pred_fallthru
        _
      %p627 = scmp.lt.s32.totalorder %s38, 2
      // Predicated region
      $region85: #{tpu_custom_call.1} parent=5 // pred_check
        %p628 = pneg %p627
      $region86: #{tpu_custom_call.1} parent=5 // pred_check_branch
        %630 = sbr.rel (%p628) target = $region88
      $region87: #{tpu_custom_call.1} parent=5 // pred_region
        // Predicated region
        $region89: #{tpu_custom_call.1} parent=87 // pred_check
          %p631 = pneg %p58
        $region90: #{tpu_custom_call.1} parent=87 // pred_check_branch
          %633 = sbr.rel (%p631) target = $region92
        $region91: #{tpu_custom_call.1} parent=87 // pred_region
          %s634 = sand.u32 %s48, 1
          %s635 = scalar_lea.sflag [#allocation3], %s634
          %s636 = sand.u32 %s48, 1
          %s637 = smul.addr %s636, 8
          %s638 = scalar_lea.vmem [#allocation2], %s637
          %s640 = ssub.s32 128, 128
          %641 = vsyncadd %s635, %s640
          %s642 = smul.addr %s38, 128
          %s643 = scalar_lea.hbm %s0, %s642
          %s645 = sshll.u32 %s638, 4
          %s646 = int_to_ptr.vmem [resolvable:$true] %s645
          %648 = dma.hbm_to_vmem [thread:$0]  %s643, 128, %s646, %s635
        $region92: #{tpu_custom_call.1} parent=87 // pred_fallthru
          _
        // Predicated region
        $region93: #{tpu_custom_call.1} parent=87 // pred_check
          %p649 = pneg %p84
        $region94: #{tpu_custom_call.1} parent=87 // pred_check_branch
          %651 = sbr.rel (%p649) target = $region96
        $region95: #{tpu_custom_call.1} parent=87 // pred_region
          %s652 = sand.u32 %s38, 1
          %s653 = scalar_lea.sflag [#allocation6], %s652
          %s654 = sand.u32 %s74, 1
          %s655 = scalar_lea.vmem [#allocation5], %s654
          %s657 = ssub.s32 16, 16
          %658 = vsyncadd %s653, %s657
          %s659 = smul.addr %s38, 16
          %s660 = scalar_lea.hbm %s1, %s659
          %s662 = sshll.u32 %s655, 4
          %s663 = int_to_ptr.vmem [resolvable:$true] %s662
          %665 = dma.hbm_to_vmem [thread:$0]  %s660, 16, %s663, %s653
        $region96: #{tpu_custom_call.1} parent=87 // pred_fallthru
          _
      $region88: #{tpu_custom_call.1} parent=5 // pred_fallthru
        _
      %p666 = scmp.le.s32.totalorder 1, %s38
      %p667 = scmp.lt.s32.totalorder %s38, 3
      %p668 = pnand %p666, %p667
      %p669 = pneg %p668
      // Predicated region
      $region97: #{tpu_custom_call.1} parent=5 // pred_check
        _
      $region98: #{tpu_custom_call.1} parent=5 // pred_check_branch
        %671 = sbr.rel (%p668) target = $region100
      $region99: #{tpu_custom_call.1} parent=5 // pred_region
        %s672 = ssub.s32 %s38, 1
        %s673 = sand.u32 %s51, 1
        %s674 = scalar_lea.sflag [#allocation3], %s673
        %s675 = sand.u32 %s51, 1
        %s676 = smul.addr %s675, 8
        %s677 = scalar_lea.vmem [#allocation2], %s676
        // Predicated region
        $region101: #{tpu_custom_call.1} parent=99 // pred_check
          %p678 = pneg %p64
        $region102: #{tpu_custom_call.1} parent=99 // pred_check_branch
          %680 = sbr.rel (%p678) target = $region104
        $region103: #{tpu_custom_call.1} parent=99 // pred_region
          %681 = dma.done %s674, 128
        $region104: #{tpu_custom_call.1} parent=99 // pred_fallthru
          _
        %s682 = sand.u32 %s43, 1
        %s683 = scalar_lea.sflag [#allocation6], %s682
        %s684 = sand.u32 %s77, 1
        %s685 = scalar_lea.vmem [#allocation5], %s684
        // Predicated region
        $region105: #{tpu_custom_call.1} parent=99 // pred_check
          %p686 = pneg %p90
        $region106: #{tpu_custom_call.1} parent=99 // pred_check_branch
          %688 = sbr.rel (%p686) target = $region108
        $region107: #{tpu_custom_call.1} parent=99 // pred_region
          %689 = dma.done %s683, 16
        $region108: #{tpu_custom_call.1} parent=99 // pred_fallthru
          _
        // Predicated region
        $region109: #{tpu_custom_call.1} parent=99 // pred_check
          %p690 = pneg %p111
        $region110: #{tpu_custom_call.1} parent=99 // pred_check_branch
          %692 = sbr.rel (%p690) target = $region112
        $region111: #{tpu_custom_call.1} parent=99 // pred_region
          %693 = dma.done [#allocation6], 128
        $region112: #{tpu_custom_call.1} parent=99 // pred_fallthru
          _
        // Predicated region
        $region113: #{tpu_custom_call.1} parent=99 // pred_check
          %p694 = pneg %p132
        $region114: #{tpu_custom_call.1} parent=99 // pred_check_branch
          %696 = sbr.rel (%p694) target = $region116
        $region115: #{tpu_custom_call.1} parent=99 // pred_region
          %697 = dma.done [#allocation9], 256
        $region116: #{tpu_custom_call.1} parent=99 // pred_fallthru
          _
        // Predicated region
        $region117: #{tpu_custom_call.1} parent=99 // pred_check
          %p698 = pneg %p153
        $region118: #{tpu_custom_call.1} parent=99 // pred_check_branch
          %700 = sbr.rel (%p698) target = $region120
        $region119: #{tpu_custom_call.1} parent=99 // pred_region
          %701 = dma.done [#allocation9], 16
        $region120: #{tpu_custom_call.1} parent=99 // pred_fallthru
          _
        // Predicated region
        $region121: #{tpu_custom_call.1} parent=99 // pred_check
          %p702 = pneg %p195
        $region122: #{tpu_custom_call.1} parent=99 // pred_check_branch
          %704 = sbr.rel (%p702) target = $region124
        $region123: #{tpu_custom_call.1} parent=99 // pred_region
          %705 = dma.done [#allocation12], 128
        $region124: #{tpu_custom_call.1} parent=99 // pred_fallthru
          _
        // Predicated region
        $region125: #{tpu_custom_call.1} parent=99 // pred_check
          %p706 = pneg %p321
        $region126: #{tpu_custom_call.1} parent=99 // pred_check_branch
          %708 = sbr.rel (%p706) target = $region128
        $region127: #{tpu_custom_call.1} parent=99 // pred_region
          %709 = dma.done [#allocation12], 768
        $region128: #{tpu_custom_call.1} parent=99 // pred_fallthru
          _
        // Predicated region
        $region129: #{tpu_custom_call.1} parent=99 // pred_check
          %p710 = pneg %p342
        $region130: #{tpu_custom_call.1} parent=99 // pred_check_branch
          %712 = sbr.rel (%p710) target = $region132
        $region131: #{tpu_custom_call.1} parent=99 // pred_region
          %713 = dma.done [#allocation15], 16
        $region132: #{tpu_custom_call.1} parent=99 // pred_fallthru
          _
        // Predicated region
        $region133: #{tpu_custom_call.1} parent=99 // pred_check
          %p714 = pneg %p468
        $region134: #{tpu_custom_call.1} parent=99 // pred_check_branch
          %716 = sbr.rel (%p714) target = $region136
        $region135: #{tpu_custom_call.1} parent=99 // pred_region
          %717 = dma.done [#allocation15], 2048
        $region136: #{tpu_custom_call.1} parent=99 // pred_fallthru
          _
        %s718 = sand.u32 %s51, 1
        %s719 = scalar_lea.sflag [#allocation3], %s718
        %s720 = sand.u32 %s51, 1
        %s721 = smul.addr %s720, 8
        %s722 = scalar_lea.vmem [#allocation2], %s721
        %p723 = pneg %p64
        %p724 = pneg %p61
        %s725 = sand.u32 %s43, 1
        %s726 = scalar_lea.sflag [#allocation6], %s725
        %s727 = sand.u32 %s77, 1
        %s728 = scalar_lea.vmem [#allocation5], %s727
        %p729 = pneg %p90
        %p730 = pneg %p87
        %p731 = pneg %p111
        %p732 = pneg %p108
        %p733 = pneg %p132
        %p734 = pneg %p129
        %p735 = pneg %p153
        %p736 = pneg %p150
        %p737 = pneg %p174
        %p738 = pneg %p171
        %p739 = pneg %p195
        %p740 = pneg %p192
        %p741 = pneg %p216
        %p742 = pneg %p213
        %p743 = pneg %p237
        %p744 = pneg %p234
        %p745 = pneg %p258
        %p746 = pneg %p255
        %p747 = pneg %p279
        %p748 = pneg %p276
        %p749 = pneg %p300
        %p750 = pneg %p297
        %p751 = pneg %p321
        %p752 = pneg %p318
        %p753 = pneg %p342
        %p754 = pneg %p339
        %p755 = pneg %p363
        %p756 = pneg %p360
        %p757 = pneg %p384
        %p758 = pneg %p381
        %p759 = pneg %p405
        %p760 = pneg %p402
        %p761 = pneg %p426
        %p762 = pneg %p423
        %p763 = pneg %p447
        %p764 = pneg %p444
        %p765 = pneg %p468
        %p766 = pneg %p465
        %p767 = pneg %p494
        %p768 = pneg %p491
        %s769 = sand.u32 %s481, 1
        %s770 = scalar_lea.sflag [#allocation4], %s769
        %s771 = sand.u32 %s481, 1
        %s772 = smul.addr %s771, 16
        %s773 = scalar_lea.vmem [#allocation17], %s772
        %v774 = vld [vmem:[%s677] sm:$0xff]
        %v775 = vld [vmem:[#allocation7] sm:$0xff]
        %v776 = vadd.f32 %v774, %v775
        %v777 = vld [vmem:[%s11] sm:$0x3f]
        %v778 = vld [vmem:[%s5] sm:$0xff]
        %v779 = vld [vmem:[%s5 + $0x8] sm:$0xff]
        %v780 = vld [vmem:[%s5 + $0x10] sm:$0xff]
        %v781 = vld [vmem:[%s5 + $0x18] sm:$0xff]
        %v782 = vld [vmem:[%s5 + $0x20] sm:$0xff]
        %v783 = vld [vmem:[%s5 + $0x28] sm:$0xff]
        %v784 = vld [vmem:[%s5 + $0x30] sm:$0xff]
        %v785 = vld [vmem:[%s5 + $0x38] sm:$0xff]
        %v786 = vld [vmem:[%s5 + $0x40] sm:$0xff]
        %v787 = vld [vmem:[%s5 + $0x48] sm:$0xff]
        %v788 = vld [vmem:[%s5 + $0x50] sm:$0xff]
        %v789 = vld [vmem:[%s5 + $0x58] sm:$0xff]
        %v790 = vld [vmem:[#allocation11] sm:$0x3]
        %v792 = vlaneseq
        %v793 = vshrl.u32 %v792, 7
        %v794 = vsub.s32 0, %v793
        %v795 = vrot.slane %v790, %v794
        %v796 = vlaneseq
        %v797 = vshrl.u32 %v796, 7
        %v798 = vsub.s32 1, %v797
        %v799 = vrot.slane %v790, %v798
        %vm802 = vcmask 392192
        %v804 = vsel %vm802, %v776, 0
        %806 = vmatprep.subr.mxu0 %v779
        %807 = vmatpush1.msra.mxu0 %v778
        %808 = vmatprep.subr.mxu0 %v781
        %809 = vmatpush1.msra.mxu0 %v780
        %810 = vmatprep.subr.mxu0 %v783
        %811 = vmatpush1.msra.mxu0 %v782
        %812 = vmatprep.subr.mxu0 %v785
        %813 = vmatpush1.msra.mxu0 %v784
        %814 = vmatprep.subr.mxu0 %v787
        %815 = vmatpush1.msra.mxu0 %v786
        %816 = vmatprep.subr.mxu0 %v789
        %817 = vmatpush1.msra.mxu0 %v788
        %818 = vmatprep.subr.mxu0 0.0
        %819 = vmatpush1.msra.mxu0 0.0
        %820 = vmatprep.subr.mxu0 0.0
        %821 = vmatpush1.msra.mxu0 0.0
        %822 = vmatprep.subr.mxu0 0.0
        %823 = vmatpush1.msra.mxu0 0.0
        %824 = vmatprep.subr.mxu0 0.0
        %825 = vmatpush1.msra.mxu0 0.0
        %826 = vmatprep.subr.mxu0 0.0
        %827 = vmatpush1.msra.mxu0 0.0
        %828 = vmatprep.subr.mxu0 0.0
        %829 = vmatpush1.msra.mxu0 0.0
        %830 = vmatprep.subr.mxu0 0.0
        %831 = vmatpush1.msra.mxu0 0.0
        %832 = vmatprep.subr.mxu0 0.0
        %833 = vmatpush1.msra.mxu0 0.0
        %834 = vmatprep.subr.mxu0 0.0
        %835 = vmatpush1.msra.mxu0 0.0
        %836 = vmatprep.subr.mxu0 0.0
        %837 = vmatpush1.msra.mxu0 0.0
        %838 = vmatprep.subr.mxu0 0.0
        %839 = vmatpush1.msra.mxu0 0.0
        %840 = vmatprep.subr.mxu0 0.0
        %841 = vmatpush1.msra.mxu0 0.0
        %842 = vmatprep.subr.mxu0 0.0
        %843 = vmatpush1.msra.mxu0 0.0
        %844 = vmatprep.subr.mxu0 0.0
        %845 = vmatpush1.msra.mxu0 0.0
        %846 = vmatprep.subr.mxu0 0.0
        %847 = vmatpush1.msra.mxu0 0.0
        %848 = vmatprep.subr.mxu0 0.0
        %849 = vmatpush1.msra.mxu0 0.0
        %850 = vmatprep.subr.mxu0 0.0
        %851 = vmatpush1.msra.mxu0 0.0
        %852 = vmatprep.subr.mxu0 0.0
        %853 = vmatpush1.msra.mxu0 0.0
        %854 = vmatprep.subr.mxu0 0.0
        %855 = vmatpush1.msra.mxu0 0.0
        %856 = vmatprep.subr.mxu0 0.0
        %857 = vmatpush1.msra.mxu0 0.0
        %858 = vmatprep.subr.mxu0 0.0
        %859 = vmatpush1.msra.mxu0 0.0
        %860 = vmatprep.subr.mxu0 0.0
        %861 = vmatpush1.msra.mxu0 0.0
        %862 = vmatprep.subr.mxu0 0.0
        %863 = vmatpush1.msra.mxu0 0.0
        %864 = vmatprep.subr.mxu0 0.0
        %865 = vmatpush1.msra.mxu0 0.0
        %866 = vmatprep.subr.mxu0 0.0
        %867 = vmatpush1.msra.mxu0 0.0
        %868 = vmatprep.subr.mxu0 0.0
        %869 = vmatpush1.msra.mxu0 0.0
        %870 = vmatprep.mubr.f32.mxu0 0.0
        %871 = vmatmul.mubr.f32.gmra.mrb[0].mxu0 %v804
        %v872 = vpop.f32.mrb[0].mxu0
        %v873 = vadd.f32 %v795, %v872
        %v874 = vpop.f32.mrb[0].mxu0
        %v875 = vadd.f32 %v799, %v874
        %876 = vdwg.mxu0
        %v877 = vld [vmem:[%s14] sm:$0xff]
        %v878 = vld [vmem:[%s14 + $0x8] sm:$0xff]
        %v879 = vld [vmem:[%s14 + $0x10] sm:$0xff]
        %v880 = vld [vmem:[%s14 + $0x18] sm:$0xff]
        %v881 = vld [vmem:[%s14 + $0x20] sm:$0xff]
        %v882 = vld [vmem:[%s14 + $0x28] sm:$0xff]
        %v883 = vld [vmem:[%s14 + $0x30] sm:$0xff]
        %v884 = vld [vmem:[%s14 + $0x38] sm:$0xff]
        %886 = vrot.lane.b32.xlu0 %v873, 80
        %v887 = vpop.permute.xlu0 %886
        %vm889 = vcmask 64512
        %v891 = vsel %vm889, %v877, 0
        %v894 = vsel %vm889, %v878, 0
        %v897 = vsel %vm889, %v879, 0
        %v900 = vsel %vm889, %v880, 0
        %v903 = vsel %vm889, %v881, 0
        %v906 = vsel %vm889, %v882, 0
        %v909 = vsel %vm889, %v883, 0
        %v912 = vsel %vm889, %v884, 0
        %914 = vmatprep.subr.mxu0 0.0
        %915 = vmatpush1.msra.mxu0 %v887
        %916 = vmatprep.subr.mxu0 0.0
        %917 = vmatpush1.msra.mxu0 0.0
        %918 = vmatprep.subr.mxu0 0.0
        %919 = vmatpush1.msra.mxu0 0.0
        %920 = vmatprep.subr.mxu0 0.0
        %921 = vmatpush1.msra.mxu0 0.0
        %922 = vmatprep.subr.mxu0 0.0
        %923 = vmatpush1.msra.mxu0 0.0
        %924 = vmatprep.subr.mxu0 0.0
        %925 = vmatpush1.msra.mxu0 0.0
        %926 = vmatprep.subr.mxu0 0.0
        %927 = vmatpush1.msra.mxu0 0.0
        %928 = vmatprep.subr.mxu0 0.0
        %929 = vmatpush1.msra.mxu0 0.0
        %930 = vmatprep.subr.mxu0 0.0
        %931 = vmatpush1.msra.mxu0 0.0
        %932 = vmatprep.subr.mxu0 0.0
        %933 = vmatpush1.msra.mxu0 0.0
        %934 = vmatprep.subr.mxu0 0.0
        %935 = vmatpush1.msra.mxu0 0.0
        %936 = vmatprep.subr.mxu0 0.0
        %937 = vmatpush1.msra.mxu0 0.0
        %938 = vmatprep.subr.mxu0 0.0
        %939 = vmatpush1.msra.mxu0 0.0
        %940 = vmatprep.subr.mxu0 0.0
        %941 = vmatpush1.msra.mxu0 0.0
        %942 = vmatprep.subr.mxu0 0.0
        %943 = vmatpush1.msra.mxu0 0.0
        %944 = vmatprep.subr.mxu0 0.0
        %945 = vmatpush1.msra.mxu0 0.0
        %946 = vmatprep.subr.mxu0 0.0
        %947 = vmatpush1.msra.mxu0 0.0
        %948 = vmatprep.subr.mxu0 0.0
        %949 = vmatpush1.msra.mxu0 0.0
        %950 = vmatprep.subr.mxu0 0.0
        %951 = vmatpush1.msra.mxu0 0.0
        %952 = vmatprep.subr.mxu0 0.0
        %953 = vmatpush1.msra.mxu0 0.0
        %954 = vmatprep.subr.mxu0 0.0
        %955 = vmatpush1.msra.mxu0 0.0
        %956 = vmatprep.subr.mxu0 0.0
        %957 = vmatpush1.msra.mxu0 0.0
        %958 = vmatprep.subr.mxu0 0.0
        %959 = vmatpush1.msra.mxu0 0.0
        %960 = vmatprep.subr.mxu0 0.0
        %961 = vmatpush1.msra.mxu0 0.0
        %962 = vmatprep.subr.mxu0 0.0
        %963 = vmatpush1.msra.mxu0 0.0
        %964 = vmatprep.subr.mxu0 0.0
        %965 = vmatpush1.msra.mxu0 0.0
        %966 = vmatprep.subr.mxu0 0.0
        %967 = vmatpush1.msra.mxu0 0.0
        %968 = vmatprep.subr.mxu0 0.0
        %969 = vmatpush1.msra.mxu0 0.0
        %970 = vmatprep.subr.mxu0 0.0
        %971 = vmatpush1.msra.mxu0 0.0
        %972 = vmatprep.subr.mxu0 0.0
        %973 = vmatpush1.msra.mxu0 0.0
        %974 = vmatprep.subr.mxu0 0.0
        %975 = vmatpush1.msra.mxu0 0.0
        %976 = vmatprep.subr.mxu0 0.0
        %977 = vmatpush1.msra.mxu0 0.0
        %978 = vmatprep.mubr.f32.mxu0 0.0
        %979 = vmatmul.mubr.f32.gmra.mrb[0].mxu0 %v891
        %v980 = vpop.f32.mrb[0].mxu0
        %v981 = vadd.f32 0.0, %v980
        %v982 = vpop.f32.mrb[0].mxu0
        %983 = vmatprep.mubr.f32.mxu0 0.0
        %984 = vmatmul.mubr.f32.gmra.mrb[0].mxu0 %v894
        %v985 = vpop.f32.mrb[0].mxu0
        %v986 = vadd.f32 0.0, %v985
        %v987 = vpop.f32.mrb[0].mxu0
        %988 = vmatprep.mubr.f32.mxu0 0.0
        %989 = vmatmul.mubr.f32.gmra.mrb[0].mxu0 %v897
        %v990 = vpop.f32.mrb[0].mxu0
        %v991 = vadd.f32 0.0, %v990
        %v992 = vpop.f32.mrb[0].mxu0
        %993 = vmatprep.mubr.f32.mxu0 0.0
        %994 = vmatmul.mubr.f32.gmra.mrb[0].mxu0 %v900
        %v995 = vpop.f32.mrb[0].mxu0
        %v996 = vadd.f32 0.0, %v995
        %v997 = vpop.f32.mrb[0].mxu0
        %998 = vmatprep.mubr.f32.mxu0 0.0
        %999 = vmatmul.mubr.f32.gmra.mrb[0].mxu0 %v903
        %v1000 = vpop.f32.mrb[0].mxu0
        %v1001 = vadd.f32 0.0, %v1000
        %v1002 = vpop.f32.mrb[0].mxu0
        %1003 = vmatprep.mubr.f32.mxu0 0.0
        %1004 = vmatmul.mubr.f32.gmra.mrb[0].mxu0 %v906
        %v1005 = vpop.f32.mrb[0].mxu0
        %v1006 = vadd.f32 0.0, %v1005
        %v1007 = vpop.f32.mrb[0].mxu0
        %1008 = vmatprep.mubr.f32.mxu0 0.0
        %1009 = vmatmul.mubr.f32.gmra.mrb[0].mxu0 %v909
        %v1010 = vpop.f32.mrb[0].mxu0
        %v1011 = vadd.f32 0.0, %v1010
        %v1012 = vpop.f32.mrb[0].mxu0
        %1013 = vmatprep.mubr.f32.mxu0 0.0
        %1014 = vmatmul.mubr.f32.gmra.mrb[0].mxu0 %v912
        %v1015 = vpop.f32.mrb[0].mxu0
        %v1016 = vadd.f32 0.0, %v1015
        %v1017 = vpop.f32.mrb[0].mxu0
        %1018 = vdwg.mxu0
        %v1019 = vld [vmem:[%s15] sm:$0xff]
        %v1020 = vld [vmem:[%s15 + $0x8] sm:$0xff]
        %v1021 = vld [vmem:[%s15 + $0x10] sm:$0xff]
        %v1022 = vld [vmem:[%s15 + $0x18] sm:$0xff]
        %v1023 = vld [vmem:[%s15 + $0x20] sm:$0xff]
        %v1024 = vld [vmem:[%s15 + $0x28] sm:$0xff]
        %v1025 = vld [vmem:[%s15 + $0x30] sm:$0xff]
        %v1026 = vld [vmem:[%s15 + $0x38] sm:$0xff]
        %v1027 = vmul.f32 %v981, %v1019
        %v1028 = vmul.f32 %v986, %v1020
        %v1029 = vmul.f32 %v991, %v1021
        %v1030 = vmul.f32 %v996, %v1022
        %v1031 = vmul.f32 %v1001, %v1023
        %v1032 = vmul.f32 %v1006, %v1024
        %v1033 = vmul.f32 %v1011, %v1025
        %v1034 = vmul.f32 %v1016, %v1026
        %v1035 = vsel %vm802, %v873, 0
        %v1038 = vsel %vm802, %v1027, 0
        %v1041 = vsel %vm802, %v1028, 0
        %v1044 = vsel %vm802, %v1029, 0
        %v1047 = vsel %vm802, %v1030, 0
        %v1050 = vsel %vm802, %v1031, 0
        %v1053 = vsel %vm802, %v1032, 0
        %v1056 = vsel %vm802, %v1033, 0
        %v1059 = vsel %vm802, %v1034, 0
        %1061 = vmatprep.subr.mxu0 0.0
        %1062 = vmatpush1.xpose.msra.mxu0 %v1038
        %1063 = vmatprep.subr.mxu0 0.0
        %1064 = vmatpush1.xpose.msra.mxu0 %v1041
        %1065 = vmatprep.subr.mxu0 0.0
        %1066 = vmatpush1.xpose.msra.mxu0 %v1044
        %1067 = vmatprep.subr.mxu0 0.0
        %1068 = vmatpush1.xpose.msra.mxu0 %v1047
        %1069 = vmatprep.subr.mxu0 0.0
        %1070 = vmatpush1.xpose.msra.mxu0 %v1050
        %1071 = vmatprep.subr.mxu0 0.0
        %1072 = vmatpush1.xpose.msra.mxu0 %v1053
        %1073 = vmatprep.subr.mxu0 0.0
        %1074 = vmatpush1.xpose.msra.mxu0 %v1056
        %1075 = vmatprep.subr.mxu0 0.0
        %1076 = vmatpush1.xpose.msra.mxu0 %v1059
        %1077 = vmatprep.subr.mxu0 0.0
        %1078 = vmatpush1.xpose.msra.mxu0 0.0
        %1079 = vmatprep.subr.mxu0 0.0
        %1080 = vmatpush1.xpose.msra.mxu0 0.0
        %1081 = vmatprep.subr.mxu0 0.0
        %1082 = vmatpush1.xpose.msra.mxu0 0.0
        %1083 = vmatprep.subr.mxu0 0.0
        %1084 = vmatpush1.xpose.msra.mxu0 0.0
        %1085 = vmatprep.subr.mxu0 0.0
        %1086 = vmatpush1.xpose.msra.mxu0 0.0
        %1087 = vmatprep.subr.mxu0 0.0
        %1088 = vmatpush1.xpose.msra.mxu0 0.0
        %1089 = vmatprep.subr.mxu0 0.0
        %1090 = vmatpush1.xpose.msra.mxu0 0.0
        %1091 = vmatprep.subr.mxu0 0.0
        %1092 = vmatpush1.xpose.msra.mxu0 0.0
        %1093 = vmatprep.subr.mxu0 0.0
        %1094 = vmatpush1.xpose.msra.mxu0 0.0
        %1095 = vmatprep.subr.mxu0 0.0
        %1096 = vmatpush1.xpose.msra.mxu0 0.0
        %1097 = vmatprep.subr.mxu0 0.0
        %1098 = vmatpush1.xpose.msra.mxu0 0.0
        %1099 = vmatprep.subr.mxu0 0.0
        %1100 = vmatpush1.xpose.msra.mxu0 0.0
        %1101 = vmatprep.subr.mxu0 0.0
        %1102 = vmatpush1.xpose.msra.mxu0 0.0
        %1103 = vmatprep.subr.mxu0 0.0
        %1104 = vmatpush1.xpose.msra.mxu0 0.0
        %1105 = vmatprep.subr.mxu0 0.0
        %1106 = vmatpush1.xpose.msra.mxu0 0.0
        %1107 = vmatprep.subr.mxu0 0.0
        %1108 = vmatpush1.xpose.msra.mxu0 0.0
        %1109 = vmatprep.subr.mxu0 0.0
        %1110 = vmatpush1.xpose.msra.mxu0 0.0
        %1111 = vmatprep.subr.mxu0 0.0
        %1112 = vmatpush1.xpose.msra.mxu0 0.0
        %1113 = vmatprep.subr.mxu0 0.0
        %1114 = vmatpush1.xpose.msra.mxu0 0.0
        %1115 = vmatprep.subr.mxu0 0.0
        %1116 = vmatpush1.xpose.msra.mxu0 0.0
        %1117 = vmatprep.subr.mxu0 0.0
        %1118 = vmatpush1.xpose.msra.mxu0 0.0
        %1119 = vmatprep.subr.mxu0 0.0
        %1120 = vmatpush1.xpose.msra.mxu0 0.0
        %1121 = vmatprep.subr.mxu0 0.0
        %1122 = vmatpush1.xpose.msra.mxu0 0.0
        %1123 = vmatprep.subr.mxu0 0.0
        %1124 = vmatpush1.xpose.msra.mxu0 0.0
        %1125 = vmatprep.mubr.f32.mxu0 0.0
        %1126 = vmatmul.mubr.f32.gmra.mrb[0].mxu0 %v1035
        %v1127 = vpop.f32.mrb[0].mxu0
        %v1128 = vadd.f32 0.0, %v1127
        %v1129 = vpop.f32.mrb[0].mxu0
        %1130 = vdwg.mxu0
        %vm1131 = vcmask 523264
        %v1132 = vsel %vm1131, %v1128, -inf
        %1133 = vmax.xlane.f32.xlu0 %v1132
        %v1134 = vpop.xlane.xlu0 %1133
        %v1135 = vsub.f32 %v1128, %v1134
        %v1136 = vmul.f32 %v1135, 1.442695
        %v1137 = vpow.pop %v1136
        %v1138 = vld [vmem:[%s16] sm:$0xff]
        %v1139 = vld [vmem:[%s16 + $0x8] sm:$0xff]
        %v1140 = vld [vmem:[%s16 + $0x10] sm:$0xff]
        %v1141 = vld [vmem:[%s16 + $0x18] sm:$0xff]
        %v1142 = vld [vmem:[%s16 + $0x20] sm:$0xff]
        %v1143 = vld [vmem:[%s16 + $0x28] sm:$0xff]
        %v1144 = vld [vmem:[%s16 + $0x30] sm:$0xff]
        %v1145 = vld [vmem:[%s16 + $0x38] sm:$0xff]
        %v1147 = vsel %vm1131, %v1137, 0
        %1149 = vmatprep.subr.mxu0 0.0
        %1150 = vmatpush1.msra.mxu0 %v1138
        %1151 = vmatprep.subr.mxu0 0.0
        %1152 = vmatpush1.msra.mxu0 %v1139
        %1153 = vmatprep.subr.mxu0 0.0
        %1154 = vmatpush1.msra.mxu0 %v1140
        %1155 = vmatprep.subr.mxu0 0.0
        %1156 = vmatpush1.msra.mxu0 %v1141
        %1157 = vmatprep.subr.mxu0 0.0
        %1158 = vmatpush1.msra.mxu0 %v1142
        %1159 = vmatprep.subr.mxu0 0.0
        %1160 = vmatpush1.msra.mxu0 %v1143
        %1161 = vmatprep.subr.mxu0 0.0
        %1162 = vmatpush1.msra.mxu0 %v1144
        %1163 = vmatprep.subr.mxu0 0.0
        %1164 = vmatpush1.msra.mxu0 %v1145
        %1165 = vmatprep.subr.mxu0 0.0
        %1166 = vmatpush1.msra.mxu0 0.0
        %1167 = vmatprep.subr.mxu0 0.0
        %1168 = vmatpush1.msra.mxu0 0.0
        %1169 = vmatprep.subr.mxu0 0.0
        %1170 = vmatpush1.msra.mxu0 0.0
        %1171 = vmatprep.subr.mxu0 0.0
        %1172 = vmatpush1.msra.mxu0 0.0
        %1173 = vmatprep.subr.mxu0 0.0
        %1174 = vmatpush1.msra.mxu0 0.0
        %1175 = vmatprep.subr.mxu0 0.0
        %1176 = vmatpush1.msra.mxu0 0.0
        %1177 = vmatprep.subr.mxu0 0.0
        %1178 = vmatpush1.msra.mxu0 0.0
        %1179 = vmatprep.subr.mxu0 0.0
        %1180 = vmatpush1.msra.mxu0 0.0
        %1181 = vmatprep.subr.mxu0 0.0
        %1182 = vmatpush1.msra.mxu0 0.0
        %1183 = vmatprep.subr.mxu0 0.0
        %1184 = vmatpush1.msra.mxu0 0.0
        %1185 = vmatprep.subr.mxu0 0.0
        %1186 = vmatpush1.msra.mxu0 0.0
        %1187 = vmatprep.subr.mxu0 0.0
        %1188 = vmatpush1.msra.mxu0 0.0
        %1189 = vmatprep.subr.mxu0 0.0
        %1190 = vmatpush1.msra.mxu0 0.0
        %1191 = vmatprep.subr.mxu0 0.0
        %1192 = vmatpush1.msra.mxu0 0.0
        %1193 = vmatprep.subr.mxu0 0.0
        %1194 = vmatpush1.msra.mxu0 0.0
        %1195 = vmatprep.subr.mxu0 0.0
        %1196 = vmatpush1.msra.mxu0 0.0
        %1197 = vmatprep.subr.mxu0 0.0
        %1198 = vmatpush1.msra.mxu0 0.0
        %1199 = vmatprep.subr.mxu0 0.0
        %1200 = vmatpush1.msra.mxu0 0.0
        %1201 = vmatprep.subr.mxu0 0.0
        %1202 = vmatpush1.msra.mxu0 0.0
        %1203 = vmatprep.subr.mxu0 0.0
        %1204 = vmatpush1.msra.mxu0 0.0
        %1205 = vmatprep.subr.mxu0 0.0
        %1206 = vmatpush1.msra.mxu0 0.0
        %1207 = vmatprep.subr.mxu0 0.0
        %1208 = vmatpush1.msra.mxu0 0.0
        %1209 = vmatprep.subr.mxu0 0.0
        %1210 = vmatpush1.msra.mxu0 0.0
        %1211 = vmatprep.subr.mxu0 0.0
        %1212 = vmatpush1.msra.mxu0 0.0
        %1213 = vmatprep.mubr.f32.mxu0 0.0
        %1214 = vmatmul.mubr.f32.gmra.mrb[0].mxu0 %v1147
        %v1215 = vpop.f32.mrb[0].mxu0
        %v1216 = vadd.f32 0.0, %v1215
        %v1217 = vpop.f32.mrb[0].mxu0
        %1218 = vdwg.mxu0
        %v1219 = vrcp.pop %v1216
        %v1220 = vmul.f32 %v1137, %v1219
        %1222 = vrot.lane.b32.xlu0 %v873, 32
        %v1223 = vpop.permute.xlu0 %1222
        %1224 = vrot.lane.b32.xlu0 %v875, 32
        %v1225 = vpop.permute.xlu0 %1224
        %vm1226 = vcmask 261120
        %v1227 = vsel %vm1226, %v1223, %v1225
        %1229 = vmatprep.subr.mxu0 0.0
        %1230 = vmatpush1.msra.mxu0 %v1227
        %1231 = vmatprep.subr.mxu0 0.0
        %1232 = vmatpush1.msra.mxu0 0.0
        %1233 = vmatprep.subr.mxu0 0.0
        %1234 = vmatpush1.msra.mxu0 0.0
        %1235 = vmatprep.subr.mxu0 0.0
        %1236 = vmatpush1.msra.mxu0 0.0
        %1237 = vmatprep.subr.mxu0 0.0
        %1238 = vmatpush1.msra.mxu0 0.0
        %1239 = vmatprep.subr.mxu0 0.0
        %1240 = vmatpush1.msra.mxu0 0.0
        %1241 = vmatprep.subr.mxu0 0.0
        %1242 = vmatpush1.msra.mxu0 0.0
        %1243 = vmatprep.subr.mxu0 0.0
        %1244 = vmatpush1.msra.mxu0 0.0
        %1245 = vmatprep.subr.mxu0 0.0
        %1246 = vmatpush1.msra.mxu0 0.0
        %1247 = vmatprep.subr.mxu0 0.0
        %1248 = vmatpush1.msra.mxu0 0.0
        %1249 = vmatprep.subr.mxu0 0.0
        %1250 = vmatpush1.msra.mxu0 0.0
        %1251 = vmatprep.subr.mxu0 0.0
        %1252 = vmatpush1.msra.mxu0 0.0
        %1253 = vmatprep.subr.mxu0 0.0
        %1254 = vmatpush1.msra.mxu0 0.0
        %1255 = vmatprep.subr.mxu0 0.0
        %1256 = vmatpush1.msra.mxu0 0.0
        %1257 = vmatprep.subr.mxu0 0.0
        %1258 = vmatpush1.msra.mxu0 0.0
        %1259 = vmatprep.subr.mxu0 0.0
        %1260 = vmatpush1.msra.mxu0 0.0
        %1261 = vmatprep.subr.mxu0 0.0
        %1262 = vmatpush1.msra.mxu0 0.0
        %1263 = vmatprep.subr.mxu0 0.0
        %1264 = vmatpush1.msra.mxu0 0.0
        %1265 = vmatprep.subr.mxu0 0.0
        %1266 = vmatpush1.msra.mxu0 0.0
        %1267 = vmatprep.subr.mxu0 0.0
        %1268 = vmatpush1.msra.mxu0 0.0
        %1269 = vmatprep.subr.mxu0 0.0
        %1270 = vmatpush1.msra.mxu0 0.0
        %1271 = vmatprep.subr.mxu0 0.0
        %1272 = vmatpush1.msra.mxu0 0.0
        %1273 = vmatprep.subr.mxu0 0.0
        %1274 = vmatpush1.msra.mxu0 0.0
        %1275 = vmatprep.subr.mxu0 0.0
        %1276 = vmatpush1.msra.mxu0 0.0
        %1277 = vmatprep.subr.mxu0 0.0
        %1278 = vmatpush1.msra.mxu0 0.0
        %1279 = vmatprep.subr.mxu0 0.0
        %1280 = vmatpush1.msra.mxu0 0.0
        %1281 = vmatprep.subr.mxu0 0.0
        %1282 = vmatpush1.msra.mxu0 0.0
        %1283 = vmatprep.subr.mxu0 0.0
        %1284 = vmatpush1.msra.mxu0 0.0
        %1285 = vmatprep.subr.mxu0 0.0
        %1286 = vmatpush1.msra.mxu0 0.0
        %1287 = vmatprep.subr.mxu0 0.0
        %1288 = vmatpush1.msra.mxu0 0.0
        %1289 = vmatprep.subr.mxu0 0.0
        %1290 = vmatpush1.msra.mxu0 0.0
        %1291 = vmatprep.subr.mxu0 0.0
        %1292 = vmatpush1.msra.mxu0 0.0
        %1293 = vmatprep.mubr.f32.mxu0 0.0
        %1294 = vmatmul.mubr.f32.gmra.mrb[0].mxu0 %v891
        %v1295 = vpop.f32.mrb[0].mxu0
        %v1296 = vadd.f32 0.0, %v1295
        %v1297 = vpop.f32.mrb[0].mxu0
        %1298 = vmatprep.mubr.f32.mxu0 0.0
        %1299 = vmatmul.mubr.f32.gmra.mrb[0].mxu0 %v894
        %v1300 = vpop.f32.mrb[0].mxu0
        %v1301 = vadd.f32 0.0, %v1300
        %v1302 = vpop.f32.mrb[0].mxu0
        %1303 = vmatprep.mubr.f32.mxu0 0.0
        %1304 = vmatmul.mubr.f32.gmra.mrb[0].mxu0 %v897
        %v1305 = vpop.f32.mrb[0].mxu0
        %v1306 = vadd.f32 0.0, %v1305
        %v1307 = vpop.f32.mrb[0].mxu0
        %1308 = vmatprep.mubr.f32.mxu0 0.0
        %1309 = vmatmul.mubr.f32.gmra.mrb[0].mxu0 %v900
        %v1310 = vpop.f32.mrb[0].mxu0
        %v1311 = vadd.f32 0.0, %v1310
        %v1312 = vpop.f32.mrb[0].mxu0
        %1313 = vmatprep.mubr.f32.mxu0 0.0
        %1314 = vmatmul.mubr.f32.gmra.mrb[0].mxu0 %v903
        %v1315 = vpop.f32.mrb[0].mxu0
        %v1316 = vadd.f32 0.0, %v1315
        %v1317 = vpop.f32.mrb[0].mxu0
        %1318 = vmatprep.mubr.f32.mxu0 0.0
        %1319 = vmatmul.mubr.f32.gmra.mrb[0].mxu0 %v906
        %v1320 = vpop.f32.mrb[0].mxu0
        %v1321 = vadd.f32 0.0, %v1320
        %v1322 = vpop.f32.mrb[0].mxu0
        %1323 = vmatprep.mubr.f32.mxu0 0.0
        %1324 = vmatmul.mubr.f32.gmra.mrb[0].mxu0 %v909
        %v1325 = vpop.f32.mrb[0].mxu0
        %v1326 = vadd.f32 0.0, %v1325
        %v1327 = vpop.f32.mrb[0].mxu0
        %1328 = vmatprep.mubr.f32.mxu0 0.0
        %1329 = vmatmul.mubr.f32.gmra.mrb[0].mxu0 %v912
        %v1330 = vpop.f32.mrb[0].mxu0
        %v1331 = vadd.f32 0.0, %v1330
        %v1332 = vpop.f32.mrb[0].mxu0
        %1333 = vdwg.mxu0
        %v1334 = vmul.f32 %v1296, %v1019
        %v1335 = vmul.f32 %v1301, %v1020
        %v1336 = vmul.f32 %v1306, %v1021
        %v1337 = vmul.f32 %v1311, %v1022
        %v1338 = vmul.f32 %v1316, %v1023
        %v1339 = vmul.f32 %v1321, %v1024
        %v1340 = vmul.f32 %v1326, %v1025
        %v1341 = vmul.f32 %v1331, %v1026
        %v1343 = vsel %vm1131, %v1220, 0
        %1345 = vmatprep.subr.mxu0 0.0
        %1346 = vmatpush1.msra.mxu0 %v1334
        %1347 = vmatprep.subr.mxu0 0.0
        %1348 = vmatpush1.msra.mxu0 %v1335
        %1349 = vmatprep.subr.mxu0 0.0
        %1350 = vmatpush1.msra.mxu0 %v1336
        %1351 = vmatprep.subr.mxu0 0.0
        %1352 = vmatpush1.msra.mxu0 %v1337
        %1353 = vmatprep.subr.mxu0 0.0
        %1354 = vmatpush1.msra.mxu0 %v1338
        %1355 = vmatprep.subr.mxu0 0.0
        %1356 = vmatpush1.msra.mxu0 %v1339
        %1357 = vmatprep.subr.mxu0 0.0
        %1358 = vmatpush1.msra.mxu0 %v1340
        %1359 = vmatprep.subr.mxu0 0.0
        %1360 = vmatpush1.msra.mxu0 %v1341
        %1361 = vmatprep.subr.mxu0 0.0
        %1362 = vmatpush1.msra.mxu0 0.0
        %1363 = vmatprep.subr.mxu0 0.0
        %1364 = vmatpush1.msra.mxu0 0.0
        %1365 = vmatprep.subr.mxu0 0.0
        %1366 = vmatpush1.msra.mxu0 0.0
        %1367 = vmatprep.subr.mxu0 0.0
        %1368 = vmatpush1.msra.mxu0 0.0
        %1369 = vmatprep.subr.mxu0 0.0
        %1370 = vmatpush1.msra.mxu0 0.0
        %1371 = vmatprep.subr.mxu0 0.0
        %1372 = vmatpush1.msra.mxu0 0.0
        %1373 = vmatprep.subr.mxu0 0.0
        %1374 = vmatpush1.msra.mxu0 0.0
        %1375 = vmatprep.subr.mxu0 0.0
        %1376 = vmatpush1.msra.mxu0 0.0
        %1377 = vmatprep.subr.mxu0 0.0
        %1378 = vmatpush1.msra.mxu0 0.0
        %1379 = vmatprep.subr.mxu0 0.0
        %1380 = vmatpush1.msra.mxu0 0.0
        %1381 = vmatprep.subr.mxu0 0.0
        %1382 = vmatpush1.msra.mxu0 0.0
        %1383 = vmatprep.subr.mxu0 0.0
        %1384 = vmatpush1.msra.mxu0 0.0
        %1385 = vmatprep.subr.mxu0 0.0
        %1386 = vmatpush1.msra.mxu0 0.0
        %1387 = vmatprep.subr.mxu0 0.0
        %1388 = vmatpush1.msra.mxu0 0.0
        %1389 = vmatprep.subr.mxu0 0.0
        %1390 = vmatpush1.msra.mxu0 0.0
        %1391 = vmatprep.subr.mxu0 0.0
        %1392 = vmatpush1.msra.mxu0 0.0
        %1393 = vmatprep.subr.mxu0 0.0
        %1394 = vmatpush1.msra.mxu0 0.0
        %1395 = vmatprep.subr.mxu0 0.0
        %1396 = vmatpush1.msra.mxu0 0.0
        %1397 = vmatprep.subr.mxu0 0.0
        %1398 = vmatpush1.msra.mxu0 0.0
        %1399 = vmatprep.subr.mxu0 0.0
        %1400 = vmatpush1.msra.mxu0 0.0
        %1401 = vmatprep.subr.mxu0 0.0
        %1402 = vmatpush1.msra.mxu0 0.0
        %1403 = vmatprep.subr.mxu0 0.0
        %1404 = vmatpush1.msra.mxu0 0.0
        %1405 = vmatprep.subr.mxu0 0.0
        %1406 = vmatpush1.msra.mxu0 0.0
        %1407 = vmatprep.subr.mxu0 0.0
        %1408 = vmatpush1.msra.mxu0 0.0
        %1409 = vmatprep.mubr.f32.mxu0 0.0
        %1410 = vmatmul.mubr.f32.gmra.mrb[0].mxu0 %v1343
        %v1411 = vpop.f32.mrb[0].mxu0
        %v1412 = vadd.f32 0.0, %v1411
        %v1413 = vpop.f32.mrb[0].mxu0
        %1414 = vdwg.mxu0
        %v1415 = vld [vmem:[%s7] sm:$0xff]
        %v1416 = vld [vmem:[%s7 + $0x8] sm:$0xff]
        %v1417 = vld [vmem:[%s7 + $0x10] sm:$0xff]
        %v1418 = vld [vmem:[%s7 + $0x18] sm:$0xff]
        %v1419 = vld [vmem:[%s7 + $0x20] sm:$0xff]
        %v1420 = vld [vmem:[%s7 + $0x28] sm:$0xff]
        %v1421 = vlaneseq
        %v1422 = vshrl.u32 %v1421, 7
        %v1423 = vsub.s32 0, %v1422
        %v1424 = vrot.slane %v777, %v1423
        %v1426 = vsel %vm802, %v1412, 0
        %1428 = vmatprep.subr.mxu0 0.0
        %1429 = vmatpush1.msra.mxu0 %v1415
        %1430 = vmatprep.subr.mxu0 0.0
        %1431 = vmatpush1.msra.mxu0 %v1416
        %1432 = vmatprep.subr.mxu0 0.0
        %1433 = vmatpush1.msra.mxu0 %v1417
        %1434 = vmatprep.subr.mxu0 0.0
        %1435 = vmatpush1.msra.mxu0 %v1418
        %1436 = vmatprep.subr.mxu0 0.0
        %1437 = vmatpush1.msra.mxu0 %v1419
        %1438 = vmatprep.subr.mxu0 0.0
        %1439 = vmatpush1.msra.mxu0 %v1420
        %1440 = vmatprep.subr.mxu0 0.0
        %1441 = vmatpush1.msra.mxu0 0.0
        %1442 = vmatprep.subr.mxu0 0.0
        %1443 = vmatpush1.msra.mxu0 0.0
        %1444 = vmatprep.subr.mxu0 0.0
        %1445 = vmatpush1.msra.mxu0 0.0
        %1446 = vmatprep.subr.mxu0 0.0
        %1447 = vmatpush1.msra.mxu0 0.0
        %1448 = vmatprep.subr.mxu0 0.0
        %1449 = vmatpush1.msra.mxu0 0.0
        %1450 = vmatprep.subr.mxu0 0.0
        %1451 = vmatpush1.msra.mxu0 0.0
        %1452 = vmatprep.subr.mxu0 0.0
        %1453 = vmatpush1.msra.mxu0 0.0
        %1454 = vmatprep.subr.mxu0 0.0
        %1455 = vmatpush1.msra.mxu0 0.0
        %1456 = vmatprep.subr.mxu0 0.0
        %1457 = vmatpush1.msra.mxu0 0.0
        %1458 = vmatprep.subr.mxu0 0.0
        %1459 = vmatpush1.msra.mxu0 0.0
        %1460 = vmatprep.subr.mxu0 0.0
        %1461 = vmatpush1.msra.mxu0 0.0
        %1462 = vmatprep.subr.mxu0 0.0
        %1463 = vmatpush1.msra.mxu0 0.0
        %1464 = vmatprep.subr.mxu0 0.0
        %1465 = vmatpush1.msra.mxu0 0.0
        %1466 = vmatprep.subr.mxu0 0.0
        %1467 = vmatpush1.msra.mxu0 0.0
        %1468 = vmatprep.subr.mxu0 0.0
        %1469 = vmatpush1.msra.mxu0 0.0
        %1470 = vmatprep.subr.mxu0 0.0
        %1471 = vmatpush1.msra.mxu0 0.0
        %1472 = vmatprep.subr.mxu0 0.0
        %1473 = vmatpush1.msra.mxu0 0.0
        %1474 = vmatprep.subr.mxu0 0.0
        %1475 = vmatpush1.msra.mxu0 0.0
        %1476 = vmatprep.subr.mxu0 0.0
        %1477 = vmatpush1.msra.mxu0 0.0
        %1478 = vmatprep.subr.mxu0 0.0
        %1479 = vmatpush1.msra.mxu0 0.0
        %1480 = vmatprep.subr.mxu0 0.0
        %1481 = vmatpush1.msra.mxu0 0.0
        %1482 = vmatprep.subr.mxu0 0.0
        %1483 = vmatpush1.msra.mxu0 0.0
        %1484 = vmatprep.subr.mxu0 0.0
        %1485 = vmatpush1.msra.mxu0 0.0
        %1486 = vmatprep.subr.mxu0 0.0
        %1487 = vmatpush1.msra.mxu0 0.0
        %1488 = vmatprep.subr.mxu0 0.0
        %1489 = vmatpush1.msra.mxu0 0.0
        %1490 = vmatprep.subr.mxu0 0.0
        %1491 = vmatpush1.msra.mxu0 0.0
        %1492 = vmatprep.mubr.f32.mxu0 0.0
        %1493 = vmatmul.mubr.f32.gmra.mrb[0].mxu0 %v1426
        %v1494 = vpop.f32.mrb[0].mxu0
        %v1495 = vadd.f32 %v1424, %v1494
        %v1496 = vpop.f32.mrb[0].mxu0
        %1497 = vdwg.mxu0
        %v1498 = vadd.f32 %v776, %v1495
        %v1499 = vsel %vm802, %v1498, 0.0
        %1500 = vadd.xlane.f32.xlu0 %v1499
        %v1501 = vpop.xlane.xlu0 %1500
        %v1502 = vrcp.pop 48.0
        %v1503 = vmul.f32 %v1501, %v1502
        %v1504 = vsub.f32 %v1498, %v1503
        %v1505 = vmul.f32 %v1504, %v1504
        %v1506 = vsel %vm802, %v1505, 0.0
        %1507 = vadd.xlane.f32.xlu0 %v1506
        %v1508 = vpop.xlane.xlu0 %1507
        %v1509 = vmul.f32 %v1508, %v1502
        %v1510 = vadd.f32 %v1509, 1e-05
        %v1511 = vrsqrt.pop %v1510
        %v1512 = vmul.f32 %v1504, %v1511
        %v1513 = vlaneseq
        %v1514 = vshrl.u32 %v1513, 7
        %v1515 = vsub.s32 2, %v1514
        %v1516 = vrot.slane %v777, %v1515
        %v1517 = vmul.f32 %v1512, %v1516
        %v1518 = vlaneseq
        %v1519 = vshrl.u32 %v1518, 7
        %v1520 = vsub.s32 3, %v1519
        %v1521 = vrot.slane %v777, %v1520
        %v1522 = vadd.f32 %v1517, %v1521
        %v1523 = vld [vmem:[%s8] sm:$0xff]
        %v1524 = vld [vmem:[%s8 + $0x8] sm:$0xff]
        %v1525 = vld [vmem:[%s8 + $0x10] sm:$0xff]
        %v1526 = vld [vmem:[%s8 + $0x18] sm:$0xff]
        %v1527 = vld [vmem:[%s8 + $0x20] sm:$0xff]
        %v1528 = vld [vmem:[%s8 + $0x28] sm:$0xff]
        %v1529 = vld [vmem:[%s9] sm:$0x1]
        %v1531 = vlaneseq
        %v1532 = vshrl.u32 %v1531, 7
        %v1533 = vsub.s32 0, %v1532
        %v1534 = vrot.slane %v1529, %v1533
        %v1537 = vsel %vm802, %v1522, 0
        %1539 = vmatprep.subr.mxu0 0.0
        %1540 = vmatpush1.msra.mxu0 %v1523
        %1541 = vmatprep.subr.mxu0 0.0
        %1542 = vmatpush1.msra.mxu0 %v1524
        %1543 = vmatprep.subr.mxu0 0.0
        %1544 = vmatpush1.msra.mxu0 %v1525
        %1545 = vmatprep.subr.mxu0 0.0
        %1546 = vmatpush1.msra.mxu0 %v1526
        %1547 = vmatprep.subr.mxu0 0.0
        %1548 = vmatpush1.msra.mxu0 %v1527
        %1549 = vmatprep.subr.mxu0 0.0
        %1550 = vmatpush1.msra.mxu0 %v1528
        %1551 = vmatprep.subr.mxu0 0.0
        %1552 = vmatpush1.msra.mxu0 0.0
        %1553 = vmatprep.subr.mxu0 0.0
        %1554 = vmatpush1.msra.mxu0 0.0
        %1555 = vmatprep.subr.mxu0 0.0
        %1556 = vmatpush1.msra.mxu0 0.0
        %1557 = vmatprep.subr.mxu0 0.0
        %1558 = vmatpush1.msra.mxu0 0.0
        %1559 = vmatprep.subr.mxu0 0.0
        %1560 = vmatpush1.msra.mxu0 0.0
        %1561 = vmatprep.subr.mxu0 0.0
        %1562 = vmatpush1.msra.mxu0 0.0
        %1563 = vmatprep.subr.mxu0 0.0
        %1564 = vmatpush1.msra.mxu0 0.0
        %1565 = vmatprep.subr.mxu0 0.0
        %1566 = vmatpush1.msra.mxu0 0.0
        %1567 = vmatprep.subr.mxu0 0.0
        %1568 = vmatpush1.msra.mxu0 0.0
        %1569 = vmatprep.subr.mxu0 0.0
        %1570 = vmatpush1.msra.mxu0 0.0
        %1571 = vmatprep.subr.mxu0 0.0
        %1572 = vmatpush1.msra.mxu0 0.0
        %1573 = vmatprep.subr.mxu0 0.0
        %1574 = vmatpush1.msra.mxu0 0.0
        %1575 = vmatprep.subr.mxu0 0.0
        %1576 = vmatpush1.msra.mxu0 0.0
        %1577 = vmatprep.subr.mxu0 0.0
        %1578 = vmatpush1.msra.mxu0 0.0
        %1579 = vmatprep.subr.mxu0 0.0
        %1580 = vmatpush1.msra.mxu0 0.0
        %1581 = vmatprep.subr.mxu0 0.0
        %1582 = vmatpush1.msra.mxu0 0.0
        %1583 = vmatprep.subr.mxu0 0.0
        %1584 = vmatpush1.msra.mxu0 0.0
        %1585 = vmatprep.subr.mxu0 0.0
        %1586 = vmatpush1.msra.mxu0 0.0
        %1587 = vmatprep.subr.mxu0 0.0
        %1588 = vmatpush1.msra.mxu0 0.0
        %1589 = vmatprep.subr.mxu0 0.0
        %1590 = vmatpush1.msra.mxu0 0.0
        %1591 = vmatprep.subr.mxu0 0.0
        %1592 = vmatpush1.msra.mxu0 0.0
        %1593 = vmatprep.subr.mxu0 0.0
        %1594 = vmatpush1.msra.mxu0 0.0
        %1595 = vmatprep.subr.mxu0 0.0
        %1596 = vmatpush1.msra.mxu0 0.0
        %1597 = vmatprep.subr.mxu0 0.0
        %1598 = vmatpush1.msra.mxu0 0.0
        %1599 = vmatprep.subr.mxu0 0.0
        %1600 = vmatpush1.msra.mxu0 0.0
        %1601 = vmatprep.subr.mxu0 0.0
        %1602 = vmatpush1.msra.mxu0 0.0
        %1603 = vmatprep.mubr.f32.mxu0 0.0
        %1604 = vmatmul.mubr.f32.gmra.mrb[0].mxu0 %v1537
        %v1605 = vpop.f32.mrb[0].mxu0
        %v1606 = vadd.f32 %v1534, %v1605
        %v1607 = vpop.f32.mrb[0].mxu0
        %1608 = vdwg.mxu0
        %v1609 = vmax.f32 %v1606, 0.0
        %v1610 = vld [vmem:[%s10] sm:$0xff]
        %v1611 = vld [vmem:[%s10 + $0x8] sm:$0xff]
        %v1612 = vld [vmem:[%s10 + $0x10] sm:$0xff]
        %v1613 = vld [vmem:[%s10 + $0x18] sm:$0xff]
        %v1614 = vld [vmem:[%s10 + $0x20] sm:$0xff]
        %v1615 = vld [vmem:[%s10 + $0x28] sm:$0xff]
        %v1616 = vld [vmem:[%s10 + $0x30] sm:$0xff]
        %v1617 = vld [vmem:[%s10 + $0x38] sm:$0xff]
        %v1618 = vlaneseq
        %v1619 = vshrl.u32 %v1618, 7
        %v1620 = vsub.s32 1, %v1619
        %v1621 = vrot.slane %v777, %v1620
        %v1623 = vsel %vm1131, %v1609, 0
        %1625 = vmatprep.subr.mxu0 0.0
        %1626 = vmatpush1.msra.mxu0 %v1610
        %1627 = vmatprep.subr.mxu0 0.0
        %1628 = vmatpush1.msra.mxu0 %v1611
        %1629 = vmatprep.subr.mxu0 0.0
        %1630 = vmatpush1.msra.mxu0 %v1612
        %1631 = vmatprep.subr.mxu0 0.0
        %1632 = vmatpush1.msra.mxu0 %v1613
        %1633 = vmatprep.subr.mxu0 0.0
        %1634 = vmatpush1.msra.mxu0 %v1614
        %1635 = vmatprep.subr.mxu0 0.0
        %1636 = vmatpush1.msra.mxu0 %v1615
        %1637 = vmatprep.subr.mxu0 0.0
        %1638 = vmatpush1.msra.mxu0 %v1616
        %1639 = vmatprep.subr.mxu0 0.0
        %1640 = vmatpush1.msra.mxu0 %v1617
        %1641 = vmatprep.subr.mxu0 0.0
        %1642 = vmatpush1.msra.mxu0 0.0
        %1643 = vmatprep.subr.mxu0 0.0
        %1644 = vmatpush1.msra.mxu0 0.0
        %1645 = vmatprep.subr.mxu0 0.0
        %1646 = vmatpush1.msra.mxu0 0.0
        %1647 = vmatprep.subr.mxu0 0.0
        %1648 = vmatpush1.msra.mxu0 0.0
        %1649 = vmatprep.subr.mxu0 0.0
        %1650 = vmatpush1.msra.mxu0 0.0
        %1651 = vmatprep.subr.mxu0 0.0
        %1652 = vmatpush1.msra.mxu0 0.0
        %1653 = vmatprep.subr.mxu0 0.0
        %1654 = vmatpush1.msra.mxu0 0.0
        %1655 = vmatprep.subr.mxu0 0.0
        %1656 = vmatpush1.msra.mxu0 0.0
        %1657 = vmatprep.subr.mxu0 0.0
        %1658 = vmatpush1.msra.mxu0 0.0
        %1659 = vmatprep.subr.mxu0 0.0
        %1660 = vmatpush1.msra.mxu0 0.0
        %1661 = vmatprep.subr.mxu0 0.0
        %1662 = vmatpush1.msra.mxu0 0.0
        %1663 = vmatprep.subr.mxu0 0.0
        %1664 = vmatpush1.msra.mxu0 0.0
        %1665 = vmatprep.subr.mxu0 0.0
        %1666 = vmatpush1.msra.mxu0 0.0
        %1667 = vmatprep.subr.mxu0 0.0
        %1668 = vmatpush1.msra.mxu0 0.0
        %1669 = vmatprep.subr.mxu0 0.0
        %1670 = vmatpush1.msra.mxu0 0.0
        %1671 = vmatprep.subr.mxu0 0.0
        %1672 = vmatpush1.msra.mxu0 0.0
        %1673 = vmatprep.subr.mxu0 0.0
        %1674 = vmatpush1.msra.mxu0 0.0
        %1675 = vmatprep.subr.mxu0 0.0
        %1676 = vmatpush1.msra.mxu0 0.0
        %1677 = vmatprep.subr.mxu0 0.0
        %1678 = vmatpush1.msra.mxu0 0.0
        %1679 = vmatprep.subr.mxu0 0.0
        %1680 = vmatpush1.msra.mxu0 0.0
        %1681 = vmatprep.subr.mxu0 0.0
        %1682 = vmatpush1.msra.mxu0 0.0
        %1683 = vmatprep.subr.mxu0 0.0
        %1684 = vmatpush1.msra.mxu0 0.0
        %1685 = vmatprep.subr.mxu0 0.0
        %1686 = vmatpush1.msra.mxu0 0.0
        %1687 = vmatprep.subr.mxu0 0.0
        %1688 = vmatpush1.msra.mxu0 0.0
        %1689 = vmatprep.mubr.f32.mxu0 0.0
        %1690 = vmatmul.mubr.f32.gmra.mrb[0].mxu0 %v1623
        %v1691 = vpop.f32.mrb[0].mxu0
        %v1692 = vadd.f32 %v1621, %v1691
        %v1693 = vpop.f32.mrb[0].mxu0
        %1694 = vdwg.mxu0
        %v1695 = vadd.f32 %v1522, %v1692
        %v1696 = vsel %vm802, %v1695, 0.0
        %1697 = vadd.xlane.f32.xlu0 %v1696
        %v1698 = vpop.xlane.xlu0 %1697
        %v1699 = vmul.f32 %v1698, %v1502
        %v1700 = vsub.f32 %v1695, %v1699
        %v1701 = vmul.f32 %v1700, %v1700
        %v1702 = vsel %vm802, %v1701, 0.0
        %1703 = vadd.xlane.f32.xlu0 %v1702
        %v1704 = vpop.xlane.xlu0 %1703
        %v1705 = vmul.f32 %v1704, %v1502
        %v1706 = vadd.f32 %v1705, 1e-05
        %v1707 = vrsqrt.pop %v1706
        %v1708 = vmul.f32 %v1700, %v1707
        %v1709 = vlaneseq
        %v1710 = vshrl.u32 %v1709, 7
        %v1711 = vsub.s32 4, %v1710
        %v1712 = vrot.slane %v777, %v1711
        %v1713 = vmul.f32 %v1708, %v1712
        %v1714 = vlaneseq
        %v1715 = vshrl.u32 %v1714, 7
        %v1716 = vsub.s32 5, %v1715
        %v1717 = vrot.slane %v777, %v1716
        %v1718 = vadd.f32 %v1713, %v1717
        %s1719 = scalar_lea.vmem %s11, 8
        %v1720 = vld [vmem:[%s1719] sm:$0x3f]
        %s1721 = scalar_lea.vmem %s5, 96
        %v1722 = vld [vmem:[%s1721] sm:$0xff]
        %v1723 = vld [vmem:[%s1721 + $0x8] sm:$0xff]
        %v1724 = vld [vmem:[%s1721 + $0x10] sm:$0xff]
        %v1725 = vld [vmem:[%s1721 + $0x18] sm:$0xff]
        %v1726 = vld [vmem:[%s1721 + $0x20] sm:$0xff]
        %v1727 = vld [vmem:[%s1721 + $0x28] sm:$0xff]
        %v1728 = vld [vmem:[%s1721 + $0x30] sm:$0xff]
        %v1729 = vld [vmem:[%s1721 + $0x38] sm:$0xff]
        %v1730 = vld [vmem:[%s1721 + $0x40] sm:$0xff]
        %v1731 = vld [vmem:[%s1721 + $0x48] sm:$0xff]
        %v1732 = vld [vmem:[%s1721 + $0x50] sm:$0xff]
        %v1733 = vld [vmem:[%s1721 + $0x58] sm:$0xff]
        %s1734 = scalar_lea.vmem [#allocation11], 2
        %v1735 = vld [vmem:[%s1734] sm:$0x3]
        %v1737 = vlaneseq
        %v1738 = vshrl.u32 %v1737, 7
        %v1739 = vsub.s32 0, %v1738
        %v1740 = vrot.slane %v1735, %v1739
        %v1741 = vlaneseq
        %v1742 = vshrl.u32 %v1741, 7
        %v1743 = vsub.s32 1, %v1742
        %v1744 = vrot.slane %v1735, %v1743
        %v1748 = vsel %vm802, %v1718, 0
        %1750 = vmatprep.subr.mxu0 %v1723
        %1751 = vmatpush1.msra.mxu0 %v1722
        %1752 = vmatprep.subr.mxu0 %v1725
        %1753 = vmatpush1.msra.mxu0 %v1724
        %1754 = vmatprep.subr.mxu0 %v1727
        %1755 = vmatpush1.msra.mxu0 %v1726
        %1756 = vmatprep.subr.mxu0 %v1729
        %1757 = vmatpush1.msra.mxu0 %v1728
        %1758 = vmatprep.subr.mxu0 %v1731
        %1759 = vmatpush1.msra.mxu0 %v1730
        %1760 = vmatprep.subr.mxu0 %v1733
        %1761 = vmatpush1.msra.mxu0 %v1732
        %1762 = vmatprep.subr.mxu0 0.0
        %1763 = vmatpush1.msra.mxu0 0.0
        %1764 = vmatprep.subr.mxu0 0.0
        %1765 = vmatpush1.msra.mxu0 0.0
        %1766 = vmatprep.subr.mxu0 0.0
        %1767 = vmatpush1.msra.mxu0 0.0
        %1768 = vmatprep.subr.mxu0 0.0
        %1769 = vmatpush1.msra.mxu0 0.0
        %1770 = vmatprep.subr.mxu0 0.0
        %1771 = vmatpush1.msra.mxu0 0.0
        %1772 = vmatprep.subr.mxu0 0.0
        %1773 = vmatpush1.msra.mxu0 0.0
        %1774 = vmatprep.subr.mxu0 0.0
        %1775 = vmatpush1.msra.mxu0 0.0
        %1776 = vmatprep.subr.mxu0 0.0
        %1777 = vmatpush1.msra.mxu0 0.0
        %1778 = vmatprep.subr.mxu0 0.0
        %1779 = vmatpush1.msra.mxu0 0.0
        %1780 = vmatprep.subr.mxu0 0.0
        %1781 = vmatpush1.msra.mxu0 0.0
        %1782 = vmatprep.subr.mxu0 0.0
        %1783 = vmatpush1.msra.mxu0 0.0
        %1784 = vmatprep.subr.mxu0 0.0
        %1785 = vmatpush1.msra.mxu0 0.0
        %1786 = vmatprep.subr.mxu0 0.0
        %1787 = vmatpush1.msra.mxu0 0.0
        %1788 = vmatprep.subr.mxu0 0.0
        %1789 = vmatpush1.msra.mxu0 0.0
        %1790 = vmatprep.subr.mxu0 0.0
        %1791 = vmatpush1.msra.mxu0 0.0
        %1792 = vmatprep.subr.mxu0 0.0
        %1793 = vmatpush1.msra.mxu0 0.0
        %1794 = vmatprep.subr.mxu0 0.0
        %1795 = vmatpush1.msra.mxu0 0.0
        %1796 = vmatprep.subr.mxu0 0.0
        %1797 = vmatpush1.msra.mxu0 0.0
        %1798 = vmatprep.subr.mxu0 0.0
        %1799 = vmatpush1.msra.mxu0 0.0
        %1800 = vmatprep.subr.mxu0 0.0
        %1801 = vmatpush1.msra.mxu0 0.0
        %1802 = vmatprep.subr.mxu0 0.0
        %1803 = vmatpush1.msra.mxu0 0.0
        %1804 = vmatprep.subr.mxu0 0.0
        %1805 = vmatpush1.msra.mxu0 0.0
        %1806 = vmatprep.subr.mxu0 0.0
        %1807 = vmatpush1.msra.mxu0 0.0
        %1808 = vmatprep.subr.mxu0 0.0
        %1809 = vmatpush1.msra.mxu0 0.0
        %1810 = vmatprep.subr.mxu0 0.0
        %1811 = vmatpush1.msra.mxu0 0.0
        %1812 = vmatprep.subr.mxu0 0.0
        %1813 = vmatpush1.msra.mxu0 0.0
        %1814 = vmatprep.mubr.f32.mxu0 0.0
        %1815 = vmatmul.mubr.f32.gmra.mrb[0].mxu0 %v1748
        %v1816 = vpop.f32.mrb[0].mxu0
        %v1817 = vadd.f32 %v1740, %v1816
        %v1818 = vpop.f32.mrb[0].mxu0
        %v1819 = vadd.f32 %v1744, %v1818
        %1820 = vdwg.mxu0
        %1822 = vrot.lane.b32.xlu0 %v1817, 80
        %v1823 = vpop.permute.xlu0 %1822
        %1825 = vmatprep.subr.mxu0 0.0
        %1826 = vmatpush1.msra.mxu0 %v1823
        %1827 = vmatprep.subr.mxu0 0.0
        %1828 = vmatpush1.msra.mxu0 0.0
        %1829 = vmatprep.subr.mxu0 0.0
        %1830 = vmatpush1.msra.mxu0 0.0
        %1831 = vmatprep.subr.mxu0 0.0
        %1832 = vmatpush1.msra.mxu0 0.0
        %1833 = vmatprep.subr.mxu0 0.0
        %1834 = vmatpush1.msra.mxu0 0.0
        %1835 = vmatprep.subr.mxu0 0.0
        %1836 = vmatpush1.msra.mxu0 0.0
        %1837 = vmatprep.subr.mxu0 0.0
        %1838 = vmatpush1.msra.mxu0 0.0
        %1839 = vmatprep.subr.mxu0 0.0
        %1840 = vmatpush1.msra.mxu0 0.0
        %1841 = vmatprep.subr.mxu0 0.0
        %1842 = vmatpush1.msra.mxu0 0.0
        %1843 = vmatprep.subr.mxu0 0.0
        %1844 = vmatpush1.msra.mxu0 0.0
        %1845 = vmatprep.subr.mxu0 0.0
        %1846 = vmatpush1.msra.mxu0 0.0
        %1847 = vmatprep.subr.mxu0 0.0
        %1848 = vmatpush1.msra.mxu0 0.0
        %1849 = vmatprep.subr.mxu0 0.0
        %1850 = vmatpush1.msra.mxu0 0.0
        %1851 = vmatprep.subr.mxu0 0.0
        %1852 = vmatpush1.msra.mxu0 0.0
        %1853 = vmatprep.subr.mxu0 0.0
        %1854 = vmatpush1.msra.mxu0 0.0
        %1855 = vmatprep.subr.mxu0 0.0
        %1856 = vmatpush1.msra.mxu0 0.0
        %1857 = vmatprep.subr.mxu0 0.0
        %1858 = vmatpush1.msra.mxu0 0.0
        %1859 = vmatprep.subr.mxu0 0.0
        %1860 = vmatpush1.msra.mxu0 0.0
        %1861 = vmatprep.subr.mxu0 0.0
        %1862 = vmatpush1.msra.mxu0 0.0
        %1863 = vmatprep.subr.mxu0 0.0
        %1864 = vmatpush1.msra.mxu0 0.0
        %1865 = vmatprep.subr.mxu0 0.0
        %1866 = vmatpush1.msra.mxu0 0.0
        %1867 = vmatprep.subr.mxu0 0.0
        %1868 = vmatpush1.msra.mxu0 0.0
        %1869 = vmatprep.subr.mxu0 0.0
        %1870 = vmatpush1.msra.mxu0 0.0
        %1871 = vmatprep.subr.mxu0 0.0
        %1872 = vmatpush1.msra.mxu0 0.0
        %1873 = vmatprep.subr.mxu0 0.0
        %1874 = vmatpush1.msra.mxu0 0.0
        %1875 = vmatprep.subr.mxu0 0.0
        %1876 = vmatpush1.msra.mxu0 0.0
        %1877 = vmatprep.subr.mxu0 0.0
        %1878 = vmatpush1.msra.mxu0 0.0
        %1879 = vmatprep.subr.mxu0 0.0
        %1880 = vmatpush1.msra.mxu0 0.0
        %1881 = vmatprep.subr.mxu0 0.0
        %1882 = vmatpush1.msra.mxu0 0.0
        %1883 = vmatprep.subr.mxu0 0.0
        %1884 = vmatpush1.msra.mxu0 0.0
        %1885 = vmatprep.subr.mxu0 0.0
        %1886 = vmatpush1.msra.mxu0 0.0
        %1887 = vmatprep.subr.mxu0 0.0
        %1888 = vmatpush1.msra.mxu0 0.0
        %1889 = vmatprep.mubr.f32.mxu0 0.0
        %1890 = vmatmul.mubr.f32.gmra.mrb[0].mxu0 %v891
        %v1891 = vpop.f32.mrb[0].mxu0
        %v1892 = vadd.f32 0.0, %v1891
        %v1893 = vpop.f32.mrb[0].mxu0
        %1894 = vmatprep.mubr.f32.mxu0 0.0
        %1895 = vmatmul.mubr.f32.gmra.mrb[0].mxu0 %v894
        %v1896 = vpop.f32.mrb[0].mxu0
        %v1897 = vadd.f32 0.0, %v1896
        %v1898 = vpop.f32.mrb[0].mxu0
        %1899 = vmatprep.mubr.f32.mxu0 0.0
        %1900 = vmatmul.mubr.f32.gmra.mrb[0].mxu0 %v897
        %v1901 = vpop.f32.mrb[0].mxu0
        %v1902 = vadd.f32 0.0, %v1901
        %v1903 = vpop.f32.mrb[0].mxu0
        %1904 = vmatprep.mubr.f32.mxu0 0.0
        %1905 = vmatmul.mubr.f32.gmra.mrb[0].mxu0 %v900
        %v1906 = vpop.f32.mrb[0].mxu0
        %v1907 = vadd.f32 0.0, %v1906
        %v1908 = vpop.f32.mrb[0].mxu0
        %1909 = vmatprep.mubr.f32.mxu0 0.0
        %1910 = vmatmul.mubr.f32.gmra.mrb[0].mxu0 %v903
        %v1911 = vpop.f32.mrb[0].mxu0
        %v1912 = vadd.f32 0.0, %v1911
        %v1913 = vpop.f32.mrb[0].mxu0
        %1914 = vmatprep.mubr.f32.mxu0 0.0
        %1915 = vmatmul.mubr.f32.gmra.mrb[0].mxu0 %v906
        %v1916 = vpop.f32.mrb[0].mxu0
        %v1917 = vadd.f32 0.0, %v1916
        %v1918 = vpop.f32.mrb[0].mxu0
        %1919 = vmatprep.mubr.f32.mxu0 0.0
        %1920 = vmatmul.mubr.f32.gmra.mrb[0].mxu0 %v909
        %v1921 = vpop.f32.mrb[0].mxu0
        %v1922 = vadd.f32 0.0, %v1921
        %v1923 = vpop.f32.mrb[0].mxu0
        %1924 = vmatprep.mubr.f32.mxu0 0.0
        %1925 = vmatmul.mubr.f32.gmra.mrb[0].mxu0 %v912
        %v1926 = vpop.f32.mrb[0].mxu0
        %v1927 = vadd.f32 0.0, %v1926
        %v1928 = vpop.f32.mrb[0].mxu0
        %1929 = vdwg.mxu0
        %v1930 = vmul.f32 %v1892, %v1019
        %v1931 = vmul.f32 %v1897, %v1020
        %v1932 = vmul.f32 %v1902, %v1021
        %v1933 = vmul.f32 %v1907, %v1022
        %v1934 = vmul.f32 %v1912, %v1023
        %v1935 = vmul.f32 %v1917, %v1024
        %v1936 = vmul.f32 %v1922, %v1025
        %v1937 = vmul.f32 %v1927, %v1026
        %v1938 = vsel %vm802, %v1817, 0
        %v1941 = vsel %vm802, %v1930, 0
        %v1944 = vsel %vm802, %v1931, 0
        %v1947 = vsel %vm802, %v1932, 0
        %v1950 = vsel %vm802, %v1933, 0
        %v1953 = vsel %vm802, %v1934, 0
        %v1956 = vsel %vm802, %v1935, 0
        %v1959 = vsel %vm802, %v1936, 0
        %v1962 = vsel %vm802, %v1937, 0
        %1964 = vmatprep.subr.mxu0 0.0
        %1965 = vmatpush1.xpose.msra.mxu0 %v1941
        %1966 = vmatprep.subr.mxu0 0.0
        %1967 = vmatpush1.xpose.msra.mxu0 %v1944
        %1968 = vmatprep.subr.mxu0 0.0
        %1969 = vmatpush1.xpose.msra.mxu0 %v1947
        %1970 = vmatprep.subr.mxu0 0.0
        %1971 = vmatpush1.xpose.msra.mxu0 %v1950
        %1972 = vmatprep.subr.mxu0 0.0
        %1973 = vmatpush1.xpose.msra.mxu0 %v1953
        %1974 = vmatprep.subr.mxu0 0.0
        %1975 = vmatpush1.xpose.msra.mxu0 %v1956
        %1976 = vmatprep.subr.mxu0 0.0
        %1977 = vmatpush1.xpose.msra.mxu0 %v1959
        %1978 = vmatprep.subr.mxu0 0.0
        %1979 = vmatpush1.xpose.msra.mxu0 %v1962
        %1980 = vmatprep.subr.mxu0 0.0
        %1981 = vmatpush1.xpose.msra.mxu0 0.0
        %1982 = vmatprep.subr.mxu0 0.0
        %1983 = vmatpush1.xpose.msra.mxu0 0.0
        %1984 = vmatprep.subr.mxu0 0.0
        %1985 = vmatpush1.xpose.msra.mxu0 0.0
        %1986 = vmatprep.subr.mxu0 0.0
        %1987 = vmatpush1.xpose.msra.mxu0 0.0
        %1988 = vmatprep.subr.mxu0 0.0
        %1989 = vmatpush1.xpose.msra.mxu0 0.0
        %1990 = vmatprep.subr.mxu0 0.0
        %1991 = vmatpush1.xpose.msra.mxu0 0.0
        %1992 = vmatprep.subr.mxu0 0.0
        %1993 = vmatpush1.xpose.msra.mxu0 0.0
        %1994 = vmatprep.subr.mxu0 0.0
        %1995 = vmatpush1.xpose.msra.mxu0 0.0
        %1996 = vmatprep.subr.mxu0 0.0
        %1997 = vmatpush1.xpose.msra.mxu0 0.0
        %1998 = vmatprep.subr.mxu0 0.0
        %1999 = vmatpush1.xpose.msra.mxu0 0.0
        %2000 = vmatprep.subr.mxu0 0.0
        %2001 = vmatpush1.xpose.msra.mxu0 0.0
        %2002 = vmatprep.subr.mxu0 0.0
        %2003 = vmatpush1.xpose.msra.mxu0 0.0
        %2004 = vmatprep.subr.mxu0 0.0
        %2005 = vmatpush1.xpose.msra.mxu0 0.0
        %2006 = vmatprep.subr.mxu0 0.0
        %2007 = vmatpush1.xpose.msra.mxu0 0.0
        %2008 = vmatprep.subr.mxu0 0.0
        %2009 = vmatpush1.xpose.msra.mxu0 0.0
        %2010 = vmatprep.subr.mxu0 0.0
        %2011 = vmatpush1.xpose.msra.mxu0 0.0
        %2012 = vmatprep.subr.mxu0 0.0
        %2013 = vmatpush1.xpose.msra.mxu0 0.0
        %2014 = vmatprep.subr.mxu0 0.0
        %2015 = vmatpush1.xpose.msra.mxu0 0.0
        %2016 = vmatprep.subr.mxu0 0.0
        %2017 = vmatpush1.xpose.msra.mxu0 0.0
        %2018 = vmatprep.subr.mxu0 0.0
        %2019 = vmatpush1.xpose.msra.mxu0 0.0
        %2020 = vmatprep.subr.mxu0 0.0
        %2021 = vmatpush1.xpose.msra.mxu0 0.0
        %2022 = vmatprep.subr.mxu0 0.0
        %2023 = vmatpush1.xpose.msra.mxu0 0.0
        %2024 = vmatprep.subr.mxu0 0.0
        %2025 = vmatpush1.xpose.msra.mxu0 0.0
        %2026 = vmatprep.subr.mxu0 0.0
        %2027 = vmatpush1.xpose.msra.mxu0 0.0
        %2028 = vmatprep.mubr.f32.mxu0 0.0
        %2029 = vmatmul.mubr.f32.gmra.mrb[0].mxu0 %v1938
        %v2030 = vpop.f32.mrb[0].mxu0
        %v2031 = vadd.f32 0.0, %v2030
        %v2032 = vpop.f32.mrb[0].mxu0
        %2033 = vdwg.mxu0
        %v2034 = vsel %vm1131, %v2031, -inf
        %2035 = vmax.xlane.f32.xlu0 %v2034
        %v2036 = vpop.xlane.xlu0 %2035
        %v2037 = vsub.f32 %v2031, %v2036
        %v2038 = vmul.f32 %v2037, 1.442695
        %v2039 = vpow.pop %v2038
        %v2041 = vsel %vm1131, %v2039, 0
        %2043 = vmatprep.subr.mxu0 0.0
        %2044 = vmatpush1.msra.mxu0 %v1138
        %2045 = vmatprep.subr.mxu0 0.0
        %2046 = vmatpush1.msra.mxu0 %v1139
        %2047 = vmatprep.subr.mxu0 0.0
        %2048 = vmatpush1.msra.mxu0 %v1140
        %2049 = vmatprep.subr.mxu0 0.0
        %2050 = vmatpush1.msra.mxu0 %v1141
        %2051 = vmatprep.subr.mxu0 0.0
        %2052 = vmatpush1.msra.mxu0 %v1142
        %2053 = vmatprep.subr.mxu0 0.0
        %2054 = vmatpush1.msra.mxu0 %v1143
        %2055 = vmatprep.subr.mxu0 0.0
        %2056 = vmatpush1.msra.mxu0 %v1144
        %2057 = vmatprep.subr.mxu0 0.0
        %2058 = vmatpush1.msra.mxu0 %v1145
        %2059 = vmatprep.subr.mxu0 0.0
        %2060 = vmatpush1.msra.mxu0 0.0
        %2061 = vmatprep.subr.mxu0 0.0
        %2062 = vmatpush1.msra.mxu0 0.0
        %2063 = vmatprep.subr.mxu0 0.0
        %2064 = vmatpush1.msra.mxu0 0.0
        %2065 = vmatprep.subr.mxu0 0.0
        %2066 = vmatpush1.msra.mxu0 0.0
        %2067 = vmatprep.subr.mxu0 0.0
        %2068 = vmatpush1.msra.mxu0 0.0
        %2069 = vmatprep.subr.mxu0 0.0
        %2070 = vmatpush1.msra.mxu0 0.0
        %2071 = vmatprep.subr.mxu0 0.0
        %2072 = vmatpush1.msra.mxu0 0.0
        %2073 = vmatprep.subr.mxu0 0.0
        %2074 = vmatpush1.msra.mxu0 0.0
        %2075 = vmatprep.subr.mxu0 0.0
        %2076 = vmatpush1.msra.mxu0 0.0
        %2077 = vmatprep.subr.mxu0 0.0
        %2078 = vmatpush1.msra.mxu0 0.0
        %2079 = vmatprep.subr.mxu0 0.0
        %2080 = vmatpush1.msra.mxu0 0.0
        %2081 = vmatprep.subr.mxu0 0.0
        %2082 = vmatpush1.msra.mxu0 0.0
        %2083 = vmatprep.subr.mxu0 0.0
        %2084 = vmatpush1.msra.mxu0 0.0
        %2085 = vmatprep.subr.mxu0 0.0
        %2086 = vmatpush1.msra.mxu0 0.0
        %2087 = vmatprep.subr.mxu0 0.0
        %2088 = vmatpush1.msra.mxu0 0.0
        %2089 = vmatprep.subr.mxu0 0.0
        %2090 = vmatpush1.msra.mxu0 0.0
        %2091 = vmatprep.subr.mxu0 0.0
        %2092 = vmatpush1.msra.mxu0 0.0
        %2093 = vmatprep.subr.mxu0 0.0
        %2094 = vmatpush1.msra.mxu0 0.0
        %2095 = vmatprep.subr.mxu0 0.0
        %2096 = vmatpush1.msra.mxu0 0.0
        %2097 = vmatprep.subr.mxu0 0.0
        %2098 = vmatpush1.msra.mxu0 0.0
        %2099 = vmatprep.subr.mxu0 0.0
        %2100 = vmatpush1.msra.mxu0 0.0
        %2101 = vmatprep.subr.mxu0 0.0
        %2102 = vmatpush1.msra.mxu0 0.0
        %2103 = vmatprep.subr.mxu0 0.0
        %2104 = vmatpush1.msra.mxu0 0.0
        %2105 = vmatprep.subr.mxu0 0.0
        %2106 = vmatpush1.msra.mxu0 0.0
        %2107 = vmatprep.mubr.f32.mxu0 0.0
        %2108 = vmatmul.mubr.f32.gmra.mrb[0].mxu0 %v2041
        %v2109 = vpop.f32.mrb[0].mxu0
        %v2110 = vadd.f32 0.0, %v2109
        %v2111 = vpop.f32.mrb[0].mxu0
        %2112 = vdwg.mxu0
        %v2113 = vrcp.pop %v2110
        %v2114 = vmul.f32 %v2039, %v2113
        %2116 = vrot.lane.b32.xlu0 %v1817, 32
        %v2117 = vpop.permute.xlu0 %2116
        %2118 = vrot.lane.b32.xlu0 %v1819, 32
        %v2119 = vpop.permute.xlu0 %2118
        %v2120 = vsel %vm1226, %v2117, %v2119
        %2122 = vmatprep.subr.mxu0 0.0
        %2123 = vmatpush1.msra.mxu0 %v2120
        %2124 = vmatprep.subr.mxu0 0.0
        %2125 = vmatpush1.msra.mxu0 0.0
        %2126 = vmatprep.subr.mxu0 0.0
        %2127 = vmatpush1.msra.mxu0 0.0
        %2128 = vmatprep.subr.mxu0 0.0
        %2129 = vmatpush1.msra.mxu0 0.0
        %2130 = vmatprep.subr.mxu0 0.0
        %2131 = vmatpush1.msra.mxu0 0.0
        %2132 = vmatprep.subr.mxu0 0.0
        %2133 = vmatpush1.msra.mxu0 0.0
        %2134 = vmatprep.subr.mxu0 0.0
        %2135 = vmatpush1.msra.mxu0 0.0
        %2136 = vmatprep.subr.mxu0 0.0
        %2137 = vmatpush1.msra.mxu0 0.0
        %2138 = vmatprep.subr.mxu0 0.0
        %2139 = vmatpush1.msra.mxu0 0.0
        %2140 = vmatprep.subr.mxu0 0.0
        %2141 = vmatpush1.msra.mxu0 0.0
        %2142 = vmatprep.subr.mxu0 0.0
        %2143 = vmatpush1.msra.mxu0 0.0
        %2144 = vmatprep.subr.mxu0 0.0
        %2145 = vmatpush1.msra.mxu0 0.0
        %2146 = vmatprep.subr.mxu0 0.0
        %2147 = vmatpush1.msra.mxu0 0.0
        %2148 = vmatprep.subr.mxu0 0.0
        %2149 = vmatpush1.msra.mxu0 0.0
        %2150 = vmatprep.subr.mxu0 0.0
        %2151 = vmatpush1.msra.mxu0 0.0
        %2152 = vmatprep.subr.mxu0 0.0
        %2153 = vmatpush1.msra.mxu0 0.0
        %2154 = vmatprep.subr.mxu0 0.0
        %2155 = vmatpush1.msra.mxu0 0.0
        %2156 = vmatprep.subr.mxu0 0.0
        %2157 = vmatpush1.msra.mxu0 0.0
        %2158 = vmatprep.subr.mxu0 0.0
        %2159 = vmatpush1.msra.mxu0 0.0
        %2160 = vmatprep.subr.mxu0 0.0
        %2161 = vmatpush1.msra.mxu0 0.0
        %2162 = vmatprep.subr.mxu0 0.0
        %2163 = vmatpush1.msra.mxu0 0.0
        %2164 = vmatprep.subr.mxu0 0.0
        %2165 = vmatpush1.msra.mxu0 0.0
        %2166 = vmatprep.subr.mxu0 0.0
        %2167 = vmatpush1.msra.mxu0 0.0
        %2168 = vmatprep.subr.mxu0 0.0
        %2169 = vmatpush1.msra.mxu0 0.0
        %2170 = vmatprep.subr.mxu0 0.0
        %2171 = vmatpush1.msra.mxu0 0.0
        %2172 = vmatprep.subr.mxu0 0.0
        %2173 = vmatpush1.msra.mxu0 0.0
        %2174 = vmatprep.subr.mxu0 0.0
        %2175 = vmatpush1.msra.mxu0 0.0
        %2176 = vmatprep.subr.mxu0 0.0
        %2177 = vmatpush1.msra.mxu0 0.0
        %2178 = vmatprep.subr.mxu0 0.0
        %2179 = vmatpush1.msra.mxu0 0.0
        %2180 = vmatprep.subr.mxu0 0.0
        %2181 = vmatpush1.msra.mxu0 0.0
        %2182 = vmatprep.subr.mxu0 0.0
        %2183 = vmatpush1.msra.mxu0 0.0
        %2184 = vmatprep.subr.mxu0 0.0
        %2185 = vmatpush1.msra.mxu0 0.0
        %2186 = vmatprep.mubr.f32.mxu0 0.0
        %2187 = vmatmul.mubr.f32.gmra.mrb[0].mxu0 %v891
        %v2188 = vpop.f32.mrb[0].mxu0
        %v2189 = vadd.f32 0.0, %v2188
        %v2190 = vpop.f32.mrb[0].mxu0
        %2191 = vmatprep.mubr.f32.mxu0 0.0
        %2192 = vmatmul.mubr.f32.gmra.mrb[0].mxu0 %v894
        %v2193 = vpop.f32.mrb[0].mxu0
        %v2194 = vadd.f32 0.0, %v2193
        %v2195 = vpop.f32.mrb[0].mxu0
        %2196 = vmatprep.mubr.f32.mxu0 0.0
        %2197 = vmatmul.mubr.f32.gmra.mrb[0].mxu0 %v897
        %v2198 = vpop.f32.mrb[0].mxu0
        %v2199 = vadd.f32 0.0, %v2198
        %v2200 = vpop.f32.mrb[0].mxu0
        %2201 = vmatprep.mubr.f32.mxu0 0.0
        %2202 = vmatmul.mubr.f32.gmra.mrb[0].mxu0 %v900
        %v2203 = vpop.f32.mrb[0].mxu0
        %v2204 = vadd.f32 0.0, %v2203
        %v2205 = vpop.f32.mrb[0].mxu0
        %2206 = vmatprep.mubr.f32.mxu0 0.0
        %2207 = vmatmul.mubr.f32.gmra.mrb[0].mxu0 %v903
        %v2208 = vpop.f32.mrb[0].mxu0
        %v2209 = vadd.f32 0.0, %v2208
        %v2210 = vpop.f32.mrb[0].mxu0
        %2211 = vmatprep.mubr.f32.mxu0 0.0
        %2212 = vmatmul.mubr.f32.gmra.mrb[0].mxu0 %v906
        %v2213 = vpop.f32.mrb[0].mxu0
        %v2214 = vadd.f32 0.0, %v2213
        %v2215 = vpop.f32.mrb[0].mxu0
        %2216 = vmatprep.mubr.f32.mxu0 0.0
        %2217 = vmatmul.mubr.f32.gmra.mrb[0].mxu0 %v909
        %v2218 = vpop.f32.mrb[0].mxu0
        %v2219 = vadd.f32 0.0, %v2218
        %v2220 = vpop.f32.mrb[0].mxu0
        %2221 = vmatprep.mubr.f32.mxu0 0.0
        %2222 = vmatmul.mubr.f32.gmra.mrb[0].mxu0 %v912
        %v2223 = vpop.f32.mrb[0].mxu0
        %v2224 = vadd.f32 0.0, %v2223
        %v2225 = vpop.f32.mrb[0].mxu0
        %2226 = vdwg.mxu0
        %v2227 = vmul.f32 %v2189, %v1019
        %v2228 = vmul.f32 %v2194, %v1020
        %v2229 = vmul.f32 %v2199, %v1021
        %v2230 = vmul.f32 %v2204, %v1022
        %v2231 = vmul.f32 %v2209, %v1023
        %v2232 = vmul.f32 %v2214, %v1024
        %v2233 = vmul.f32 %v2219, %v1025
        %v2234 = vmul.f32 %v2224, %v1026
        %v2236 = vsel %vm1131, %v2114, 0
        %2238 = vmatprep.subr.mxu0 0.0
        %2239 = vmatpush1.msra.mxu0 %v2227
        %2240 = vmatprep.subr.mxu0 0.0
        %2241 = vmatpush1.msra.mxu0 %v2228
        %2242 = vmatprep.subr.mxu0 0.0
        %2243 = vmatpush1.msra.mxu0 %v2229
        %2244 = vmatprep.subr.mxu0 0.0
        %2245 = vmatpush1.msra.mxu0 %v2230
        %2246 = vmatprep.subr.mxu0 0.0
        %2247 = vmatpush1.msra.mxu0 %v2231
        %2248 = vmatprep.subr.mxu0 0.0
        %2249 = vmatpush1.msra.mxu0 %v2232
        %2250 = vmatprep.subr.mxu0 0.0
        %2251 = vmatpush1.msra.mxu0 %v2233
        %2252 = vmatprep.subr.mxu0 0.0
        %2253 = vmatpush1.msra.mxu0 %v2234
        %2254 = vmatprep.subr.mxu0 0.0
        %2255 = vmatpush1.msra.mxu0 0.0
        %2256 = vmatprep.subr.mxu0 0.0
        %2257 = vmatpush1.msra.mxu0 0.0
        %2258 = vmatprep.subr.mxu0 0.0
        %2259 = vmatpush1.msra.mxu0 0.0
        %2260 = vmatprep.subr.mxu0 0.0
        %2261 = vmatpush1.msra.mxu0 0.0
        %2262 = vmatprep.subr.mxu0 0.0
        %2263 = vmatpush1.msra.mxu0 0.0
        %2264 = vmatprep.subr.mxu0 0.0
        %2265 = vmatpush1.msra.mxu0 0.0
        %2266 = vmatprep.subr.mxu0 0.0
        %2267 = vmatpush1.msra.mxu0 0.0
        %2268 = vmatprep.subr.mxu0 0.0
        %2269 = vmatpush1.msra.mxu0 0.0
        %2270 = vmatprep.subr.mxu0 0.0
        %2271 = vmatpush1.msra.mxu0 0.0
        %2272 = vmatprep.subr.mxu0 0.0
        %2273 = vmatpush1.msra.mxu0 0.0
        %2274 = vmatprep.subr.mxu0 0.0
        %2275 = vmatpush1.msra.mxu0 0.0
        %2276 = vmatprep.subr.mxu0 0.0
        %2277 = vmatpush1.msra.mxu0 0.0
        %2278 = vmatprep.subr.mxu0 0.0
        %2279 = vmatpush1.msra.mxu0 0.0
        %2280 = vmatprep.subr.mxu0 0.0
        %2281 = vmatpush1.msra.mxu0 0.0
        %2282 = vmatprep.subr.mxu0 0.0
        %2283 = vmatpush1.msra.mxu0 0.0
        %2284 = vmatprep.subr.mxu0 0.0
        %2285 = vmatpush1.msra.mxu0 0.0
        %2286 = vmatprep.subr.mxu0 0.0
        %2287 = vmatpush1.msra.mxu0 0.0
        %2288 = vmatprep.subr.mxu0 0.0
        %2289 = vmatpush1.msra.mxu0 0.0
        %2290 = vmatprep.subr.mxu0 0.0
        %2291 = vmatpush1.msra.mxu0 0.0
        %2292 = vmatprep.subr.mxu0 0.0
        %2293 = vmatpush1.msra.mxu0 0.0
        %2294 = vmatprep.subr.mxu0 0.0
        %2295 = vmatpush1.msra.mxu0 0.0
        %2296 = vmatprep.subr.mxu0 0.0
        %2297 = vmatpush1.msra.mxu0 0.0
        %2298 = vmatprep.subr.mxu0 0.0
        %2299 = vmatpush1.msra.mxu0 0.0
        %2300 = vmatprep.subr.mxu0 0.0
        %2301 = vmatpush1.msra.mxu0 0.0
        %2302 = vmatprep.mubr.f32.mxu0 0.0
        %2303 = vmatmul.mubr.f32.gmra.mrb[0].mxu0 %v2236
        %v2304 = vpop.f32.mrb[0].mxu0
        %v2305 = vadd.f32 0.0, %v2304
        %v2306 = vpop.f32.mrb[0].mxu0
        %2307 = vdwg.mxu0
        %s2308 = scalar_lea.vmem %s7, 48
        %v2309 = vld [vmem:[%s2308] sm:$0xff]
        %v2310 = vld [vmem:[%s2308 + $0x8] sm:$0xff]
        %v2311 = vld [vmem:[%s2308 + $0x10] sm:$0xff]
        %v2312 = vld [vmem:[%s2308 + $0x18] sm:$0xff]
        %v2313 = vld [vmem:[%s2308 + $0x20] sm:$0xff]
        %v2314 = vld [vmem:[%s2308 + $0x28] sm:$0xff]
        %v2315 = vlaneseq
        %v2316 = vshrl.u32 %v2315, 7
        %v2317 = vsub.s32 0, %v2316
        %v2318 = vrot.slane %v1720, %v2317
        %v2320 = vsel %vm802, %v2305, 0
        %2322 = vmatprep.subr.mxu0 0.0
        %2323 = vmatpush1.msra.mxu0 %v2309
        %2324 = vmatprep.subr.mxu0 0.0
        %2325 = vmatpush1.msra.mxu0 %v2310
        %2326 = vmatprep.subr.mxu0 0.0
        %2327 = vmatpush1.msra.mxu0 %v2311
        %2328 = vmatprep.subr.mxu0 0.0
        %2329 = vmatpush1.msra.mxu0 %v2312
        %2330 = vmatprep.subr.mxu0 0.0
        %2331 = vmatpush1.msra.mxu0 %v2313
        %2332 = vmatprep.subr.mxu0 0.0
        %2333 = vmatpush1.msra.mxu0 %v2314
        %2334 = vmatprep.subr.mxu0 0.0
        %2335 = vmatpush1.msra.mxu0 0.0
        %2336 = vmatprep.subr.mxu0 0.0
        %2337 = vmatpush1.msra.mxu0 0.0
        %2338 = vmatprep.subr.mxu0 0.0
        %2339 = vmatpush1.msra.mxu0 0.0
        %2340 = vmatprep.subr.mxu0 0.0
        %2341 = vmatpush1.msra.mxu0 0.0
        %2342 = vmatprep.subr.mxu0 0.0
        %2343 = vmatpush1.msra.mxu0 0.0
        %2344 = vmatprep.subr.mxu0 0.0
        %2345 = vmatpush1.msra.mxu0 0.0
        %2346 = vmatprep.subr.mxu0 0.0
        %2347 = vmatpush1.msra.mxu0 0.0
        %2348 = vmatprep.subr.mxu0 0.0
        %2349 = vmatpush1.msra.mxu0 0.0
        %2350 = vmatprep.subr.mxu0 0.0
        %2351 = vmatpush1.msra.mxu0 0.0
        %2352 = vmatprep.subr.mxu0 0.0
        %2353 = vmatpush1.msra.mxu0 0.0
        %2354 = vmatprep.subr.mxu0 0.0
        %2355 = vmatpush1.msra.mxu0 0.0
        %2356 = vmatprep.subr.mxu0 0.0
        %2357 = vmatpush1.msra.mxu0 0.0
        %2358 = vmatprep.subr.mxu0 0.0
        %2359 = vmatpush1.msra.mxu0 0.0
        %2360 = vmatprep.subr.mxu0 0.0
        %2361 = vmatpush1.msra.mxu0 0.0
        %2362 = vmatprep.subr.mxu0 0.0
        %2363 = vmatpush1.msra.mxu0 0.0
        %2364 = vmatprep.subr.mxu0 0.0
        %2365 = vmatpush1.msra.mxu0 0.0
        %2366 = vmatprep.subr.mxu0 0.0
        %2367 = vmatpush1.msra.mxu0 0.0
        %2368 = vmatprep.subr.mxu0 0.0
        %2369 = vmatpush1.msra.mxu0 0.0
        %2370 = vmatprep.subr.mxu0 0.0
        %2371 = vmatpush1.msra.mxu0 0.0
        %2372 = vmatprep.subr.mxu0 0.0
        %2373 = vmatpush1.msra.mxu0 0.0
        %2374 = vmatprep.subr.mxu0 0.0
        %2375 = vmatpush1.msra.mxu0 0.0
        %2376 = vmatprep.subr.mxu0 0.0
        %2377 = vmatpush1.msra.mxu0 0.0
        %2378 = vmatprep.subr.mxu0 0.0
        %2379 = vmatpush1.msra.mxu0 0.0
        %2380 = vmatprep.subr.mxu0 0.0
        %2381 = vmatpush1.msra.mxu0 0.0
        %2382 = vmatprep.subr.mxu0 0.0
        %2383 = vmatpush1.msra.mxu0 0.0
        %2384 = vmatprep.subr.mxu0 0.0
        %2385 = vmatpush1.msra.mxu0 0.0
        %2386 = vmatprep.mubr.f32.mxu0 0.0
        %2387 = vmatmul.mubr.f32.gmra.mrb[0].mxu0 %v2320
        %v2388 = vpop.f32.mrb[0].mxu0
        %v2389 = vadd.f32 %v2318, %v2388
        %v2390 = vpop.f32.mrb[0].mxu0
        %2391 = vdwg.mxu0
        %v2392 = vadd.f32 %v1718, %v2389
        %v2393 = vsel %vm802, %v2392, 0.0
        %2394 = vadd.xlane.f32.xlu0 %v2393
        %v2395 = vpop.xlane.xlu0 %2394
        %v2396 = vmul.f32 %v2395, %v1502
        %v2397 = vsub.f32 %v2392, %v2396
        %v2398 = vmul.f32 %v2397, %v2397
        %v2399 = vsel %vm802, %v2398, 0.0
        %2400 = vadd.xlane.f32.xlu0 %v2399
        %v2401 = vpop.xlane.xlu0 %2400
        %v2402 = vmul.f32 %v2401, %v1502
        %v2403 = vadd.f32 %v2402, 1e-05
        %v2404 = vrsqrt.pop %v2403
        %v2405 = vmul.f32 %v2397, %v2404
        %v2406 = vlaneseq
        %v2407 = vshrl.u32 %v2406, 7
        %v2408 = vsub.s32 2, %v2407
        %v2409 = vrot.slane %v1720, %v2408
        %v2410 = vmul.f32 %v2405, %v2409
        %v2411 = vlaneseq
        %v2412 = vshrl.u32 %v2411, 7
        %v2413 = vsub.s32 3, %v2412
        %v2414 = vrot.slane %v1720, %v2413
        %v2415 = vadd.f32 %v2410, %v2414
        %s2416 = scalar_lea.vmem %s8, 48
        %v2417 = vld [vmem:[%s2416] sm:$0xff]
        %v2418 = vld [vmem:[%s2416 + $0x8] sm:$0xff]
        %v2419 = vld [vmem:[%s2416 + $0x10] sm:$0xff]
        %v2420 = vld [vmem:[%s2416 + $0x18] sm:$0xff]
        %v2421 = vld [vmem:[%s2416 + $0x20] sm:$0xff]
        %v2422 = vld [vmem:[%s2416 + $0x28] sm:$0xff]
        %s2423 = scalar_lea.vmem %s9, 1
        %v2424 = vld [vmem:[%s2423] sm:$0x1]
        %v2426 = vlaneseq
        %v2427 = vshrl.u32 %v2426, 7
        %v2428 = vsub.s32 0, %v2427
        %v2429 = vrot.slane %v2424, %v2428
        %v2432 = vsel %vm802, %v2415, 0
        %2434 = vmatprep.subr.mxu0 0.0
        %2435 = vmatpush1.msra.mxu0 %v2417
        %2436 = vmatprep.subr.mxu0 0.0
        %2437 = vmatpush1.msra.mxu0 %v2418
        %2438 = vmatprep.subr.mxu0 0.0
        %2439 = vmatpush1.msra.mxu0 %v2419
        %2440 = vmatprep.subr.mxu0 0.0
        %2441 = vmatpush1.msra.mxu0 %v2420
        %2442 = vmatprep.subr.mxu0 0.0
        %2443 = vmatpush1.msra.mxu0 %v2421
        %2444 = vmatprep.subr.mxu0 0.0
        %2445 = vmatpush1.msra.mxu0 %v2422
        %2446 = vmatprep.subr.mxu0 0.0
        %2447 = vmatpush1.msra.mxu0 0.0
        %2448 = vmatprep.subr.mxu0 0.0
        %2449 = vmatpush1.msra.mxu0 0.0
        %2450 = vmatprep.subr.mxu0 0.0
        %2451 = vmatpush1.msra.mxu0 0.0
        %2452 = vmatprep.subr.mxu0 0.0
        %2453 = vmatpush1.msra.mxu0 0.0
        %2454 = vmatprep.subr.mxu0 0.0
        %2455 = vmatpush1.msra.mxu0 0.0
        %2456 = vmatprep.subr.mxu0 0.0
        %2457 = vmatpush1.msra.mxu0 0.0
        %2458 = vmatprep.subr.mxu0 0.0
        %2459 = vmatpush1.msra.mxu0 0.0
        %2460 = vmatprep.subr.mxu0 0.0
        %2461 = vmatpush1.msra.mxu0 0.0
        %2462 = vmatprep.subr.mxu0 0.0
        %2463 = vmatpush1.msra.mxu0 0.0
        %2464 = vmatprep.subr.mxu0 0.0
        %2465 = vmatpush1.msra.mxu0 0.0
        %2466 = vmatprep.subr.mxu0 0.0
        %2467 = vmatpush1.msra.mxu0 0.0
        %2468 = vmatprep.subr.mxu0 0.0
        %2469 = vmatpush1.msra.mxu0 0.0
        %2470 = vmatprep.subr.mxu0 0.0
        %2471 = vmatpush1.msra.mxu0 0.0
        %2472 = vmatprep.subr.mxu0 0.0
        %2473 = vmatpush1.msra.mxu0 0.0
        %2474 = vmatprep.subr.mxu0 0.0
        %2475 = vmatpush1.msra.mxu0 0.0
        %2476 = vmatprep.subr.mxu0 0.0
        %2477 = vmatpush1.msra.mxu0 0.0
        %2478 = vmatprep.subr.mxu0 0.0
        %2479 = vmatpush1.msra.mxu0 0.0
        %2480 = vmatprep.subr.mxu0 0.0
        %2481 = vmatpush1.msra.mxu0 0.0
        %2482 = vmatprep.subr.mxu0 0.0
        %2483 = vmatpush1.msra.mxu0 0.0
        %2484 = vmatprep.subr.mxu0 0.0
        %2485 = vmatpush1.msra.mxu0 0.0
        %2486 = vmatprep.subr.mxu0 0.0
        %2487 = vmatpush1.msra.mxu0 0.0
        %2488 = vmatprep.subr.mxu0 0.0
        %2489 = vmatpush1.msra.mxu0 0.0
        %2490 = vmatprep.subr.mxu0 0.0
        %2491 = vmatpush1.msra.mxu0 0.0
        %2492 = vmatprep.subr.mxu0 0.0
        %2493 = vmatpush1.msra.mxu0 0.0
        %2494 = vmatprep.subr.mxu0 0.0
        %2495 = vmatpush1.msra.mxu0 0.0
        %2496 = vmatprep.subr.mxu0 0.0
        %2497 = vmatpush1.msra.mxu0 0.0
        %2498 = vmatprep.mubr.f32.mxu0 0.0
        %2499 = vmatmul.mubr.f32.gmra.mrb[0].mxu0 %v2432
        %v2500 = vpop.f32.mrb[0].mxu0
        %v2501 = vadd.f32 %v2429, %v2500
        %v2502 = vpop.f32.mrb[0].mxu0
        %2503 = vdwg.mxu0
        %v2504 = vmax.f32 %v2501, 0.0
        %s2505 = scalar_lea.vmem %s10, 64
        %v2506 = vld [vmem:[%s2505] sm:$0xff]
        %v2507 = vld [vmem:[%s2505 + $0x8] sm:$0xff]
        %v2508 = vld [vmem:[%s2505 + $0x10] sm:$0xff]
        %v2509 = vld [vmem:[%s2505 + $0x18] sm:$0xff]
        %v2510 = vld [vmem:[%s2505 + $0x20] sm:$0xff]
        %v2511 = vld [vmem:[%s2505 + $0x28] sm:$0xff]
        %v2512 = vld [vmem:[%s2505 + $0x30] sm:$0xff]
        %v2513 = vld [vmem:[%s2505 + $0x38] sm:$0xff]
        %v2514 = vlaneseq
        %v2515 = vshrl.u32 %v2514, 7
        %v2516 = vsub.s32 1, %v2515
        %v2517 = vrot.slane %v1720, %v2516
        %v2519 = vsel %vm1131, %v2504, 0
        %2521 = vmatprep.subr.mxu0 0.0
        %2522 = vmatpush1.msra.mxu0 %v2506
        %2523 = vmatprep.subr.mxu0 0.0
        %2524 = vmatpush1.msra.mxu0 %v2507
        %2525 = vmatprep.subr.mxu0 0.0
        %2526 = vmatpush1.msra.mxu0 %v2508
        %2527 = vmatprep.subr.mxu0 0.0
        %2528 = vmatpush1.msra.mxu0 %v2509
        %2529 = vmatprep.subr.mxu0 0.0
        %2530 = vmatpush1.msra.mxu0 %v2510
        %2531 = vmatprep.subr.mxu0 0.0
        %2532 = vmatpush1.msra.mxu0 %v2511
        %2533 = vmatprep.subr.mxu0 0.0
        %2534 = vmatpush1.msra.mxu0 %v2512
        %2535 = vmatprep.subr.mxu0 0.0
        %2536 = vmatpush1.msra.mxu0 %v2513
        %2537 = vmatprep.subr.mxu0 0.0
        %2538 = vmatpush1.msra.mxu0 0.0
        %2539 = vmatprep.subr.mxu0 0.0
        %2540 = vmatpush1.msra.mxu0 0.0
        %2541 = vmatprep.subr.mxu0 0.0
        %2542 = vmatpush1.msra.mxu0 0.0
        %2543 = vmatprep.subr.mxu0 0.0
        %2544 = vmatpush1.msra.mxu0 0.0
        %2545 = vmatprep.subr.mxu0 0.0
        %2546 = vmatpush1.msra.mxu0 0.0
        %2547 = vmatprep.subr.mxu0 0.0
        %2548 = vmatpush1.msra.mxu0 0.0
        %2549 = vmatprep.subr.mxu0 0.0
        %2550 = vmatpush1.msra.mxu0 0.0
        %2551 = vmatprep.subr.mxu0 0.0
        %2552 = vmatpush1.msra.mxu0 0.0
        %2553 = vmatprep.subr.mxu0 0.0
        %2554 = vmatpush1.msra.mxu0 0.0
        %2555 = vmatprep.subr.mxu0 0.0
        %2556 = vmatpush1.msra.mxu0 0.0
        %2557 = vmatprep.subr.mxu0 0.0
        %2558 = vmatpush1.msra.mxu0 0.0
        %2559 = vmatprep.subr.mxu0 0.0
        %2560 = vmatpush1.msra.mxu0 0.0
        %2561 = vmatprep.subr.mxu0 0.0
        %2562 = vmatpush1.msra.mxu0 0.0
        %2563 = vmatprep.subr.mxu0 0.0
        %2564 = vmatpush1.msra.mxu0 0.0
        %2565 = vmatprep.subr.mxu0 0.0
        %2566 = vmatpush1.msra.mxu0 0.0
        %2567 = vmatprep.subr.mxu0 0.0
        %2568 = vmatpush1.msra.mxu0 0.0
        %2569 = vmatprep.subr.mxu0 0.0
        %2570 = vmatpush1.msra.mxu0 0.0
        %2571 = vmatprep.subr.mxu0 0.0
        %2572 = vmatpush1.msra.mxu0 0.0
        %2573 = vmatprep.subr.mxu0 0.0
        %2574 = vmatpush1.msra.mxu0 0.0
        %2575 = vmatprep.subr.mxu0 0.0
        %2576 = vmatpush1.msra.mxu0 0.0
        %2577 = vmatprep.subr.mxu0 0.0
        %2578 = vmatpush1.msra.mxu0 0.0
        %2579 = vmatprep.subr.mxu0 0.0
        %2580 = vmatpush1.msra.mxu0 0.0
        %2581 = vmatprep.subr.mxu0 0.0
        %2582 = vmatpush1.msra.mxu0 0.0
        %2583 = vmatprep.subr.mxu0 0.0
        %2584 = vmatpush1.msra.mxu0 0.0
        %2585 = vmatprep.mubr.f32.mxu0 0.0
        %2586 = vmatmul.mubr.f32.gmra.mrb[0].mxu0 %v2519
        %v2587 = vpop.f32.mrb[0].mxu0
        %v2588 = vadd.f32 %v2517, %v2587
        %v2589 = vpop.f32.mrb[0].mxu0
        %2590 = vdwg.mxu0
        %v2591 = vadd.f32 %v2415, %v2588
        %v2592 = vsel %vm802, %v2591, 0.0
        %2593 = vadd.xlane.f32.xlu0 %v2592
        %v2594 = vpop.xlane.xlu0 %2593
        %v2595 = vmul.f32 %v2594, %v1502
        %v2596 = vsub.f32 %v2591, %v2595
        %v2597 = vmul.f32 %v2596, %v2596
        %v2598 = vsel %vm802, %v2597, 0.0
        %2599 = vadd.xlane.f32.xlu0 %v2598
        %v2600 = vpop.xlane.xlu0 %2599
        %v2601 = vmul.f32 %v2600, %v1502
        %v2602 = vadd.f32 %v2601, 1e-05
        %v2603 = vrsqrt.pop %v2602
        %v2604 = vmul.f32 %v2596, %v2603
        %v2605 = vlaneseq
        %v2606 = vshrl.u32 %v2605, 7
        %v2607 = vsub.s32 4, %v2606
        %v2608 = vrot.slane %v1720, %v2607
        %v2609 = vmul.f32 %v2604, %v2608
        %v2610 = vlaneseq
        %v2611 = vshrl.u32 %v2610, 7
        %v2612 = vsub.s32 5, %v2611
        %v2613 = vrot.slane %v1720, %v2612
        %v2614 = vadd.f32 %v2609, %v2613
        %v2615 = vld [vmem:[%s685] sm:$0x1]
        %v2616 = vlaneseq
        %v2617 = vshrl.u32 %v2616, 7
        %v2618 = vadd.s32 %v2617, 8
        %v2619 = vlaneseq
        %v2620 = vshrl.u32 %v2619, 7
        %v2621 = vsub.s32 0, %v2620
        %v2622 = vrot.slane %v2615, %v2621
        %vm2623 = vcmp.eq.s32.totalorder %v2617, %v2622
        %vm2624 = vcmp.eq.s32.totalorder %v2618, %v2622
        %v2625 = vsel %vm2623, 1, 0
        %v2626 = vsel %vm2624, 1, 0
        %v2627 = vcvt.s32.f32 %v2625
        %v2628 = vcvt.s32.f32 %v2626
        %v2629 = vsel %vm889, %v2627, 0.0
        %2630 = vadd.xlane.f32.xlu0 %v2629
        %v2631 = vpop.xlane.xlu0 %2630
        %v2632 = vsel %vm889, %v2628, 0.0
        %2633 = vadd.xlane.f32.xlu0 %v2632
        %v2634 = vpop.xlane.xlu0 %2633
        %v2635 = vsub.f32 1.0, %v2631
        %v2636 = vsub.f32 1.0, %v2634
        %v2637 = vld [vmem:[#allocation10] sm:$0x1]
        %v2639 = vlaneseq
        %v2640 = vshrl.u32 %v2639, 7
        %v2641 = vsub.s32 0, %v2640
        %v2642 = vrot.slane %v2637, %v2641
        %v2644 = vmul.f32 %v2635, %v2642
        %v2645 = vmul.f32 %v2636, %v2642
        %v2647 = vsel %vm889, %v2627, 0
        %v2650 = vsel %vm889, %v2628, 0
        %2652 = vmatprep.subr.mxu0 0.0
        %2653 = vmatpush1.msra.mxu0 %v2614
        %2654 = vmatprep.subr.mxu0 0.0
        %2655 = vmatpush1.msra.mxu0 0.0
        %2656 = vmatprep.subr.mxu0 0.0
        %2657 = vmatpush1.msra.mxu0 0.0
        %2658 = vmatprep.subr.mxu0 0.0
        %2659 = vmatpush1.msra.mxu0 0.0
        %2660 = vmatprep.subr.mxu0 0.0
        %2661 = vmatpush1.msra.mxu0 0.0
        %2662 = vmatprep.subr.mxu0 0.0
        %2663 = vmatpush1.msra.mxu0 0.0
        %2664 = vmatprep.subr.mxu0 0.0
        %2665 = vmatpush1.msra.mxu0 0.0
        %2666 = vmatprep.subr.mxu0 0.0
        %2667 = vmatpush1.msra.mxu0 0.0
        %2668 = vmatprep.subr.mxu0 0.0
        %2669 = vmatpush1.msra.mxu0 0.0
        %2670 = vmatprep.subr.mxu0 0.0
        %2671 = vmatpush1.msra.mxu0 0.0
        %2672 = vmatprep.subr.mxu0 0.0
        %2673 = vmatpush1.msra.mxu0 0.0
        %2674 = vmatprep.subr.mxu0 0.0
        %2675 = vmatpush1.msra.mxu0 0.0
        %2676 = vmatprep.subr.mxu0 0.0
        %2677 = vmatpush1.msra.mxu0 0.0
        %2678 = vmatprep.subr.mxu0 0.0
        %2679 = vmatpush1.msra.mxu0 0.0
        %2680 = vmatprep.subr.mxu0 0.0
        %2681 = vmatpush1.msra.mxu0 0.0
        %2682 = vmatprep.subr.mxu0 0.0
        %2683 = vmatpush1.msra.mxu0 0.0
        %2684 = vmatprep.subr.mxu0 0.0
        %2685 = vmatpush1.msra.mxu0 0.0
        %2686 = vmatprep.subr.mxu0 0.0
        %2687 = vmatpush1.msra.mxu0 0.0
        %2688 = vmatprep.subr.mxu0 0.0
        %2689 = vmatpush1.msra.mxu0 0.0
        %2690 = vmatprep.subr.mxu0 0.0
        %2691 = vmatpush1.msra.mxu0 0.0
        %2692 = vmatprep.subr.mxu0 0.0
        %2693 = vmatpush1.msra.mxu0 0.0
        %2694 = vmatprep.subr.mxu0 0.0
        %2695 = vmatpush1.msra.mxu0 0.0
        %2696 = vmatprep.subr.mxu0 0.0
        %2697 = vmatpush1.msra.mxu0 0.0
        %2698 = vmatprep.subr.mxu0 0.0
        %2699 = vmatpush1.msra.mxu0 0.0
        %2700 = vmatprep.subr.mxu0 0.0
        %2701 = vmatpush1.msra.mxu0 0.0
        %2702 = vmatprep.subr.mxu0 0.0
        %2703 = vmatpush1.msra.mxu0 0.0
        %2704 = vmatprep.subr.mxu0 0.0
        %2705 = vmatpush1.msra.mxu0 0.0
        %2706 = vmatprep.subr.mxu0 0.0
        %2707 = vmatpush1.msra.mxu0 0.0
        %2708 = vmatprep.subr.mxu0 0.0
        %2709 = vmatpush1.msra.mxu0 0.0
        %2710 = vmatprep.subr.mxu0 0.0
        %2711 = vmatpush1.msra.mxu0 0.0
        %2712 = vmatprep.subr.mxu0 0.0
        %2713 = vmatpush1.msra.mxu0 0.0
        %2714 = vmatprep.subr.mxu0 0.0
        %2715 = vmatpush1.msra.mxu0 0.0
        %2716 = vmatprep.mubr.f32.mxu0 0.0
        %2717 = vmatmul.mubr.f32.gmra.mrb[0].mxu0 %v2647
        %v2718 = vpop.f32.mrb[0].mxu0
        %v2719 = vadd.f32 %v2644, %v2718
        %v2720 = vpop.f32.mrb[0].mxu0
        %2721 = vmatprep.mubr.f32.mxu0 0.0
        %2722 = vmatmul.mubr.f32.gmra.mrb[0].mxu0 %v2650
        %v2723 = vpop.f32.mrb[0].mxu0
        %v2724 = vadd.f32 %v2645, %v2723
        %v2725 = vpop.f32.mrb[0].mxu0
        %2726 = vdwg.mxu0
        %v2727 = vld [vmem:[#allocation8] sm:$0xff]
        %v2728 = vld [vmem:[#allocation8 + $0x8] sm:$0xff]
        %v2729 = vadd.f32 %v2719, %v2727
        %v2730 = vadd.f32 %v2724, %v2728
        %s2731 = scalar_lea.vmem %s11, 16
        %v2732 = vld [vmem:[%s2731] sm:$0x3f]
        %s2733 = scalar_lea.vmem %s5, 192
        %v2734 = vld [vmem:[%s2733] sm:$0xff]
        %v2735 = vld [vmem:[%s2733 + $0x8] sm:$0xff]
        %v2736 = vld [vmem:[%s2733 + $0x10] sm:$0xff]
        %v2737 = vld [vmem:[%s2733 + $0x18] sm:$0xff]
        %v2738 = vld [vmem:[%s2733 + $0x20] sm:$0xff]
        %v2739 = vld [vmem:[%s2733 + $0x28] sm:$0xff]
        %v2740 = vld [vmem:[%s2733 + $0x30] sm:$0xff]
        %v2741 = vld [vmem:[%s2733 + $0x38] sm:$0xff]
        %v2742 = vld [vmem:[%s2733 + $0x40] sm:$0xff]
        %v2743 = vld [vmem:[%s2733 + $0x48] sm:$0xff]
        %v2744 = vld [vmem:[%s2733 + $0x50] sm:$0xff]
        %v2745 = vld [vmem:[%s2733 + $0x58] sm:$0xff]
        %s2746 = scalar_lea.vmem [#allocation11], 4
        %v2747 = vld [vmem:[%s2746] sm:$0x3]
        %v2749 = vlaneseq
        %v2750 = vshrl.u32 %v2749, 7
        %v2751 = vsub.s32 0, %v2750
        %v2752 = vrot.slane %v2747, %v2751
        %v2753 = vlaneseq
        %v2754 = vshrl.u32 %v2753, 7
        %v2755 = vsub.s32 1, %v2754
        %v2756 = vrot.slane %v2747, %v2755
        %v2760 = vsel %vm802, %v2729, 0
        %v2763 = vsel %vm802, %v2730, 0
        %2765 = vmatprep.subr.mxu0 %v2735
        %2766 = vmatpush1.msra.mxu0 %v2734
        %2767 = vmatprep.subr.mxu0 %v2737
        %2768 = vmatpush1.msra.mxu0 %v2736
        %2769 = vmatprep.subr.mxu0 %v2739
        %2770 = vmatpush1.msra.mxu0 %v2738
        %2771 = vmatprep.subr.mxu0 %v2741
        %2772 = vmatpush1.msra.mxu0 %v2740
        %2773 = vmatprep.subr.mxu0 %v2743
        %2774 = vmatpush1.msra.mxu0 %v2742
        %2775 = vmatprep.subr.mxu0 %v2745
        %2776 = vmatpush1.msra.mxu0 %v2744
        %2777 = vmatprep.subr.mxu0 0.0
        %2778 = vmatpush1.msra.mxu0 0.0
        %2779 = vmatprep.subr.mxu0 0.0
        %2780 = vmatpush1.msra.mxu0 0.0
        %2781 = vmatprep.subr.mxu0 0.0
        %2782 = vmatpush1.msra.mxu0 0.0
        %2783 = vmatprep.subr.mxu0 0.0
        %2784 = vmatpush1.msra.mxu0 0.0
        %2785 = vmatprep.subr.mxu0 0.0
        %2786 = vmatpush1.msra.mxu0 0.0
        %2787 = vmatprep.subr.mxu0 0.0
        %2788 = vmatpush1.msra.mxu0 0.0
        %2789 = vmatprep.subr.mxu0 0.0
        %2790 = vmatpush1.msra.mxu0 0.0
        %2791 = vmatprep.subr.mxu0 0.0
        %2792 = vmatpush1.msra.mxu0 0.0
        %2793 = vmatprep.subr.mxu0 0.0
        %2794 = vmatpush1.msra.mxu0 0.0
        %2795 = vmatprep.subr.mxu0 0.0
        %2796 = vmatpush1.msra.mxu0 0.0
        %2797 = vmatprep.subr.mxu0 0.0
        %2798 = vmatpush1.msra.mxu0 0.0
        %2799 = vmatprep.subr.mxu0 0.0
        %2800 = vmatpush1.msra.mxu0 0.0
        %2801 = vmatprep.subr.mxu0 0.0
        %2802 = vmatpush1.msra.mxu0 0.0
        %2803 = vmatprep.subr.mxu0 0.0
        %2804 = vmatpush1.msra.mxu0 0.0
        %2805 = vmatprep.subr.mxu0 0.0
        %2806 = vmatpush1.msra.mxu0 0.0
        %2807 = vmatprep.subr.mxu0 0.0
        %2808 = vmatpush1.msra.mxu0 0.0
        %2809 = vmatprep.subr.mxu0 0.0
        %2810 = vmatpush1.msra.mxu0 0.0
        %2811 = vmatprep.subr.mxu0 0.0
        %2812 = vmatpush1.msra.mxu0 0.0
        %2813 = vmatprep.subr.mxu0 0.0
        %2814 = vmatpush1.msra.mxu0 0.0
        %2815 = vmatprep.subr.mxu0 0.0
        %2816 = vmatpush1.msra.mxu0 0.0
        %2817 = vmatprep.subr.mxu0 0.0
        %2818 = vmatpush1.msra.mxu0 0.0
        %2819 = vmatprep.subr.mxu0 0.0
        %2820 = vmatpush1.msra.mxu0 0.0
        %2821 = vmatprep.subr.mxu0 0.0
        %2822 = vmatpush1.msra.mxu0 0.0
        %2823 = vmatprep.subr.mxu0 0.0
        %2824 = vmatpush1.msra.mxu0 0.0
        %2825 = vmatprep.subr.mxu0 0.0
        %2826 = vmatpush1.msra.mxu0 0.0
        %2827 = vmatprep.subr.mxu0 0.0
        %2828 = vmatpush1.msra.mxu0 0.0
        %2829 = vmatprep.mubr.f32.mxu0 0.0
        %2830 = vmatmul.mubr.f32.gmra.mrb[0].mxu0 %v2760
        %v2831 = vpop.f32.mrb[0].mxu0
        %v2832 = vadd.f32 %v2752, %v2831
        %v2833 = vpop.f32.mrb[0].mxu0
        %v2834 = vadd.f32 %v2756, %v2833
        %2835 = vmatprep.mubr.f32.mxu0 0.0
        %2836 = vmatmul.mubr.f32.gmra.mrb[0].mxu0 %v2763
        %v2837 = vpop.f32.mrb[0].mxu0
        %v2838 = vadd.f32 %v2752, %v2837
        %v2839 = vpop.f32.mrb[0].mxu0
        %v2840 = vadd.f32 %v2756, %v2839
        %2841 = vdwg.mxu0
        %v2842 = vld [vmem:[%s17] sm:$0xff]
        %v2843 = vld [vmem:[%s17 + $0x8] sm:$0xff]
        %v2844 = vld [vmem:[%s17 + $0x10] sm:$0xff]
        %v2845 = vld [vmem:[%s17 + $0x18] sm:$0xff]
        %v2846 = vld [vmem:[%s17 + $0x20] sm:$0xff]
        %v2847 = vld [vmem:[%s17 + $0x28] sm:$0xff]
        %v2848 = vld [vmem:[%s17 + $0x30] sm:$0xff]
        %v2849 = vld [vmem:[%s17 + $0x38] sm:$0xff]
        %v2850 = vld [vmem:[%s17 + $0x40] sm:$0xff]
        %v2851 = vld [vmem:[%s17 + $0x48] sm:$0xff]
        %v2852 = vld [vmem:[%s17 + $0x50] sm:$0xff]
        %v2853 = vld [vmem:[%s17 + $0x58] sm:$0xff]
        %v2854 = vld [vmem:[%s17 + $0x60] sm:$0xff]
        %v2855 = vld [vmem:[%s17 + $0x68] sm:$0xff]
        %v2856 = vld [vmem:[%s17 + $0x70] sm:$0xff]
        %v2857 = vld [vmem:[%s17 + $0x78] sm:$0xff]
        %2860 = vrot.lane.b32.xlu0 %v2832, 80
        %v2861 = vpop.permute.xlu0 %2860
        %2862 = vrot.lane.b32.xlu0 %v2838, 80
        %v2863 = vpop.permute.xlu0 %2862
        %vm2866 = vcmask 130048
        %v2868 = vsel %vm2866, %v2842, 0
        %v2871 = vsel %vm2866, %v2843, 0
        %v2874 = vsel %vm2866, %v2844, 0
        %v2877 = vsel %vm2866, %v2845, 0
        %v2880 = vsel %vm2866, %v2846, 0
        %v2883 = vsel %vm2866, %v2847, 0
        %v2886 = vsel %vm2866, %v2848, 0
        %v2889 = vsel %vm2866, %v2849, 0
        %v2892 = vsel %vm2866, %v2850, 0
        %v2895 = vsel %vm2866, %v2851, 0
        %v2898 = vsel %vm2866, %v2852, 0
        %v2901 = vsel %vm2866, %v2853, 0
        %v2904 = vsel %vm2866, %v2854, 0
        %v2907 = vsel %vm2866, %v2855, 0
        %v2910 = vsel %vm2866, %v2856, 0
        %v2913 = vsel %vm2866, %v2857, 0
        %2915 = vmatprep.subr.mxu0 0.0
        %2916 = vmatpush1.msra.mxu0 %v2861
        %2917 = vmatprep.subr.mxu0 0.0
        %2918 = vmatpush1.msra.mxu0 %v2863
        %2919 = vmatprep.subr.mxu0 0.0
        %2920 = vmatpush1.msra.mxu0 0.0
        %2921 = vmatprep.subr.mxu0 0.0
        %2922 = vmatpush1.msra.mxu0 0.0
        %2923 = vmatprep.subr.mxu0 0.0
        %2924 = vmatpush1.msra.mxu0 0.0
        %2925 = vmatprep.subr.mxu0 0.0
        %2926 = vmatpush1.msra.mxu0 0.0
        %2927 = vmatprep.subr.mxu0 0.0
        %2928 = vmatpush1.msra.mxu0 0.0
        %2929 = vmatprep.subr.mxu0 0.0
        %2930 = vmatpush1.msra.mxu0 0.0
        %2931 = vmatprep.subr.mxu0 0.0
        %2932 = vmatpush1.msra.mxu0 0.0
        %2933 = vmatprep.subr.mxu0 0.0
        %2934 = vmatpush1.msra.mxu0 0.0
        %2935 = vmatprep.subr.mxu0 0.0
        %2936 = vmatpush1.msra.mxu0 0.0
        %2937 = vmatprep.subr.mxu0 0.0
        %2938 = vmatpush1.msra.mxu0 0.0
        %2939 = vmatprep.subr.mxu0 0.0
        %2940 = vmatpush1.msra.mxu0 0.0
        %2941 = vmatprep.subr.mxu0 0.0
        %2942 = vmatpush1.msra.mxu0 0.0
        %2943 = vmatprep.subr.mxu0 0.0
        %2944 = vmatpush1.msra.mxu0 0.0
        %2945 = vmatprep.subr.mxu0 0.0
        %2946 = vmatpush1.msra.mxu0 0.0
        %2947 = vmatprep.subr.mxu0 0.0
        %2948 = vmatpush1.msra.mxu0 0.0
        %2949 = vmatprep.subr.mxu0 0.0
        %2950 = vmatpush1.msra.mxu0 0.0
        %2951 = vmatprep.subr.mxu0 0.0
        %2952 = vmatpush1.msra.mxu0 0.0
        %2953 = vmatprep.subr.mxu0 0.0
        %2954 = vmatpush1.msra.mxu0 0.0
        %2955 = vmatprep.subr.mxu0 0.0
        %2956 = vmatpush1.msra.mxu0 0.0
        %2957 = vmatprep.subr.mxu0 0.0
        %2958 = vmatpush1.msra.mxu0 0.0
        %2959 = vmatprep.subr.mxu0 0.0
        %2960 = vmatpush1.msra.mxu0 0.0
        %2961 = vmatprep.subr.mxu0 0.0
        %2962 = vmatpush1.msra.mxu0 0.0
        %2963 = vmatprep.subr.mxu0 0.0
        %2964 = vmatpush1.msra.mxu0 0.0
        %2965 = vmatprep.subr.mxu0 0.0
        %2966 = vmatpush1.msra.mxu0 0.0
        %2967 = vmatprep.subr.mxu0 0.0
        %2968 = vmatpush1.msra.mxu0 0.0
        %2969 = vmatprep.subr.mxu0 0.0
        %2970 = vmatpush1.msra.mxu0 0.0
        %2971 = vmatprep.subr.mxu0 0.0
        %2972 = vmatpush1.msra.mxu0 0.0
        %2973 = vmatprep.subr.mxu0 0.0
        %2974 = vmatpush1.msra.mxu0 0.0
        %2975 = vmatprep.subr.mxu0 0.0
        %2976 = vmatpush1.msra.mxu0 0.0
        %2977 = vmatprep.subr.mxu0 0.0
        %2978 = vmatpush1.msra.mxu0 0.0
        %2979 = vmatprep.mubr.f32.mxu0 0.0
        %2980 = vmatmul.mubr.f32.gmra.mrb[0].mxu0 %v2868
        %v2981 = vpop.f32.mrb[0].mxu0
        %v2982 = vadd.f32 0.0, %v2981
        %v2983 = vpop.f32.mrb[0].mxu0
        %2984 = vmatprep.mubr.f32.mxu0 0.0
        %2985 = vmatmul.mubr.f32.gmra.mrb[0].mxu0 %v2871
        %v2986 = vpop.f32.mrb[0].mxu0
        %v2987 = vadd.f32 0.0, %v2986
        %v2988 = vpop.f32.mrb[0].mxu0
        %2989 = vmatprep.mubr.f32.mxu0 0.0
        %2990 = vmatmul.mubr.f32.gmra.mrb[0].mxu0 %v2874
        %v2991 = vpop.f32.mrb[0].mxu0
        %v2992 = vadd.f32 0.0, %v2991
        %v2993 = vpop.f32.mrb[0].mxu0
        %2994 = vmatprep.mubr.f32.mxu0 0.0
        %2995 = vmatmul.mubr.f32.gmra.mrb[0].mxu0 %v2877
        %v2996 = vpop.f32.mrb[0].mxu0
        %v2997 = vadd.f32 0.0, %v2996
        %v2998 = vpop.f32.mrb[0].mxu0
        %2999 = vmatprep.mubr.f32.mxu0 0.0
        %3000 = vmatmul.mubr.f32.gmra.mrb[0].mxu0 %v2880
        %v3001 = vpop.f32.mrb[0].mxu0
        %v3002 = vadd.f32 0.0, %v3001
        %v3003 = vpop.f32.mrb[0].mxu0
        %3004 = vmatprep.mubr.f32.mxu0 0.0
        %3005 = vmatmul.mubr.f32.gmra.mrb[0].mxu0 %v2883
        %v3006 = vpop.f32.mrb[0].mxu0
        %v3007 = vadd.f32 0.0, %v3006
        %v3008 = vpop.f32.mrb[0].mxu0
        %3009 = vmatprep.mubr.f32.mxu0 0.0
        %3010 = vmatmul.mubr.f32.gmra.mrb[0].mxu0 %v2886
        %v3011 = vpop.f32.mrb[0].mxu0
        %v3012 = vadd.f32 0.0, %v3011
        %v3013 = vpop.f32.mrb[0].mxu0
        %3014 = vmatprep.mubr.f32.mxu0 0.0
        %3015 = vmatmul.mubr.f32.gmra.mrb[0].mxu0 %v2889
        %v3016 = vpop.f32.mrb[0].mxu0
        %v3017 = vadd.f32 0.0, %v3016
        %v3018 = vpop.f32.mrb[0].mxu0
        %3019 = vmatprep.mubr.f32.mxu0 0.0
        %3020 = vmatmul.mubr.f32.gmra.mrb[0].mxu0 %v2892
        %v3021 = vpop.f32.mrb[0].mxu0
        %v3022 = vadd.f32 0.0, %v3021
        %v3023 = vpop.f32.mrb[0].mxu0
        %3024 = vmatprep.mubr.f32.mxu0 0.0
        %3025 = vmatmul.mubr.f32.gmra.mrb[0].mxu0 %v2895
        %v3026 = vpop.f32.mrb[0].mxu0
        %v3027 = vadd.f32 0.0, %v3026
        %v3028 = vpop.f32.mrb[0].mxu0
        %3029 = vmatprep.mubr.f32.mxu0 0.0
        %3030 = vmatmul.mubr.f32.gmra.mrb[0].mxu0 %v2898
        %v3031 = vpop.f32.mrb[0].mxu0
        %v3032 = vadd.f32 0.0, %v3031
        %v3033 = vpop.f32.mrb[0].mxu0
        %3034 = vmatprep.mubr.f32.mxu0 0.0
        %3035 = vmatmul.mubr.f32.gmra.mrb[0].mxu0 %v2901
        %v3036 = vpop.f32.mrb[0].mxu0
        %v3037 = vadd.f32 0.0, %v3036
        %v3038 = vpop.f32.mrb[0].mxu0
        %3039 = vmatprep.mubr.f32.mxu0 0.0
        %3040 = vmatmul.mubr.f32.gmra.mrb[0].mxu0 %v2904
        %v3041 = vpop.f32.mrb[0].mxu0
        %v3042 = vadd.f32 0.0, %v3041
        %v3043 = vpop.f32.mrb[0].mxu0
        %3044 = vmatprep.mubr.f32.mxu0 0.0
        %3045 = vmatmul.mubr.f32.gmra.mrb[0].mxu0 %v2907
        %v3046 = vpop.f32.mrb[0].mxu0
        %v3047 = vadd.f32 0.0, %v3046
        %v3048 = vpop.f32.mrb[0].mxu0
        %3049 = vmatprep.mubr.f32.mxu0 0.0
        %3050 = vmatmul.mubr.f32.gmra.mrb[0].mxu0 %v2910
        %v3051 = vpop.f32.mrb[0].mxu0
        %v3052 = vadd.f32 0.0, %v3051
        %v3053 = vpop.f32.mrb[0].mxu0
        %3054 = vmatprep.mubr.f32.mxu0 0.0
        %3055 = vmatmul.mubr.f32.gmra.mrb[0].mxu0 %v2913
        %v3056 = vpop.f32.mrb[0].mxu0
        %v3057 = vadd.f32 0.0, %v3056
        %v3058 = vpop.f32.mrb[0].mxu0
        %3059 = vdwg.mxu0
        %v3060 = vld [vmem:[%s18] sm:$0xff]
        %v3061 = vld [vmem:[%s18 + $0x8] sm:$0xff]
        %v3062 = vld [vmem:[%s18 + $0x10] sm:$0xff]
        %v3063 = vld [vmem:[%s18 + $0x18] sm:$0xff]
        %v3064 = vld [vmem:[%s18 + $0x20] sm:$0xff]
        %v3065 = vld [vmem:[%s18 + $0x28] sm:$0xff]
        %v3066 = vld [vmem:[%s18 + $0x30] sm:$0xff]
        %v3067 = vld [vmem:[%s18 + $0x38] sm:$0xff]
        %v3068 = vld [vmem:[%s18 + $0x40] sm:$0xff]
        %v3069 = vld [vmem:[%s18 + $0x48] sm:$0xff]
        %v3070 = vld [vmem:[%s18 + $0x50] sm:$0xff]
        %v3071 = vld [vmem:[%s18 + $0x58] sm:$0xff]
        %v3072 = vld [vmem:[%s18 + $0x60] sm:$0xff]
        %v3073 = vld [vmem:[%s18 + $0x68] sm:$0xff]
        %v3074 = vld [vmem:[%s18 + $0x70] sm:$0xff]
        %v3075 = vld [vmem:[%s18 + $0x78] sm:$0xff]
        %v3076 = vmul.f32 %v2982, %v3060
        %v3077 = vmul.f32 %v2987, %v3061
        %v3078 = vmul.f32 %v2992, %v3062
        %v3079 = vmul.f32 %v2997, %v3063
        %v3080 = vmul.f32 %v3002, %v3064
        %v3081 = vmul.f32 %v3007, %v3065
        %v3082 = vmul.f32 %v3012, %v3066
        %v3083 = vmul.f32 %v3017, %v3067
        %v3084 = vmul.f32 %v3022, %v3068
        %v3085 = vmul.f32 %v3027, %v3069
        %v3086 = vmul.f32 %v3032, %v3070
        %v3087 = vmul.f32 %v3037, %v3071
        %v3088 = vmul.f32 %v3042, %v3072
        %v3089 = vmul.f32 %v3047, %v3073
        %v3090 = vmul.f32 %v3052, %v3074
        %v3091 = vmul.f32 %v3057, %v3075
        %v3092 = vsel %vm802, %v2832, 0
        %v3094 = vsel %vm802, %v2838, 0
        %v3097 = vsel %vm802, %v3076, 0
        %v3100 = vsel %vm802, %v3077, 0
        %v3103 = vsel %vm802, %v3078, 0
        %v3106 = vsel %vm802, %v3079, 0
        %v3109 = vsel %vm802, %v3080, 0
        %v3112 = vsel %vm802, %v3081, 0
        %v3115 = vsel %vm802, %v3082, 0
        %v3118 = vsel %vm802, %v3083, 0
        %v3121 = vsel %vm802, %v3084, 0
        %v3124 = vsel %vm802, %v3085, 0
        %v3127 = vsel %vm802, %v3086, 0
        %v3130 = vsel %vm802, %v3087, 0
        %v3133 = vsel %vm802, %v3088, 0
        %v3136 = vsel %vm802, %v3089, 0
        %v3139 = vsel %vm802, %v3090, 0
        %v3142 = vsel %vm802, %v3091, 0
        %3144 = vmatprep.subr.mxu0 0.0
        %3145 = vmatpush1.xpose.msra.mxu0 %v3097
        %3146 = vmatprep.subr.mxu0 0.0
        %3147 = vmatpush1.xpose.msra.mxu0 %v3100
        %3148 = vmatprep.subr.mxu0 0.0
        %3149 = vmatpush1.xpose.msra.mxu0 %v3103
        %3150 = vmatprep.subr.mxu0 0.0
        %3151 = vmatpush1.xpose.msra.mxu0 %v3106
        %3152 = vmatprep.subr.mxu0 0.0
        %3153 = vmatpush1.xpose.msra.mxu0 %v3109
        %3154 = vmatprep.subr.mxu0 0.0
        %3155 = vmatpush1.xpose.msra.mxu0 %v3112
        %3156 = vmatprep.subr.mxu0 0.0
        %3157 = vmatpush1.xpose.msra.mxu0 %v3115
        %3158 = vmatprep.subr.mxu0 0.0
        %3159 = vmatpush1.xpose.msra.mxu0 %v3118
        %3160 = vmatprep.subr.mxu0 0.0
        %3161 = vmatpush1.xpose.msra.mxu0 %v3121
        %3162 = vmatprep.subr.mxu0 0.0
        %3163 = vmatpush1.xpose.msra.mxu0 %v3124
        %3164 = vmatprep.subr.mxu0 0.0
        %3165 = vmatpush1.xpose.msra.mxu0 %v3127
        %3166 = vmatprep.subr.mxu0 0.0
        %3167 = vmatpush1.xpose.msra.mxu0 %v3130
        %3168 = vmatprep.subr.mxu0 0.0
        %3169 = vmatpush1.xpose.msra.mxu0 %v3133
        %3170 = vmatprep.subr.mxu0 0.0
        %3171 = vmatpush1.xpose.msra.mxu0 %v3136
        %3172 = vmatprep.subr.mxu0 0.0
        %3173 = vmatpush1.xpose.msra.mxu0 %v3139
        %3174 = vmatprep.subr.mxu0 0.0
        %3175 = vmatpush1.xpose.msra.mxu0 %v3142
        %3176 = vmatprep.subr.mxu0 0.0
        %3177 = vmatpush1.xpose.msra.mxu0 0.0
        %3178 = vmatprep.subr.mxu0 0.0
        %3179 = vmatpush1.xpose.msra.mxu0 0.0
        %3180 = vmatprep.subr.mxu0 0.0
        %3181 = vmatpush1.xpose.msra.mxu0 0.0
        %3182 = vmatprep.subr.mxu0 0.0
        %3183 = vmatpush1.xpose.msra.mxu0 0.0
        %3184 = vmatprep.subr.mxu0 0.0
        %3185 = vmatpush1.xpose.msra.mxu0 0.0
        %3186 = vmatprep.subr.mxu0 0.0
        %3187 = vmatpush1.xpose.msra.mxu0 0.0
        %3188 = vmatprep.subr.mxu0 0.0
        %3189 = vmatpush1.xpose.msra.mxu0 0.0
        %3190 = vmatprep.subr.mxu0 0.0
        %3191 = vmatpush1.xpose.msra.mxu0 0.0
        %3192 = vmatprep.subr.mxu0 0.0
        %3193 = vmatpush1.xpose.msra.mxu0 0.0
        %3194 = vmatprep.subr.mxu0 0.0
        %3195 = vmatpush1.xpose.msra.mxu0 0.0
        %3196 = vmatprep.subr.mxu0 0.0
        %3197 = vmatpush1.xpose.msra.mxu0 0.0
        %3198 = vmatprep.subr.mxu0 0.0
        %3199 = vmatpush1.xpose.msra.mxu0 0.0
        %3200 = vmatprep.subr.mxu0 0.0
        %3201 = vmatpush1.xpose.msra.mxu0 0.0
        %3202 = vmatprep.subr.mxu0 0.0
        %3203 = vmatpush1.xpose.msra.mxu0 0.0
        %3204 = vmatprep.subr.mxu0 0.0
        %3205 = vmatpush1.xpose.msra.mxu0 0.0
        %3206 = vmatprep.subr.mxu0 0.0
        %3207 = vmatpush1.xpose.msra.mxu0 0.0
        %3208 = vmatprep.mubr.f32.mxu0 0.0
        %3209 = vmatmul.mubr.f32.gmra.mrb[0].mxu0 %v3092
        %v3210 = vpop.f32.mrb[0].mxu0
        %v3211 = vadd.f32 0.0, %v3210
        %v3212 = vpop.f32.mrb[0].mxu0
        %3213 = vmatprep.mubr.f32.mxu0 0.0
        %3214 = vmatmul.mubr.f32.gmra.mrb[0].mxu0 %v3094
        %v3215 = vpop.f32.mrb[0].mxu0
        %v3216 = vadd.f32 0.0, %v3215
        %v3217 = vpop.f32.mrb[0].mxu0
        %3218 = vdwg.mxu0
        %3219 = vmax.xlane.f32.xlu0 %v3211
        %v3220 = vpop.xlane.xlu0 %3219
        %3221 = vmax.xlane.f32.xlu0 %v3216
        %v3222 = vpop.xlane.xlu0 %3221
        %v3223 = vsub.f32 %v3211, %v3220
        %v3224 = vsub.f32 %v3216, %v3222
        %v3225 = vmul.f32 %v3223, 1.442695
        %v3226 = vpow.pop %v3225
        %v3227 = vmul.f32 %v3224, 1.442695
        %v3228 = vpow.pop %v3227
        %v3229 = vld [vmem:[#allocation16] sm:$0xff]
        %v3230 = vld [vmem:[#allocation16 + $0x8] sm:$0xff]
        %v3231 = vld [vmem:[#allocation16 + $0x10] sm:$0xff]
        %v3232 = vld [vmem:[#allocation16 + $0x18] sm:$0xff]
        %v3233 = vld [vmem:[#allocation16 + $0x20] sm:$0xff]
        %v3234 = vld [vmem:[#allocation16 + $0x28] sm:$0xff]
        %v3235 = vld [vmem:[#allocation16 + $0x30] sm:$0xff]
        %v3236 = vld [vmem:[#allocation16 + $0x38] sm:$0xff]
        %v3237 = vld [vmem:[#allocation16 + $0x40] sm:$0xff]
        %v3238 = vld [vmem:[#allocation16 + $0x48] sm:$0xff]
        %v3239 = vld [vmem:[#allocation16 + $0x50] sm:$0xff]
        %v3240 = vld [vmem:[#allocation16 + $0x58] sm:$0xff]
        %v3241 = vld [vmem:[#allocation16 + $0x60] sm:$0xff]
        %v3242 = vld [vmem:[#allocation16 + $0x68] sm:$0xff]
        %v3243 = vld [vmem:[#allocation16 + $0x70] sm:$0xff]
        %v3244 = vld [vmem:[#allocation16 + $0x78] sm:$0xff]
        %3245 = vmatprep.subr.mxu0 0.0
        %3246 = vmatpush1.msra.mxu0 %v3229
        %3247 = vmatprep.subr.mxu0 0.0
        %3248 = vmatpush1.msra.mxu0 %v3230
        %3249 = vmatprep.subr.mxu0 0.0
        %3250 = vmatpush1.msra.mxu0 %v3231
        %3251 = vmatprep.subr.mxu0 0.0
        %3252 = vmatpush1.msra.mxu0 %v3232
        %3253 = vmatprep.subr.mxu0 0.0
        %3254 = vmatpush1.msra.mxu0 %v3233
        %3255 = vmatprep.subr.mxu0 0.0
        %3256 = vmatpush1.msra.mxu0 %v3234
        %3257 = vmatprep.subr.mxu0 0.0
        %3258 = vmatpush1.msra.mxu0 %v3235
        %3259 = vmatprep.subr.mxu0 0.0
        %3260 = vmatpush1.msra.mxu0 %v3236
        %3261 = vmatprep.subr.mxu0 0.0
        %3262 = vmatpush1.msra.mxu0 %v3237
        %3263 = vmatprep.subr.mxu0 0.0
        %3264 = vmatpush1.msra.mxu0 %v3238
        %3265 = vmatprep.subr.mxu0 0.0
        %3266 = vmatpush1.msra.mxu0 %v3239
        %3267 = vmatprep.subr.mxu0 0.0
        %3268 = vmatpush1.msra.mxu0 %v3240
        %3269 = vmatprep.subr.mxu0 0.0
        %3270 = vmatpush1.msra.mxu0 %v3241
        %3271 = vmatprep.subr.mxu0 0.0
        %3272 = vmatpush1.msra.mxu0 %v3242
        %3273 = vmatprep.subr.mxu0 0.0
        %3274 = vmatpush1.msra.mxu0 %v3243
        %3275 = vmatprep.subr.mxu0 0.0
        %3276 = vmatpush1.msra.mxu0 %v3244
        %3277 = vmatprep.subr.mxu0 0.0
        %3278 = vmatpush1.msra.mxu0 0.0
        %3279 = vmatprep.subr.mxu0 0.0
        %3280 = vmatpush1.msra.mxu0 0.0
        %3281 = vmatprep.subr.mxu0 0.0
        %3282 = vmatpush1.msra.mxu0 0.0
        %3283 = vmatprep.subr.mxu0 0.0
        %3284 = vmatpush1.msra.mxu0 0.0
        %3285 = vmatprep.subr.mxu0 0.0
        %3286 = vmatpush1.msra.mxu0 0.0
        %3287 = vmatprep.subr.mxu0 0.0
        %3288 = vmatpush1.msra.mxu0 0.0
        %3289 = vmatprep.subr.mxu0 0.0
        %3290 = vmatpush1.msra.mxu0 0.0
        %3291 = vmatprep.subr.mxu0 0.0
        %3292 = vmatpush1.msra.mxu0 0.0
        %3293 = vmatprep.subr.mxu0 0.0
        %3294 = vmatpush1.msra.mxu0 0.0
        %3295 = vmatprep.subr.mxu0 0.0
        %3296 = vmatpush1.msra.mxu0 0.0
        %3297 = vmatprep.subr.mxu0 0.0
        %3298 = vmatpush1.msra.mxu0 0.0
        %3299 = vmatprep.subr.mxu0 0.0
        %3300 = vmatpush1.msra.mxu0 0.0
        %3301 = vmatprep.subr.mxu0 0.0
        %3302 = vmatpush1.msra.mxu0 0.0
        %3303 = vmatprep.subr.mxu0 0.0
        %3304 = vmatpush1.msra.mxu0 0.0
        %3305 = vmatprep.subr.mxu0 0.0
        %3306 = vmatpush1.msra.mxu0 0.0
        %3307 = vmatprep.subr.mxu0 0.0
        %3308 = vmatpush1.msra.mxu0 0.0
        %3309 = vmatprep.mubr.f32.mxu0 0.0
        %3310 = vmatmul.mubr.f32.gmra.mrb[0].mxu0 %v3226
        %v3311 = vpop.f32.mrb[0].mxu0
        %v3312 = vadd.f32 0.0, %v3311
        %v3313 = vpop.f32.mrb[0].mxu0
        %3314 = vmatprep.mubr.f32.mxu0 0.0
        %3315 = vmatmul.mubr.f32.gmra.mrb[0].mxu0 %v3228
        %v3316 = vpop.f32.mrb[0].mxu0
        %v3317 = vadd.f32 0.0, %v3316
        %v3318 = vpop.f32.mrb[0].mxu0
        %3319 = vdwg.mxu0
        %v3320 = vrcp.pop %v3312
        %v3321 = vrcp.pop %v3317
        %v3322 = vmul.f32 %v3226, %v3320
        %v3323 = vmul.f32 %v3228, %v3321
        %3326 = vrot.lane.b32.xlu0 %v2832, 32
        %v3327 = vpop.permute.xlu0 %3326
        %3328 = vrot.lane.b32.xlu0 %v2834, 32
        %v3329 = vpop.permute.xlu0 %3328
        %3330 = vrot.lane.b32.xlu0 %v2838, 32
        %v3331 = vpop.permute.xlu0 %3330
        %3332 = vrot.lane.b32.xlu0 %v2840, 32
        %v3333 = vpop.permute.xlu0 %3332
        %v3334 = vsel %vm1226, %v3327, %v3329
        %v3335 = vsel %vm1226, %v3331, %v3333
        %3338 = vmatprep.subr.mxu0 0.0
        %3339 = vmatpush1.msra.mxu0 %v3334
        %3340 = vmatprep.subr.mxu0 0.0
        %3341 = vmatpush1.msra.mxu0 %v3335
        %3342 = vmatprep.subr.mxu0 0.0
        %3343 = vmatpush1.msra.mxu0 0.0
        %3344 = vmatprep.subr.mxu0 0.0
        %3345 = vmatpush1.msra.mxu0 0.0
        %3346 = vmatprep.subr.mxu0 0.0
        %3347 = vmatpush1.msra.mxu0 0.0
        %3348 = vmatprep.subr.mxu0 0.0
        %3349 = vmatpush1.msra.mxu0 0.0
        %3350 = vmatprep.subr.mxu0 0.0
        %3351 = vmatpush1.msra.mxu0 0.0
        %3352 = vmatprep.subr.mxu0 0.0
        %3353 = vmatpush1.msra.mxu0 0.0
        %3354 = vmatprep.subr.mxu0 0.0
        %3355 = vmatpush1.msra.mxu0 0.0
        %3356 = vmatprep.subr.mxu0 0.0
        %3357 = vmatpush1.msra.mxu0 0.0
        %3358 = vmatprep.subr.mxu0 0.0
        %3359 = vmatpush1.msra.mxu0 0.0
        %3360 = vmatprep.subr.mxu0 0.0
        %3361 = vmatpush1.msra.mxu0 0.0
        %3362 = vmatprep.subr.mxu0 0.0
        %3363 = vmatpush1.msra.mxu0 0.0
        %3364 = vmatprep.subr.mxu0 0.0
        %3365 = vmatpush1.msra.mxu0 0.0
        %3366 = vmatprep.subr.mxu0 0.0
        %3367 = vmatpush1.msra.mxu0 0.0
        %3368 = vmatprep.subr.mxu0 0.0
        %3369 = vmatpush1.msra.mxu0 0.0
        %3370 = vmatprep.subr.mxu0 0.0
        %3371 = vmatpush1.msra.mxu0 0.0
        %3372 = vmatprep.subr.mxu0 0.0
        %3373 = vmatpush1.msra.mxu0 0.0
        %3374 = vmatprep.subr.mxu0 0.0
        %3375 = vmatpush1.msra.mxu0 0.0
        %3376 = vmatprep.subr.mxu0 0.0
        %3377 = vmatpush1.msra.mxu0 0.0
        %3378 = vmatprep.subr.mxu0 0.0
        %3379 = vmatpush1.msra.mxu0 0.0
        %3380 = vmatprep.subr.mxu0 0.0
        %3381 = vmatpush1.msra.mxu0 0.0
        %3382 = vmatprep.subr.mxu0 0.0
        %3383 = vmatpush1.msra.mxu0 0.0
        %3384 = vmatprep.subr.mxu0 0.0
        %3385 = vmatpush1.msra.mxu0 0.0
        %3386 = vmatprep.subr.mxu0 0.0
        %3387 = vmatpush1.msra.mxu0 0.0
        %3388 = vmatprep.subr.mxu0 0.0
        %3389 = vmatpush1.msra.mxu0 0.0
        %3390 = vmatprep.subr.mxu0 0.0
        %3391 = vmatpush1.msra.mxu0 0.0
        %3392 = vmatprep.subr.mxu0 0.0
        %3393 = vmatpush1.msra.mxu0 0.0
        %3394 = vmatprep.subr.mxu0 0.0
        %3395 = vmatpush1.msra.mxu0 0.0
        %3396 = vmatprep.subr.mxu0 0.0
        %3397 = vmatpush1.msra.mxu0 0.0
        %3398 = vmatprep.subr.mxu0 0.0
        %3399 = vmatpush1.msra.mxu0 0.0
        %3400 = vmatprep.subr.mxu0 0.0
        %3401 = vmatpush1.msra.mxu0 0.0
        %3402 = vmatprep.mubr.f32.mxu0 0.0
        %3403 = vmatmul.mubr.f32.gmra.mrb[0].mxu0 %v2868
        %v3404 = vpop.f32.mrb[0].mxu0
        %v3405 = vadd.f32 0.0, %v3404
        %v3406 = vpop.f32.mrb[0].mxu0
        %3407 = vmatprep.mubr.f32.mxu0 0.0
        %3408 = vmatmul.mubr.f32.gmra.mrb[0].mxu0 %v2871
        %v3409 = vpop.f32.mrb[0].mxu0
        %v3410 = vadd.f32 0.0, %v3409
        %v3411 = vpop.f32.mrb[0].mxu0
        %3412 = vmatprep.mubr.f32.mxu0 0.0
        %3413 = vmatmul.mubr.f32.gmra.mrb[0].mxu0 %v2874
        %v3414 = vpop.f32.mrb[0].mxu0
        %v3415 = vadd.f32 0.0, %v3414
        %v3416 = vpop.f32.mrb[0].mxu0
        %3417 = vmatprep.mubr.f32.mxu0 0.0
        %3418 = vmatmul.mubr.f32.gmra.mrb[0].mxu0 %v2877
        %v3419 = vpop.f32.mrb[0].mxu0
        %v3420 = vadd.f32 0.0, %v3419
        %v3421 = vpop.f32.mrb[0].mxu0
        %3422 = vmatprep.mubr.f32.mxu0 0.0
        %3423 = vmatmul.mubr.f32.gmra.mrb[0].mxu0 %v2880
        %v3424 = vpop.f32.mrb[0].mxu0
        %v3425 = vadd.f32 0.0, %v3424
        %v3426 = vpop.f32.mrb[0].mxu0
        %3427 = vmatprep.mubr.f32.mxu0 0.0
        %3428 = vmatmul.mubr.f32.gmra.mrb[0].mxu0 %v2883
        %v3429 = vpop.f32.mrb[0].mxu0
        %v3430 = vadd.f32 0.0, %v3429
        %v3431 = vpop.f32.mrb[0].mxu0
        %3432 = vmatprep.mubr.f32.mxu0 0.0
        %3433 = vmatmul.mubr.f32.gmra.mrb[0].mxu0 %v2886
        %v3434 = vpop.f32.mrb[0].mxu0
        %v3435 = vadd.f32 0.0, %v3434
        %v3436 = vpop.f32.mrb[0].mxu0
        %3437 = vmatprep.mubr.f32.mxu0 0.0
        %3438 = vmatmul.mubr.f32.gmra.mrb[0].mxu0 %v2889
        %v3439 = vpop.f32.mrb[0].mxu0
        %v3440 = vadd.f32 0.0, %v3439
        %v3441 = vpop.f32.mrb[0].mxu0
        %3442 = vmatprep.mubr.f32.mxu0 0.0
        %3443 = vmatmul.mubr.f32.gmra.mrb[0].mxu0 %v2892
        %v3444 = vpop.f32.mrb[0].mxu0
        %v3445 = vadd.f32 0.0, %v3444
        %v3446 = vpop.f32.mrb[0].mxu0
        %3447 = vmatprep.mubr.f32.mxu0 0.0
        %3448 = vmatmul.mubr.f32.gmra.mrb[0].mxu0 %v2895
        %v3449 = vpop.f32.mrb[0].mxu0
        %v3450 = vadd.f32 0.0, %v3449
        %v3451 = vpop.f32.mrb[0].mxu0
        %3452 = vmatprep.mubr.f32.mxu0 0.0
        %3453 = vmatmul.mubr.f32.gmra.mrb[0].mxu0 %v2898
        %v3454 = vpop.f32.mrb[0].mxu0
        %v3455 = vadd.f32 0.0, %v3454
        %v3456 = vpop.f32.mrb[0].mxu0
        %3457 = vmatprep.mubr.f32.mxu0 0.0
        %3458 = vmatmul.mubr.f32.gmra.mrb[0].mxu0 %v2901
        %v3459 = vpop.f32.mrb[0].mxu0
        %v3460 = vadd.f32 0.0, %v3459
        %v3461 = vpop.f32.mrb[0].mxu0
        %3462 = vmatprep.mubr.f32.mxu0 0.0
        %3463 = vmatmul.mubr.f32.gmra.mrb[0].mxu0 %v2904
        %v3464 = vpop.f32.mrb[0].mxu0
        %v3465 = vadd.f32 0.0, %v3464
        %v3466 = vpop.f32.mrb[0].mxu0
        %3467 = vmatprep.mubr.f32.mxu0 0.0
        %3468 = vmatmul.mubr.f32.gmra.mrb[0].mxu0 %v2907
        %v3469 = vpop.f32.mrb[0].mxu0
        %v3470 = vadd.f32 0.0, %v3469
        %v3471 = vpop.f32.mrb[0].mxu0
        %3472 = vmatprep.mubr.f32.mxu0 0.0
        %3473 = vmatmul.mubr.f32.gmra.mrb[0].mxu0 %v2910
        %v3474 = vpop.f32.mrb[0].mxu0
        %v3475 = vadd.f32 0.0, %v3474
        %v3476 = vpop.f32.mrb[0].mxu0
        %3477 = vmatprep.mubr.f32.mxu0 0.0
        %3478 = vmatmul.mubr.f32.gmra.mrb[0].mxu0 %v2913
        %v3479 = vpop.f32.mrb[0].mxu0
        %v3480 = vadd.f32 0.0, %v3479
        %v3481 = vpop.f32.mrb[0].mxu0
        %3482 = vdwg.mxu0
        %v3483 = vmul.f32 %v3405, %v3060
        %v3484 = vmul.f32 %v3410, %v3061
        %v3485 = vmul.f32 %v3415, %v3062
        %v3486 = vmul.f32 %v3420, %v3063
        %v3487 = vmul.f32 %v3425, %v3064
        %v3488 = vmul.f32 %v3430, %v3065
        %v3489 = vmul.f32 %v3435, %v3066
        %v3490 = vmul.f32 %v3440, %v3067
        %v3491 = vmul.f32 %v3445, %v3068
        %v3492 = vmul.f32 %v3450, %v3069
        %v3493 = vmul.f32 %v3455, %v3070
        %v3494 = vmul.f32 %v3460, %v3071
        %v3495 = vmul.f32 %v3465, %v3072
        %v3496 = vmul.f32 %v3470, %v3073
        %v3497 = vmul.f32 %v3475, %v3074
        %v3498 = vmul.f32 %v3480, %v3075
        %3499 = vmatprep.subr.mxu0 0.0
        %3500 = vmatpush1.msra.mxu0 %v3483
        %3501 = vmatprep.subr.mxu0 0.0
        %3502 = vmatpush1.msra.mxu0 %v3484
        %3503 = vmatprep.subr.mxu0 0.0
        %3504 = vmatpush1.msra.mxu0 %v3485
        %3505 = vmatprep.subr.mxu0 0.0
        %3506 = vmatpush1.msra.mxu0 %v3486
        %3507 = vmatprep.subr.mxu0 0.0
        %3508 = vmatpush1.msra.mxu0 %v3487
        %3509 = vmatprep.subr.mxu0 0.0
        %3510 = vmatpush1.msra.mxu0 %v3488
        %3511 = vmatprep.subr.mxu0 0.0
        %3512 = vmatpush1.msra.mxu0 %v3489
        %3513 = vmatprep.subr.mxu0 0.0
        %3514 = vmatpush1.msra.mxu0 %v3490
        %3515 = vmatprep.subr.mxu0 0.0
        %3516 = vmatpush1.msra.mxu0 %v3491
        %3517 = vmatprep.subr.mxu0 0.0
        %3518 = vmatpush1.msra.mxu0 %v3492
        %3519 = vmatprep.subr.mxu0 0.0
        %3520 = vmatpush1.msra.mxu0 %v3493
        %3521 = vmatprep.subr.mxu0 0.0
        %3522 = vmatpush1.msra.mxu0 %v3494
        %3523 = vmatprep.subr.mxu0 0.0
        %3524 = vmatpush1.msra.mxu0 %v3495
        %3525 = vmatprep.subr.mxu0 0.0
        %3526 = vmatpush1.msra.mxu0 %v3496
        %3527 = vmatprep.subr.mxu0 0.0
        %3528 = vmatpush1.msra.mxu0 %v3497
        %3529 = vmatprep.subr.mxu0 0.0
        %3530 = vmatpush1.msra.mxu0 %v3498
        %3531 = vmatprep.subr.mxu0 0.0
        %3532 = vmatpush1.msra.mxu0 0.0
        %3533 = vmatprep.subr.mxu0 0.0
        %3534 = vmatpush1.msra.mxu0 0.0
        %3535 = vmatprep.subr.mxu0 0.0
        %3536 = vmatpush1.msra.mxu0 0.0
        %3537 = vmatprep.subr.mxu0 0.0
        %3538 = vmatpush1.msra.mxu0 0.0
        %3539 = vmatprep.subr.mxu0 0.0
        %3540 = vmatpush1.msra.mxu0 0.0
        %3541 = vmatprep.subr.mxu0 0.0
        %3542 = vmatpush1.msra.mxu0 0.0
        %3543 = vmatprep.subr.mxu0 0.0
        %3544 = vmatpush1.msra.mxu0 0.0
        %3545 = vmatprep.subr.mxu0 0.0
        %3546 = vmatpush1.msra.mxu0 0.0
        %3547 = vmatprep.subr.mxu0 0.0
        %3548 = vmatpush1.msra.mxu0 0.0
        %3549 = vmatprep.subr.mxu0 0.0
        %3550 = vmatpush1.msra.mxu0 0.0
        %3551 = vmatprep.subr.mxu0 0.0
        %3552 = vmatpush1.msra.mxu0 0.0
        %3553 = vmatprep.subr.mxu0 0.0
        %3554 = vmatpush1.msra.mxu0 0.0
        %3555 = vmatprep.subr.mxu0 0.0
        %3556 = vmatpush1.msra.mxu0 0.0
        %3557 = vmatprep.subr.mxu0 0.0
        %3558 = vmatpush1.msra.mxu0 0.0
        %3559 = vmatprep.subr.mxu0 0.0
        %3560 = vmatpush1.msra.mxu0 0.0
        %3561 = vmatprep.subr.mxu0 0.0
        %3562 = vmatpush1.msra.mxu0 0.0
        %3563 = vmatprep.mubr.f32.mxu0 0.0
        %3564 = vmatmul.mubr.f32.gmra.mrb[0].mxu0 %v3322
        %v3565 = vpop.f32.mrb[0].mxu0
        %v3566 = vadd.f32 0.0, %v3565
        %v3567 = vpop.f32.mrb[0].mxu0
        %3568 = vmatprep.mubr.f32.mxu0 0.0
        %3569 = vmatmul.mubr.f32.gmra.mrb[0].mxu0 %v3323
        %v3570 = vpop.f32.mrb[0].mxu0
        %v3571 = vadd.f32 0.0, %v3570
        %v3572 = vpop.f32.mrb[0].mxu0
        %3573 = vdwg.mxu0
        %s3574 = scalar_lea.vmem %s7, 96
        %v3575 = vld [vmem:[%s3574] sm:$0xff]
        %v3576 = vld [vmem:[%s3574 + $0x8] sm:$0xff]
        %v3577 = vld [vmem:[%s3574 + $0x10] sm:$0xff]
        %v3578 = vld [vmem:[%s3574 + $0x18] sm:$0xff]
        %v3579 = vld [vmem:[%s3574 + $0x20] sm:$0xff]
        %v3580 = vld [vmem:[%s3574 + $0x28] sm:$0xff]
        %v3581 = vlaneseq
        %v3582 = vshrl.u32 %v3581, 7
        %v3583 = vsub.s32 0, %v3582
        %v3584 = vrot.slane %v2732, %v3583
        %v3586 = vsel %vm802, %v3566, 0
        %v3589 = vsel %vm802, %v3571, 0
        %3591 = vmatprep.subr.mxu0 0.0
        %3592 = vmatpush1.msra.mxu0 %v3575
        %3593 = vmatprep.subr.mxu0 0.0
        %3594 = vmatpush1.msra.mxu0 %v3576
        %3595 = vmatprep.subr.mxu0 0.0
        %3596 = vmatpush1.msra.mxu0 %v3577
        %3597 = vmatprep.subr.mxu0 0.0
        %3598 = vmatpush1.msra.mxu0 %v3578
        %3599 = vmatprep.subr.mxu0 0.0
        %3600 = vmatpush1.msra.mxu0 %v3579
        %3601 = vmatprep.subr.mxu0 0.0
        %3602 = vmatpush1.msra.mxu0 %v3580
        %3603 = vmatprep.subr.mxu0 0.0
        %3604 = vmatpush1.msra.mxu0 0.0
        %3605 = vmatprep.subr.mxu0 0.0
        %3606 = vmatpush1.msra.mxu0 0.0
        %3607 = vmatprep.subr.mxu0 0.0
        %3608 = vmatpush1.msra.mxu0 0.0
        %3609 = vmatprep.subr.mxu0 0.0
        %3610 = vmatpush1.msra.mxu0 0.0
        %3611 = vmatprep.subr.mxu0 0.0
        %3612 = vmatpush1.msra.mxu0 0.0
        %3613 = vmatprep.subr.mxu0 0.0
        %3614 = vmatpush1.msra.mxu0 0.0
        %3615 = vmatprep.subr.mxu0 0.0
        %3616 = vmatpush1.msra.mxu0 0.0
        %3617 = vmatprep.subr.mxu0 0.0
        %3618 = vmatpush1.msra.mxu0 0.0
        %3619 = vmatprep.subr.mxu0 0.0
        %3620 = vmatpush1.msra.mxu0 0.0
        %3621 = vmatprep.subr.mxu0 0.0
        %3622 = vmatpush1.msra.mxu0 0.0
        %3623 = vmatprep.subr.mxu0 0.0
        %3624 = vmatpush1.msra.mxu0 0.0
        %3625 = vmatprep.subr.mxu0 0.0
        %3626 = vmatpush1.msra.mxu0 0.0
        %3627 = vmatprep.subr.mxu0 0.0
        %3628 = vmatpush1.msra.mxu0 0.0
        %3629 = vmatprep.subr.mxu0 0.0
        %3630 = vmatpush1.msra.mxu0 0.0
        %3631 = vmatprep.subr.mxu0 0.0
        %3632 = vmatpush1.msra.mxu0 0.0
        %3633 = vmatprep.subr.mxu0 0.0
        %3634 = vmatpush1.msra.mxu0 0.0
        %3635 = vmatprep.subr.mxu0 0.0
        %3636 = vmatpush1.msra.mxu0 0.0
        %3637 = vmatprep.subr.mxu0 0.0
        %3638 = vmatpush1.msra.mxu0 0.0
        %3639 = vmatprep.subr.mxu0 0.0
        %3640 = vmatpush1.msra.mxu0 0.0
        %3641 = vmatprep.subr.mxu0 0.0
        %3642 = vmatpush1.msra.mxu0 0.0
        %3643 = vmatprep.subr.mxu0 0.0
        %3644 = vmatpush1.msra.mxu0 0.0
        %3645 = vmatprep.subr.mxu0 0.0
        %3646 = vmatpush1.msra.mxu0 0.0
        %3647 = vmatprep.subr.mxu0 0.0
        %3648 = vmatpush1.msra.mxu0 0.0
        %3649 = vmatprep.subr.mxu0 0.0
        %3650 = vmatpush1.msra.mxu0 0.0
        %3651 = vmatprep.subr.mxu0 0.0
        %3652 = vmatpush1.msra.mxu0 0.0
        %3653 = vmatprep.subr.mxu0 0.0
        %3654 = vmatpush1.msra.mxu0 0.0
        %3655 = vmatprep.mubr.f32.mxu0 0.0
        %3656 = vmatmul.mubr.f32.gmra.mrb[0].mxu0 %v3586
        %v3657 = vpop.f32.mrb[0].mxu0
        %v3658 = vadd.f32 %v3584, %v3657
        %v3659 = vpop.f32.mrb[0].mxu0
        %3660 = vmatprep.mubr.f32.mxu0 0.0
        %3661 = vmatmul.mubr.f32.gmra.mrb[0].mxu0 %v3589
        %v3662 = vpop.f32.mrb[0].mxu0
        %v3663 = vadd.f32 %v3584, %v3662
        %v3664 = vpop.f32.mrb[0].mxu0
        %3665 = vdwg.mxu0
        %v3666 = vadd.f32 %v2729, %v3658
        %v3667 = vadd.f32 %v2730, %v3663
        %v3668 = vsel %vm802, %v3666, 0.0
        %3669 = vadd.xlane.f32.xlu0 %v3668
        %v3670 = vpop.xlane.xlu0 %3669
        %v3671 = vsel %vm802, %v3667, 0.0
        %3672 = vadd.xlane.f32.xlu0 %v3671
        %v3673 = vpop.xlane.xlu0 %3672
        %v3674 = vmul.f32 %v3670, %v1502
        %v3675 = vmul.f32 %v3673, %v1502
        %v3676 = vsub.f32 %v3666, %v3674
        %v3677 = vsub.f32 %v3667, %v3675
        %v3678 = vmul.f32 %v3676, %v3676
        %v3679 = vmul.f32 %v3677, %v3677
        %v3680 = vsel %vm802, %v3678, 0.0
        %3681 = vadd.xlane.f32.xlu0 %v3680
        %v3682 = vpop.xlane.xlu0 %3681
        %v3683 = vsel %vm802, %v3679, 0.0
        %3684 = vadd.xlane.f32.xlu0 %v3683
        %v3685 = vpop.xlane.xlu0 %3684
        %v3686 = vmul.f32 %v3682, %v1502
        %v3687 = vmul.f32 %v3685, %v1502
        %v3688 = vadd.f32 %v3686, 1e-05
        %v3689 = vadd.f32 %v3687, 1e-05
        %v3690 = vrsqrt.pop %v3688
        %v3691 = vrsqrt.pop %v3689
        %v3692 = vmul.f32 %v3676, %v3690
        %v3693 = vmul.f32 %v3677, %v3691
        %v3694 = vlaneseq
        %v3695 = vshrl.u32 %v3694, 7
        %v3696 = vsub.s32 2, %v3695
        %v3697 = vrot.slane %v2732, %v3696
        %v3698 = vmul.f32 %v3692, %v3697
        %v3699 = vmul.f32 %v3693, %v3697
        %v3700 = vlaneseq
        %v3701 = vshrl.u32 %v3700, 7
        %v3702 = vsub.s32 3, %v3701
        %v3703 = vrot.slane %v2732, %v3702
        %v3704 = vadd.f32 %v3698, %v3703
        %v3705 = vadd.f32 %v3699, %v3703
        %s3706 = scalar_lea.vmem %s8, 96
        %v3707 = vld [vmem:[%s3706] sm:$0xff]
        %v3708 = vld [vmem:[%s3706 + $0x8] sm:$0xff]
        %v3709 = vld [vmem:[%s3706 + $0x10] sm:$0xff]
        %v3710 = vld [vmem:[%s3706 + $0x18] sm:$0xff]
        %v3711 = vld [vmem:[%s3706 + $0x20] sm:$0xff]
        %v3712 = vld [vmem:[%s3706 + $0x28] sm:$0xff]
        %s3713 = scalar_lea.vmem %s9, 2
        %v3714 = vld [vmem:[%s3713] sm:$0x1]
        %v3716 = vlaneseq
        %v3717 = vshrl.u32 %v3716, 7
        %v3718 = vsub.s32 0, %v3717
        %v3719 = vrot.slane %v3714, %v3718
        %v3722 = vsel %vm802, %v3704, 0
        %v3725 = vsel %vm802, %v3705, 0
        %3727 = vmatprep.subr.mxu0 0.0
        %3728 = vmatpush1.msra.mxu0 %v3707
        %3729 = vmatprep.subr.mxu0 0.0
        %3730 = vmatpush1.msra.mxu0 %v3708
        %3731 = vmatprep.subr.mxu0 0.0
        %3732 = vmatpush1.msra.mxu0 %v3709
        %3733 = vmatprep.subr.mxu0 0.0
        %3734 = vmatpush1.msra.mxu0 %v3710
        %3735 = vmatprep.subr.mxu0 0.0
        %3736 = vmatpush1.msra.mxu0 %v3711
        %3737 = vmatprep.subr.mxu0 0.0
        %3738 = vmatpush1.msra.mxu0 %v3712
        %3739 = vmatprep.subr.mxu0 0.0
        %3740 = vmatpush1.msra.mxu0 0.0
        %3741 = vmatprep.subr.mxu0 0.0
        %3742 = vmatpush1.msra.mxu0 0.0
        %3743 = vmatprep.subr.mxu0 0.0
        %3744 = vmatpush1.msra.mxu0 0.0
        %3745 = vmatprep.subr.mxu0 0.0
        %3746 = vmatpush1.msra.mxu0 0.0
        %3747 = vmatprep.subr.mxu0 0.0
        %3748 = vmatpush1.msra.mxu0 0.0
        %3749 = vmatprep.subr.mxu0 0.0
        %3750 = vmatpush1.msra.mxu0 0.0
        %3751 = vmatprep.subr.mxu0 0.0
        %3752 = vmatpush1.msra.mxu0 0.0
        %3753 = vmatprep.subr.mxu0 0.0
        %3754 = vmatpush1.msra.mxu0 0.0
        %3755 = vmatprep.subr.mxu0 0.0
        %3756 = vmatpush1.msra.mxu0 0.0
        %3757 = vmatprep.subr.mxu0 0.0
        %3758 = vmatpush1.msra.mxu0 0.0
        %3759 = vmatprep.subr.mxu0 0.0
        %3760 = vmatpush1.msra.mxu0 0.0
        %3761 = vmatprep.subr.mxu0 0.0
        %3762 = vmatpush1.msra.mxu0 0.0
        %3763 = vmatprep.subr.mxu0 0.0
        %3764 = vmatpush1.msra.mxu0 0.0
        %3765 = vmatprep.subr.mxu0 0.0
        %3766 = vmatpush1.msra.mxu0 0.0
        %3767 = vmatprep.subr.mxu0 0.0
        %3768 = vmatpush1.msra.mxu0 0.0
        %3769 = vmatprep.subr.mxu0 0.0
        %3770 = vmatpush1.msra.mxu0 0.0
        %3771 = vmatprep.subr.mxu0 0.0
        %3772 = vmatpush1.msra.mxu0 0.0
        %3773 = vmatprep.subr.mxu0 0.0
        %3774 = vmatpush1.msra.mxu0 0.0
        %3775 = vmatprep.subr.mxu0 0.0
        %3776 = vmatpush1.msra.mxu0 0.0
        %3777 = vmatprep.subr.mxu0 0.0
        %3778 = vmatpush1.msra.mxu0 0.0
        %3779 = vmatprep.subr.mxu0 0.0
        %3780 = vmatpush1.msra.mxu0 0.0
        %3781 = vmatprep.subr.mxu0 0.0
        %3782 = vmatpush1.msra.mxu0 0.0
        %3783 = vmatprep.subr.mxu0 0.0
        %3784 = vmatpush1.msra.mxu0 0.0
        %3785 = vmatprep.subr.mxu0 0.0
        %3786 = vmatpush1.msra.mxu0 0.0
        %3787 = vmatprep.subr.mxu0 0.0
        %3788 = vmatpush1.msra.mxu0 0.0
        %3789 = vmatprep.subr.mxu0 0.0
        %3790 = vmatpush1.msra.mxu0 0.0
        %3791 = vmatprep.mubr.f32.mxu0 0.0
        %3792 = vmatmul.mubr.f32.gmra.mrb[0].mxu0 %v3722
        %v3793 = vpop.f32.mrb[0].mxu0
        %v3794 = vadd.f32 %v3719, %v3793
        %v3795 = vpop.f32.mrb[0].mxu0
        %3796 = vmatprep.mubr.f32.mxu0 0.0
        %3797 = vmatmul.mubr.f32.gmra.mrb[0].mxu0 %v3725
        %v3798 = vpop.f32.mrb[0].mxu0
        %v3799 = vadd.f32 %v3719, %v3798
        %v3800 = vpop.f32.mrb[0].mxu0
        %3801 = vdwg.mxu0
        %v3802 = vmax.f32 %v3794, 0.0
        %v3803 = vmax.f32 %v3799, 0.0
        %s3804 = scalar_lea.vmem %s10, 128
        %v3805 = vld [vmem:[%s3804] sm:$0xff]
        %v3806 = vld [vmem:[%s3804 + $0x8] sm:$0xff]
        %v3807 = vld [vmem:[%s3804 + $0x10] sm:$0xff]
        %v3808 = vld [vmem:[%s3804 + $0x18] sm:$0xff]
        %v3809 = vld [vmem:[%s3804 + $0x20] sm:$0xff]
        %v3810 = vld [vmem:[%s3804 + $0x28] sm:$0xff]
        %v3811 = vld [vmem:[%s3804 + $0x30] sm:$0xff]
        %v3812 = vld [vmem:[%s3804 + $0x38] sm:$0xff]
        %v3813 = vlaneseq
        %v3814 = vshrl.u32 %v3813, 7
        %v3815 = vsub.s32 1, %v3814
        %v3816 = vrot.slane %v2732, %v3815
        %v3818 = vsel %vm1131, %v3802, 0
        %v3821 = vsel %vm1131, %v3803, 0
        %3823 = vmatprep.subr.mxu0 0.0
        %3824 = vmatpush1.msra.mxu0 %v3805
        %3825 = vmatprep.subr.mxu0 0.0
        %3826 = vmatpush1.msra.mxu0 %v3806
        %3827 = vmatprep.subr.mxu0 0.0
        %3828 = vmatpush1.msra.mxu0 %v3807
        %3829 = vmatprep.subr.mxu0 0.0
        %3830 = vmatpush1.msra.mxu0 %v3808
        %3831 = vmatprep.subr.mxu0 0.0
        %3832 = vmatpush1.msra.mxu0 %v3809
        %3833 = vmatprep.subr.mxu0 0.0
        %3834 = vmatpush1.msra.mxu0 %v3810
        %3835 = vmatprep.subr.mxu0 0.0
        %3836 = vmatpush1.msra.mxu0 %v3811
        %3837 = vmatprep.subr.mxu0 0.0
        %3838 = vmatpush1.msra.mxu0 %v3812
        %3839 = vmatprep.subr.mxu0 0.0
        %3840 = vmatpush1.msra.mxu0 0.0
        %3841 = vmatprep.subr.mxu0 0.0
        %3842 = vmatpush1.msra.mxu0 0.0
        %3843 = vmatprep.subr.mxu0 0.0
        %3844 = vmatpush1.msra.mxu0 0.0
        %3845 = vmatprep.subr.mxu0 0.0
        %3846 = vmatpush1.msra.mxu0 0.0
        %3847 = vmatprep.subr.mxu0 0.0
        %3848 = vmatpush1.msra.mxu0 0.0
        %3849 = vmatprep.subr.mxu0 0.0
        %3850 = vmatpush1.msra.mxu0 0.0
        %3851 = vmatprep.subr.mxu0 0.0
        %3852 = vmatpush1.msra.mxu0 0.0
        %3853 = vmatprep.subr.mxu0 0.0
        %3854 = vmatpush1.msra.mxu0 0.0
        %3855 = vmatprep.subr.mxu0 0.0
        %3856 = vmatpush1.msra.mxu0 0.0
        %3857 = vmatprep.subr.mxu0 0.0
        %3858 = vmatpush1.msra.mxu0 0.0
        %3859 = vmatprep.subr.mxu0 0.0
        %3860 = vmatpush1.msra.mxu0 0.0
        %3861 = vmatprep.subr.mxu0 0.0
        %3862 = vmatpush1.msra.mxu0 0.0
        %3863 = vmatprep.subr.mxu0 0.0
        %3864 = vmatpush1.msra.mxu0 0.0
        %3865 = vmatprep.subr.mxu0 0.0
        %3866 = vmatpush1.msra.mxu0 0.0
        %3867 = vmatprep.subr.mxu0 0.0
        %3868 = vmatpush1.msra.mxu0 0.0
        %3869 = vmatprep.subr.mxu0 0.0
        %3870 = vmatpush1.msra.mxu0 0.0
        %3871 = vmatprep.subr.mxu0 0.0
        %3872 = vmatpush1.msra.mxu0 0.0
        %3873 = vmatprep.subr.mxu0 0.0
        %3874 = vmatpush1.msra.mxu0 0.0
        %3875 = vmatprep.subr.mxu0 0.0
        %3876 = vmatpush1.msra.mxu0 0.0
        %3877 = vmatprep.subr.mxu0 0.0
        %3878 = vmatpush1.msra.mxu0 0.0
        %3879 = vmatprep.subr.mxu0 0.0
        %3880 = vmatpush1.msra.mxu0 0.0
        %3881 = vmatprep.subr.mxu0 0.0
        %3882 = vmatpush1.msra.mxu0 0.0
        %3883 = vmatprep.subr.mxu0 0.0
        %3884 = vmatpush1.msra.mxu0 0.0
        %3885 = vmatprep.subr.mxu0 0.0
        %3886 = vmatpush1.msra.mxu0 0.0
        %3887 = vmatprep.mubr.f32.mxu0 0.0
        %3888 = vmatmul.mubr.f32.gmra.mrb[0].mxu0 %v3818
        %v3889 = vpop.f32.mrb[0].mxu0
        %v3890 = vadd.f32 %v3816, %v3889
        %v3891 = vpop.f32.mrb[0].mxu0
        %3892 = vmatprep.mubr.f32.mxu0 0.0
        %3893 = vmatmul.mubr.f32.gmra.mrb[0].mxu0 %v3821
        %v3894 = vpop.f32.mrb[0].mxu0
        %v3895 = vadd.f32 %v3816, %v3894
        %v3896 = vpop.f32.mrb[0].mxu0
        %3897 = vdwg.mxu0
        %v3898 = vadd.f32 %v3704, %v3890
        %v3899 = vadd.f32 %v3705, %v3895
        %v3900 = vsel %vm802, %v3898, 0.0
        %3901 = vadd.xlane.f32.xlu0 %v3900
        %v3902 = vpop.xlane.xlu0 %3901
        %v3903 = vsel %vm802, %v3899, 0.0
        %3904 = vadd.xlane.f32.xlu0 %v3903
        %v3905 = vpop.xlane.xlu0 %3904
        %v3906 = vmul.f32 %v3902, %v1502
        %v3907 = vmul.f32 %v3905, %v1502
        %v3908 = vsub.f32 %v3898, %v3906
        %v3909 = vsub.f32 %v3899, %v3907
        %v3910 = vmul.f32 %v3908, %v3908
        %v3911 = vmul.f32 %v3909, %v3909
        %v3912 = vsel %vm802, %v3910, 0.0
        %3913 = vadd.xlane.f32.xlu0 %v3912
        %v3914 = vpop.xlane.xlu0 %3913
        %v3915 = vsel %vm802, %v3911, 0.0
        %3916 = vadd.xlane.f32.xlu0 %v3915
        %v3917 = vpop.xlane.xlu0 %3916
        %v3918 = vmul.f32 %v3914, %v1502
        %v3919 = vmul.f32 %v3917, %v1502
        %v3920 = vadd.f32 %v3918, 1e-05
        %v3921 = vadd.f32 %v3919, 1e-05
        %v3922 = vrsqrt.pop %v3920
        %v3923 = vrsqrt.pop %v3921
        %v3924 = vmul.f32 %v3908, %v3922
        %v3925 = vmul.f32 %v3909, %v3923
        %v3926 = vlaneseq
        %v3927 = vshrl.u32 %v3926, 7
        %v3928 = vsub.s32 4, %v3927
        %v3929 = vrot.slane %v2732, %v3928
        %v3930 = vmul.f32 %v3924, %v3929
        %v3931 = vmul.f32 %v3925, %v3929
        %v3932 = vlaneseq
        %v3933 = vshrl.u32 %v3932, 7
        %v3934 = vsub.s32 5, %v3933
        %v3935 = vrot.slane %v2732, %v3934
        %v3936 = vadd.f32 %v3930, %v3935
        %v3937 = vadd.f32 %v3931, %v3935
        %s3938 = scalar_lea.vmem %s11, 24
        %v3939 = vld [vmem:[%s3938] sm:$0x3f]
        %s3940 = scalar_lea.vmem %s5, 288
        %v3941 = vld [vmem:[%s3940] sm:$0xff]
        %v3942 = vld [vmem:[%s3940 + $0x8] sm:$0xff]
        %v3943 = vld [vmem:[%s3940 + $0x10] sm:$0xff]
        %v3944 = vld [vmem:[%s3940 + $0x18] sm:$0xff]
        %v3945 = vld [vmem:[%s3940 + $0x20] sm:$0xff]
        %v3946 = vld [vmem:[%s3940 + $0x28] sm:$0xff]
        %v3947 = vld [vmem:[%s3940 + $0x30] sm:$0xff]
        %v3948 = vld [vmem:[%s3940 + $0x38] sm:$0xff]
        %v3949 = vld [vmem:[%s3940 + $0x40] sm:$0xff]
        %v3950 = vld [vmem:[%s3940 + $0x48] sm:$0xff]
        %v3951 = vld [vmem:[%s3940 + $0x50] sm:$0xff]
        %v3952 = vld [vmem:[%s3940 + $0x58] sm:$0xff]
        %s3953 = scalar_lea.vmem [#allocation11], 6
        %v3954 = vld [vmem:[%s3953] sm:$0x3]
        %v3956 = vlaneseq
        %v3957 = vshrl.u32 %v3956, 7
        %v3958 = vsub.s32 0, %v3957
        %v3959 = vrot.slane %v3954, %v3958
        %v3960 = vlaneseq
        %v3961 = vshrl.u32 %v3960, 7
        %v3962 = vsub.s32 1, %v3961
        %v3963 = vrot.slane %v3954, %v3962
        %v3967 = vsel %vm802, %v3936, 0
        %v3970 = vsel %vm802, %v3937, 0
        %3972 = vmatprep.subr.mxu0 %v3942
        %3973 = vmatpush1.msra.mxu0 %v3941
        %3974 = vmatprep.subr.mxu0 %v3944
        %3975 = vmatpush1.msra.mxu0 %v3943
        %3976 = vmatprep.subr.mxu0 %v3946
        %3977 = vmatpush1.msra.mxu0 %v3945
        %3978 = vmatprep.subr.mxu0 %v3948
        %3979 = vmatpush1.msra.mxu0 %v3947
        %3980 = vmatprep.subr.mxu0 %v3950
        %3981 = vmatpush1.msra.mxu0 %v3949
        %3982 = vmatprep.subr.mxu0 %v3952
        %3983 = vmatpush1.msra.mxu0 %v3951
        %3984 = vmatprep.subr.mxu0 0.0
        %3985 = vmatpush1.msra.mxu0 0.0
        %3986 = vmatprep.subr.mxu0 0.0
        %3987 = vmatpush1.msra.mxu0 0.0
        %3988 = vmatprep.subr.mxu0 0.0
        %3989 = vmatpush1.msra.mxu0 0.0
        %3990 = vmatprep.subr.mxu0 0.0
        %3991 = vmatpush1.msra.mxu0 0.0
        %3992 = vmatprep.subr.mxu0 0.0
        %3993 = vmatpush1.msra.mxu0 0.0
        %3994 = vmatprep.subr.mxu0 0.0
        %3995 = vmatpush1.msra.mxu0 0.0
        %3996 = vmatprep.subr.mxu0 0.0
        %3997 = vmatpush1.msra.mxu0 0.0
        %3998 = vmatprep.subr.mxu0 0.0
        %3999 = vmatpush1.msra.mxu0 0.0
        %4000 = vmatprep.subr.mxu0 0.0
        %4001 = vmatpush1.msra.mxu0 0.0
        %4002 = vmatprep.subr.mxu0 0.0
        %4003 = vmatpush1.msra.mxu0 0.0
        %4004 = vmatprep.subr.mxu0 0.0
        %4005 = vmatpush1.msra.mxu0 0.0
        %4006 = vmatprep.subr.mxu0 0.0
        %4007 = vmatpush1.msra.mxu0 0.0
        %4008 = vmatprep.subr.mxu0 0.0
        %4009 = vmatpush1.msra.mxu0 0.0
        %4010 = vmatprep.subr.mxu0 0.0
        %4011 = vmatpush1.msra.mxu0 0.0
        %4012 = vmatprep.subr.mxu0 0.0
        %4013 = vmatpush1.msra.mxu0 0.0
        %4014 = vmatprep.subr.mxu0 0.0
        %4015 = vmatpush1.msra.mxu0 0.0
        %4016 = vmatprep.subr.mxu0 0.0
        %4017 = vmatpush1.msra.mxu0 0.0
        %4018 = vmatprep.subr.mxu0 0.0
        %4019 = vmatpush1.msra.mxu0 0.0
        %4020 = vmatprep.subr.mxu0 0.0
        %4021 = vmatpush1.msra.mxu0 0.0
        %4022 = vmatprep.subr.mxu0 0.0
        %4023 = vmatpush1.msra.mxu0 0.0
        %4024 = vmatprep.subr.mxu0 0.0
        %4025 = vmatpush1.msra.mxu0 0.0
        %4026 = vmatprep.subr.mxu0 0.0
        %4027 = vmatpush1.msra.mxu0 0.0
        %4028 = vmatprep.subr.mxu0 0.0
        %4029 = vmatpush1.msra.mxu0 0.0
        %4030 = vmatprep.subr.mxu0 0.0
        %4031 = vmatpush1.msra.mxu0 0.0
        %4032 = vmatprep.subr.mxu0 0.0
        %4033 = vmatpush1.msra.mxu0 0.0
        %4034 = vmatprep.subr.mxu0 0.0
        %4035 = vmatpush1.msra.mxu0 0.0
        %4036 = vmatprep.mubr.f32.mxu0 0.0
        %4037 = vmatmul.mubr.f32.gmra.mrb[0].mxu0 %v3967
        %v4038 = vpop.f32.mrb[0].mxu0
        %v4039 = vadd.f32 %v3959, %v4038
        %v4040 = vpop.f32.mrb[0].mxu0
        %v4041 = vadd.f32 %v3963, %v4040
        %4042 = vmatprep.mubr.f32.mxu0 0.0
        %4043 = vmatmul.mubr.f32.gmra.mrb[0].mxu0 %v3970
        %v4044 = vpop.f32.mrb[0].mxu0
        %v4045 = vadd.f32 %v3959, %v4044
        %v4046 = vpop.f32.mrb[0].mxu0
        %v4047 = vadd.f32 %v3963, %v4046
        %4048 = vdwg.mxu0
        %4051 = vrot.lane.b32.xlu0 %v4039, 80
        %v4052 = vpop.permute.xlu0 %4051
        %4053 = vrot.lane.b32.xlu0 %v4045, 80
        %v4054 = vpop.permute.xlu0 %4053
        %4057 = vmatprep.subr.mxu0 0.0
        %4058 = vmatpush1.msra.mxu0 %v4052
        %4059 = vmatprep.subr.mxu0 0.0
        %4060 = vmatpush1.msra.mxu0 %v4054
        %4061 = vmatprep.subr.mxu0 0.0
        %4062 = vmatpush1.msra.mxu0 0.0
        %4063 = vmatprep.subr.mxu0 0.0
        %4064 = vmatpush1.msra.mxu0 0.0
        %4065 = vmatprep.subr.mxu0 0.0
        %4066 = vmatpush1.msra.mxu0 0.0
        %4067 = vmatprep.subr.mxu0 0.0
        %4068 = vmatpush1.msra.mxu0 0.0
        %4069 = vmatprep.subr.mxu0 0.0
        %4070 = vmatpush1.msra.mxu0 0.0
        %4071 = vmatprep.subr.mxu0 0.0
        %4072 = vmatpush1.msra.mxu0 0.0
        %4073 = vmatprep.subr.mxu0 0.0
        %4074 = vmatpush1.msra.mxu0 0.0
        %4075 = vmatprep.subr.mxu0 0.0
        %4076 = vmatpush1.msra.mxu0 0.0
        %4077 = vmatprep.subr.mxu0 0.0
        %4078 = vmatpush1.msra.mxu0 0.0
        %4079 = vmatprep.subr.mxu0 0.0
        %4080 = vmatpush1.msra.mxu0 0.0
        %4081 = vmatprep.subr.mxu0 0.0
        %4082 = vmatpush1.msra.mxu0 0.0
        %4083 = vmatprep.subr.mxu0 0.0
        %4084 = vmatpush1.msra.mxu0 0.0
        %4085 = vmatprep.subr.mxu0 0.0
        %4086 = vmatpush1.msra.mxu0 0.0
        %4087 = vmatprep.subr.mxu0 0.0
        %4088 = vmatpush1.msra.mxu0 0.0
        %4089 = vmatprep.subr.mxu0 0.0
        %4090 = vmatpush1.msra.mxu0 0.0
        %4091 = vmatprep.subr.mxu0 0.0
        %4092 = vmatpush1.msra.mxu0 0.0
        %4093 = vmatprep.subr.mxu0 0.0
        %4094 = vmatpush1.msra.mxu0 0.0
        %4095 = vmatprep.subr.mxu0 0.0
        %4096 = vmatpush1.msra.mxu0 0.0
        %4097 = vmatprep.subr.mxu0 0.0
        %4098 = vmatpush1.msra.mxu0 0.0
        %4099 = vmatprep.subr.mxu0 0.0
        %4100 = vmatpush1.msra.mxu0 0.0
        %4101 = vmatprep.subr.mxu0 0.0
        %4102 = vmatpush1.msra.mxu0 0.0
        %4103 = vmatprep.subr.mxu0 0.0
        %4104 = vmatpush1.msra.mxu0 0.0
        %4105 = vmatprep.subr.mxu0 0.0
        %4106 = vmatpush1.msra.mxu0 0.0
        %4107 = vmatprep.subr.mxu0 0.0
        %4108 = vmatpush1.msra.mxu0 0.0
        %4109 = vmatprep.subr.mxu0 0.0
        %4110 = vmatpush1.msra.mxu0 0.0
        %4111 = vmatprep.subr.mxu0 0.0
        %4112 = vmatpush1.msra.mxu0 0.0
        %4113 = vmatprep.subr.mxu0 0.0
        %4114 = vmatpush1.msra.mxu0 0.0
        %4115 = vmatprep.subr.mxu0 0.0
        %4116 = vmatpush1.msra.mxu0 0.0
        %4117 = vmatprep.subr.mxu0 0.0
        %4118 = vmatpush1.msra.mxu0 0.0
        %4119 = vmatprep.subr.mxu0 0.0
        %4120 = vmatpush1.msra.mxu0 0.0
        %4121 = vmatprep.mubr.f32.mxu0 0.0
        %4122 = vmatmul.mubr.f32.gmra.mrb[0].mxu0 %v2868
        %v4123 = vpop.f32.mrb[0].mxu0
        %v4124 = vadd.f32 0.0, %v4123
        %v4125 = vpop.f32.mrb[0].mxu0
        %4126 = vmatprep.mubr.f32.mxu0 0.0
        %4127 = vmatmul.mubr.f32.gmra.mrb[0].mxu0 %v2871
        %v4128 = vpop.f32.mrb[0].mxu0
        %v4129 = vadd.f32 0.0, %v4128
        %v4130 = vpop.f32.mrb[0].mxu0
        %4131 = vmatprep.mubr.f32.mxu0 0.0
        %4132 = vmatmul.mubr.f32.gmra.mrb[0].mxu0 %v2874
        %v4133 = vpop.f32.mrb[0].mxu0
        %v4134 = vadd.f32 0.0, %v4133
        %v4135 = vpop.f32.mrb[0].mxu0
        %4136 = vmatprep.mubr.f32.mxu0 0.0
        %4137 = vmatmul.mubr.f32.gmra.mrb[0].mxu0 %v2877
        %v4138 = vpop.f32.mrb[0].mxu0
        %v4139 = vadd.f32 0.0, %v4138
        %v4140 = vpop.f32.mrb[0].mxu0
        %4141 = vmatprep.mubr.f32.mxu0 0.0
        %4142 = vmatmul.mubr.f32.gmra.mrb[0].mxu0 %v2880
        %v4143 = vpop.f32.mrb[0].mxu0
        %v4144 = vadd.f32 0.0, %v4143
        %v4145 = vpop.f32.mrb[0].mxu0
        %4146 = vmatprep.mubr.f32.mxu0 0.0
        %4147 = vmatmul.mubr.f32.gmra.mrb[0].mxu0 %v2883
        %v4148 = vpop.f32.mrb[0].mxu0
        %v4149 = vadd.f32 0.0, %v4148
        %v4150 = vpop.f32.mrb[0].mxu0
        %4151 = vmatprep.mubr.f32.mxu0 0.0
        %4152 = vmatmul.mubr.f32.gmra.mrb[0].mxu0 %v2886
        %v4153 = vpop.f32.mrb[0].mxu0
        %v4154 = vadd.f32 0.0, %v4153
        %v4155 = vpop.f32.mrb[0].mxu0
        %4156 = vmatprep.mubr.f32.mxu0 0.0
        %4157 = vmatmul.mubr.f32.gmra.mrb[0].mxu0 %v2889
        %v4158 = vpop.f32.mrb[0].mxu0
        %v4159 = vadd.f32 0.0, %v4158
        %v4160 = vpop.f32.mrb[0].mxu0
        %4161 = vmatprep.mubr.f32.mxu0 0.0
        %4162 = vmatmul.mubr.f32.gmra.mrb[0].mxu0 %v2892
        %v4163 = vpop.f32.mrb[0].mxu0
        %v4164 = vadd.f32 0.0, %v4163
        %v4165 = vpop.f32.mrb[0].mxu0
        %4166 = vmatprep.mubr.f32.mxu0 0.0
        %4167 = vmatmul.mubr.f32.gmra.mrb[0].mxu0 %v2895
        %v4168 = vpop.f32.mrb[0].mxu0
        %v4169 = vadd.f32 0.0, %v4168
        %v4170 = vpop.f32.mrb[0].mxu0
        %4171 = vmatprep.mubr.f32.mxu0 0.0
        %4172 = vmatmul.mubr.f32.gmra.mrb[0].mxu0 %v2898
        %v4173 = vpop.f32.mrb[0].mxu0
        %v4174 = vadd.f32 0.0, %v4173
        %v4175 = vpop.f32.mrb[0].mxu0
        %4176 = vmatprep.mubr.f32.mxu0 0.0
        %4177 = vmatmul.mubr.f32.gmra.mrb[0].mxu0 %v2901
        %v4178 = vpop.f32.mrb[0].mxu0
        %v4179 = vadd.f32 0.0, %v4178
        %v4180 = vpop.f32.mrb[0].mxu0
        %4181 = vmatprep.mubr.f32.mxu0 0.0
        %4182 = vmatmul.mubr.f32.gmra.mrb[0].mxu0 %v2904
        %v4183 = vpop.f32.mrb[0].mxu0
        %v4184 = vadd.f32 0.0, %v4183
        %v4185 = vpop.f32.mrb[0].mxu0
        %4186 = vmatprep.mubr.f32.mxu0 0.0
        %4187 = vmatmul.mubr.f32.gmra.mrb[0].mxu0 %v2907
        %v4188 = vpop.f32.mrb[0].mxu0
        %v4189 = vadd.f32 0.0, %v4188
        %v4190 = vpop.f32.mrb[0].mxu0
        %4191 = vmatprep.mubr.f32.mxu0 0.0
        %4192 = vmatmul.mubr.f32.gmra.mrb[0].mxu0 %v2910
        %v4193 = vpop.f32.mrb[0].mxu0
        %v4194 = vadd.f32 0.0, %v4193
        %v4195 = vpop.f32.mrb[0].mxu0
        %4196 = vmatprep.mubr.f32.mxu0 0.0
        %4197 = vmatmul.mubr.f32.gmra.mrb[0].mxu0 %v2913
        %v4198 = vpop.f32.mrb[0].mxu0
        %v4199 = vadd.f32 0.0, %v4198
        %v4200 = vpop.f32.mrb[0].mxu0
        %4201 = vdwg.mxu0
        %v4202 = vmul.f32 %v4124, %v3060
        %v4203 = vmul.f32 %v4129, %v3061
        %v4204 = vmul.f32 %v4134, %v3062
        %v4205 = vmul.f32 %v4139, %v3063
        %v4206 = vmul.f32 %v4144, %v3064
        %v4207 = vmul.f32 %v4149, %v3065
        %v4208 = vmul.f32 %v4154, %v3066
        %v4209 = vmul.f32 %v4159, %v3067
        %v4210 = vmul.f32 %v4164, %v3068
        %v4211 = vmul.f32 %v4169, %v3069
        %v4212 = vmul.f32 %v4174, %v3070
        %v4213 = vmul.f32 %v4179, %v3071
        %v4214 = vmul.f32 %v4184, %v3072
        %v4215 = vmul.f32 %v4189, %v3073
        %v4216 = vmul.f32 %v4194, %v3074
        %v4217 = vmul.f32 %v4199, %v3075
        %v4218 = vsel %vm802, %v4039, 0
        %v4220 = vsel %vm802, %v4045, 0
        %v4223 = vsel %vm802, %v4202, 0
        %v4226 = vsel %vm802, %v4203, 0
        %v4229 = vsel %vm802, %v4204, 0
        %v4232 = vsel %vm802, %v4205, 0
        %v4235 = vsel %vm802, %v4206, 0
        %v4238 = vsel %vm802, %v4207, 0
        %v4241 = vsel %vm802, %v4208, 0
        %v4244 = vsel %vm802, %v4209, 0
        %v4247 = vsel %vm802, %v4210, 0
        %v4250 = vsel %vm802, %v4211, 0
        %v4253 = vsel %vm802, %v4212, 0
        %v4256 = vsel %vm802, %v4213, 0
        %v4259 = vsel %vm802, %v4214, 0
        %v4262 = vsel %vm802, %v4215, 0
        %v4265 = vsel %vm802, %v4216, 0
        %v4268 = vsel %vm802, %v4217, 0
        %4270 = vmatprep.subr.mxu0 0.0
        %4271 = vmatpush1.xpose.msra.mxu0 %v4223
        %4272 = vmatprep.subr.mxu0 0.0
        %4273 = vmatpush1.xpose.msra.mxu0 %v4226
        %4274 = vmatprep.subr.mxu0 0.0
        %4275 = vmatpush1.xpose.msra.mxu0 %v4229
        %4276 = vmatprep.subr.mxu0 0.0
        %4277 = vmatpush1.xpose.msra.mxu0 %v4232
        %4278 = vmatprep.subr.mxu0 0.0
        %4279 = vmatpush1.xpose.msra.mxu0 %v4235
        %4280 = vmatprep.subr.mxu0 0.0
        %4281 = vmatpush1.xpose.msra.mxu0 %v4238
        %4282 = vmatprep.subr.mxu0 0.0
        %4283 = vmatpush1.xpose.msra.mxu0 %v4241
        %4284 = vmatprep.subr.mxu0 0.0
        %4285 = vmatpush1.xpose.msra.mxu0 %v4244
        %4286 = vmatprep.subr.mxu0 0.0
        %4287 = vmatpush1.xpose.msra.mxu0 %v4247
        %4288 = vmatprep.subr.mxu0 0.0
        %4289 = vmatpush1.xpose.msra.mxu0 %v4250
        %4290 = vmatprep.subr.mxu0 0.0
        %4291 = vmatpush1.xpose.msra.mxu0 %v4253
        %4292 = vmatprep.subr.mxu0 0.0
        %4293 = vmatpush1.xpose.msra.mxu0 %v4256
        %4294 = vmatprep.subr.mxu0 0.0
        %4295 = vmatpush1.xpose.msra.mxu0 %v4259
        %4296 = vmatprep.subr.mxu0 0.0
        %4297 = vmatpush1.xpose.msra.mxu0 %v4262
        %4298 = vmatprep.subr.mxu0 0.0
        %4299 = vmatpush1.xpose.msra.mxu0 %v4265
        %4300 = vmatprep.subr.mxu0 0.0
        %4301 = vmatpush1.xpose.msra.mxu0 %v4268
        %4302 = vmatprep.subr.mxu0 0.0
        %4303 = vmatpush1.xpose.msra.mxu0 0.0
        %4304 = vmatprep.subr.mxu0 0.0
        %4305 = vmatpush1.xpose.msra.mxu0 0.0
        %4306 = vmatprep.subr.mxu0 0.0
        %4307 = vmatpush1.xpose.msra.mxu0 0.0
        %4308 = vmatprep.subr.mxu0 0.0
        %4309 = vmatpush1.xpose.msra.mxu0 0.0
        %4310 = vmatprep.subr.mxu0 0.0
        %4311 = vmatpush1.xpose.msra.mxu0 0.0
        %4312 = vmatprep.subr.mxu0 0.0
        %4313 = vmatpush1.xpose.msra.mxu0 0.0
        %4314 = vmatprep.subr.mxu0 0.0
        %4315 = vmatpush1.xpose.msra.mxu0 0.0
        %4316 = vmatprep.subr.mxu0 0.0
        %4317 = vmatpush1.xpose.msra.mxu0 0.0
        %4318 = vmatprep.subr.mxu0 0.0
        %4319 = vmatpush1.xpose.msra.mxu0 0.0
        %4320 = vmatprep.subr.mxu0 0.0
        %4321 = vmatpush1.xpose.msra.mxu0 0.0
        %4322 = vmatprep.subr.mxu0 0.0
        %4323 = vmatpush1.xpose.msra.mxu0 0.0
        %4324 = vmatprep.subr.mxu0 0.0
        %4325 = vmatpush1.xpose.msra.mxu0 0.0
        %4326 = vmatprep.subr.mxu0 0.0
        %4327 = vmatpush1.xpose.msra.mxu0 0.0
        %4328 = vmatprep.subr.mxu0 0.0
        %4329 = vmatpush1.xpose.msra.mxu0 0.0
        %4330 = vmatprep.subr.mxu0 0.0
        %4331 = vmatpush1.xpose.msra.mxu0 0.0
        %4332 = vmatprep.subr.mxu0 0.0
        %4333 = vmatpush1.xpose.msra.mxu0 0.0
        %4334 = vmatprep.mubr.f32.mxu0 0.0
        %4335 = vmatmul.mubr.f32.gmra.mrb[0].mxu0 %v4218
        %v4336 = vpop.f32.mrb[0].mxu0
        %v4337 = vadd.f32 0.0, %v4336
        %v4338 = vpop.f32.mrb[0].mxu0
        %4339 = vmatprep.mubr.f32.mxu0 0.0
        %4340 = vmatmul.mubr.f32.gmra.mrb[0].mxu0 %v4220
        %v4341 = vpop.f32.mrb[0].mxu0
        %v4342 = vadd.f32 0.0, %v4341
        %v4343 = vpop.f32.mrb[0].mxu0
        %4344 = vdwg.mxu0
        %4345 = vmax.xlane.f32.xlu0 %v4337
        %v4346 = vpop.xlane.xlu0 %4345
        %4347 = vmax.xlane.f32.xlu0 %v4342
        %v4348 = vpop.xlane.xlu0 %4347
        %v4349 = vsub.f32 %v4337, %v4346
        %v4350 = vsub.f32 %v4342, %v4348
        %v4351 = vmul.f32 %v4349, 1.442695
        %v4352 = vpow.pop %v4351
        %v4353 = vmul.f32 %v4350, 1.442695
        %v4354 = vpow.pop %v4353
        %4355 = vmatprep.subr.mxu0 0.0
        %4356 = vmatpush1.msra.mxu0 %v3229
        %4357 = vmatprep.subr.mxu0 0.0
        %4358 = vmatpush1.msra.mxu0 %v3230
        %4359 = vmatprep.subr.mxu0 0.0
        %4360 = vmatpush1.msra.mxu0 %v3231
        %4361 = vmatprep.subr.mxu0 0.0
        %4362 = vmatpush1.msra.mxu0 %v3232
        %4363 = vmatprep.subr.mxu0 0.0
        %4364 = vmatpush1.msra.mxu0 %v3233
        %4365 = vmatprep.subr.mxu0 0.0
        %4366 = vmatpush1.msra.mxu0 %v3234
        %4367 = vmatprep.subr.mxu0 0.0
        %4368 = vmatpush1.msra.mxu0 %v3235
        %4369 = vmatprep.subr.mxu0 0.0
        %4370 = vmatpush1.msra.mxu0 %v3236
        %4371 = vmatprep.subr.mxu0 0.0
        %4372 = vmatpush1.msra.mxu0 %v3237
        %4373 = vmatprep.subr.mxu0 0.0
        %4374 = vmatpush1.msra.mxu0 %v3238
        %4375 = vmatprep.subr.mxu0 0.0
        %4376 = vmatpush1.msra.mxu0 %v3239
        %4377 = vmatprep.subr.mxu0 0.0
        %4378 = vmatpush1.msra.mxu0 %v3240
        %4379 = vmatprep.subr.mxu0 0.0
        %4380 = vmatpush1.msra.mxu0 %v3241
        %4381 = vmatprep.subr.mxu0 0.0
        %4382 = vmatpush1.msra.mxu0 %v3242
        %4383 = vmatprep.subr.mxu0 0.0
        %4384 = vmatpush1.msra.mxu0 %v3243
        %4385 = vmatprep.subr.mxu0 0.0
        %4386 = vmatpush1.msra.mxu0 %v3244
        %4387 = vmatprep.subr.mxu0 0.0
        %4388 = vmatpush1.msra.mxu0 0.0
        %4389 = vmatprep.subr.mxu0 0.0
        %4390 = vmatpush1.msra.mxu0 0.0
        %4391 = vmatprep.subr.mxu0 0.0
        %4392 = vmatpush1.msra.mxu0 0.0
        %4393 = vmatprep.subr.mxu0 0.0
        %4394 = vmatpush1.msra.mxu0 0.0
        %4395 = vmatprep.subr.mxu0 0.0
        %4396 = vmatpush1.msra.mxu0 0.0
        %4397 = vmatprep.subr.mxu0 0.0
        %4398 = vmatpush1.msra.mxu0 0.0
        %4399 = vmatprep.subr.mxu0 0.0
        %4400 = vmatpush1.msra.mxu0 0.0
        %4401 = vmatprep.subr.mxu0 0.0
        %4402 = vmatpush1.msra.mxu0 0.0
        %4403 = vmatprep.subr.mxu0 0.0
        %4404 = vmatpush1.msra.mxu0 0.0
        %4405 = vmatprep.subr.mxu0 0.0
        %4406 = vmatpush1.msra.mxu0 0.0
        %4407 = vmatprep.subr.mxu0 0.0
        %4408 = vmatpush1.msra.mxu0 0.0
        %4409 = vmatprep.subr.mxu0 0.0
        %4410 = vmatpush1.msra.mxu0 0.0
        %4411 = vmatprep.subr.mxu0 0.0
        %4412 = vmatpush1.msra.mxu0 0.0
        %4413 = vmatprep.subr.mxu0 0.0
        %4414 = vmatpush1.msra.mxu0 0.0
        %4415 = vmatprep.subr.mxu0 0.0
        %4416 = vmatpush1.msra.mxu0 0.0
        %4417 = vmatprep.subr.mxu0 0.0
        %4418 = vmatpush1.msra.mxu0 0.0
        %4419 = vmatprep.mubr.f32.mxu0 0.0
        %4420 = vmatmul.mubr.f32.gmra.mrb[0].mxu0 %v4352
        %v4421 = vpop.f32.mrb[0].mxu0
        %v4422 = vadd.f32 0.0, %v4421
        %v4423 = vpop.f32.mrb[0].mxu0
        %4424 = vmatprep.mubr.f32.mxu0 0.0
        %4425 = vmatmul.mubr.f32.gmra.mrb[0].mxu0 %v4354
        %v4426 = vpop.f32.mrb[0].mxu0
        %v4427 = vadd.f32 0.0, %v4426
        %v4428 = vpop.f32.mrb[0].mxu0
        %4429 = vdwg.mxu0
        %v4430 = vrcp.pop %v4422
        %v4431 = vrcp.pop %v4427
        %v4432 = vmul.f32 %v4352, %v4430
        %v4433 = vmul.f32 %v4354, %v4431
        %4436 = vrot.lane.b32.xlu0 %v4039, 32
        %v4437 = vpop.permute.xlu0 %4436
        %4438 = vrot.lane.b32.xlu0 %v4041, 32
        %v4439 = vpop.permute.xlu0 %4438
        %4440 = vrot.lane.b32.xlu0 %v4045, 32
        %v4441 = vpop.permute.xlu0 %4440
        %4442 = vrot.lane.b32.xlu0 %v4047, 32
        %v4443 = vpop.permute.xlu0 %4442
        %v4444 = vsel %vm1226, %v4437, %v4439
        %v4445 = vsel %vm1226, %v4441, %v4443
        %4448 = vmatprep.subr.mxu0 0.0
        %4449 = vmatpush1.msra.mxu0 %v4444
        %4450 = vmatprep.subr.mxu0 0.0
        %4451 = vmatpush1.msra.mxu0 %v4445
        %4452 = vmatprep.subr.mxu0 0.0
        %4453 = vmatpush1.msra.mxu0 0.0
        %4454 = vmatprep.subr.mxu0 0.0
        %4455 = vmatpush1.msra.mxu0 0.0
        %4456 = vmatprep.subr.mxu0 0.0
        %4457 = vmatpush1.msra.mxu0 0.0
        %4458 = vmatprep.subr.mxu0 0.0
        %4459 = vmatpush1.msra.mxu0 0.0
        %4460 = vmatprep.subr.mxu0 0.0
        %4461 = vmatpush1.msra.mxu0 0.0
        %4462 = vmatprep.subr.mxu0 0.0
        %4463 = vmatpush1.msra.mxu0 0.0
        %4464 = vmatprep.subr.mxu0 0.0
        %4465 = vmatpush1.msra.mxu0 0.0
        %4466 = vmatprep.subr.mxu0 0.0
        %4467 = vmatpush1.msra.mxu0 0.0
        %4468 = vmatprep.subr.mxu0 0.0
        %4469 = vmatpush1.msra.mxu0 0.0
        %4470 = vmatprep.subr.mxu0 0.0
        %4471 = vmatpush1.msra.mxu0 0.0
        %4472 = vmatprep.subr.mxu0 0.0
        %4473 = vmatpush1.msra.mxu0 0.0
        %4474 = vmatprep.subr.mxu0 0.0
        %4475 = vmatpush1.msra.mxu0 0.0
        %4476 = vmatprep.subr.mxu0 0.0
        %4477 = vmatpush1.msra.mxu0 0.0
        %4478 = vmatprep.subr.mxu0 0.0
        %4479 = vmatpush1.msra.mxu0 0.0
        %4480 = vmatprep.subr.mxu0 0.0
        %4481 = vmatpush1.msra.mxu0 0.0
        %4482 = vmatprep.subr.mxu0 0.0
        %4483 = vmatpush1.msra.mxu0 0.0
        %4484 = vmatprep.subr.mxu0 0.0
        %4485 = vmatpush1.msra.mxu0 0.0
        %4486 = vmatprep.subr.mxu0 0.0
        %4487 = vmatpush1.msra.mxu0 0.0
        %4488 = vmatprep.subr.mxu0 0.0
        %4489 = vmatpush1.msra.mxu0 0.0
        %4490 = vmatprep.subr.mxu0 0.0
        %4491 = vmatpush1.msra.mxu0 0.0
        %4492 = vmatprep.subr.mxu0 0.0
        %4493 = vmatpush1.msra.mxu0 0.0
        %4494 = vmatprep.subr.mxu0 0.0
        %4495 = vmatpush1.msra.mxu0 0.0
        %4496 = vmatprep.subr.mxu0 0.0
        %4497 = vmatpush1.msra.mxu0 0.0
        %4498 = vmatprep.subr.mxu0 0.0
        %4499 = vmatpush1.msra.mxu0 0.0
        %4500 = vmatprep.subr.mxu0 0.0
        %4501 = vmatpush1.msra.mxu0 0.0
        %4502 = vmatprep.subr.mxu0 0.0
        %4503 = vmatpush1.msra.mxu0 0.0
        %4504 = vmatprep.subr.mxu0 0.0
        %4505 = vmatpush1.msra.mxu0 0.0
        %4506 = vmatprep.subr.mxu0 0.0
        %4507 = vmatpush1.msra.mxu0 0.0
        %4508 = vmatprep.subr.mxu0 0.0
        %4509 = vmatpush1.msra.mxu0 0.0
        %4510 = vmatprep.subr.mxu0 0.0
        %4511 = vmatpush1.msra.mxu0 0.0
        %4512 = vmatprep.mubr.f32.mxu0 0.0
        %4513 = vmatmul.mubr.f32.gmra.mrb[0].mxu0 %v2868
        %v4514 = vpop.f32.mrb[0].mxu0
        %v4515 = vadd.f32 0.0, %v4514
        %v4516 = vpop.f32.mrb[0].mxu0
        %4517 = vmatprep.mubr.f32.mxu0 0.0
        %4518 = vmatmul.mubr.f32.gmra.mrb[0].mxu0 %v2871
        %v4519 = vpop.f32.mrb[0].mxu0
        %v4520 = vadd.f32 0.0, %v4519
        %v4521 = vpop.f32.mrb[0].mxu0
        %4522 = vmatprep.mubr.f32.mxu0 0.0
        %4523 = vmatmul.mubr.f32.gmra.mrb[0].mxu0 %v2874
        %v4524 = vpop.f32.mrb[0].mxu0
        %v4525 = vadd.f32 0.0, %v4524
        %v4526 = vpop.f32.mrb[0].mxu0
        %4527 = vmatprep.mubr.f32.mxu0 0.0
        %4528 = vmatmul.mubr.f32.gmra.mrb[0].mxu0 %v2877
        %v4529 = vpop.f32.mrb[0].mxu0
        %v4530 = vadd.f32 0.0, %v4529
        %v4531 = vpop.f32.mrb[0].mxu0
        %4532 = vmatprep.mubr.f32.mxu0 0.0
        %4533 = vmatmul.mubr.f32.gmra.mrb[0].mxu0 %v2880
        %v4534 = vpop.f32.mrb[0].mxu0
        %v4535 = vadd.f32 0.0, %v4534
        %v4536 = vpop.f32.mrb[0].mxu0
        %4537 = vmatprep.mubr.f32.mxu0 0.0
        %4538 = vmatmul.mubr.f32.gmra.mrb[0].mxu0 %v2883
        %v4539 = vpop.f32.mrb[0].mxu0
        %v4540 = vadd.f32 0.0, %v4539
        %v4541 = vpop.f32.mrb[0].mxu0
        %4542 = vmatprep.mubr.f32.mxu0 0.0
        %4543 = vmatmul.mubr.f32.gmra.mrb[0].mxu0 %v2886
        %v4544 = vpop.f32.mrb[0].mxu0
        %v4545 = vadd.f32 0.0, %v4544
        %v4546 = vpop.f32.mrb[0].mxu0
        %4547 = vmatprep.mubr.f32.mxu0 0.0
        %4548 = vmatmul.mubr.f32.gmra.mrb[0].mxu0 %v2889
        %v4549 = vpop.f32.mrb[0].mxu0
        %v4550 = vadd.f32 0.0, %v4549
        %v4551 = vpop.f32.mrb[0].mxu0
        %4552 = vmatprep.mubr.f32.mxu0 0.0
        %4553 = vmatmul.mubr.f32.gmra.mrb[0].mxu0 %v2892
        %v4554 = vpop.f32.mrb[0].mxu0
        %v4555 = vadd.f32 0.0, %v4554
        %v4556 = vpop.f32.mrb[0].mxu0
        %4557 = vmatprep.mubr.f32.mxu0 0.0
        %4558 = vmatmul.mubr.f32.gmra.mrb[0].mxu0 %v2895
        %v4559 = vpop.f32.mrb[0].mxu0
        %v4560 = vadd.f32 0.0, %v4559
        %v4561 = vpop.f32.mrb[0].mxu0
        %4562 = vmatprep.mubr.f32.mxu0 0.0
        %4563 = vmatmul.mubr.f32.gmra.mrb[0].mxu0 %v2898
        %v4564 = vpop.f32.mrb[0].mxu0
        %v4565 = vadd.f32 0.0, %v4564
        %v4566 = vpop.f32.mrb[0].mxu0
        %4567 = vmatprep.mubr.f32.mxu0 0.0
        %4568 = vmatmul.mubr.f32.gmra.mrb[0].mxu0 %v2901
        %v4569 = vpop.f32.mrb[0].mxu0
        %v4570 = vadd.f32 0.0, %v4569
        %v4571 = vpop.f32.mrb[0].mxu0
        %4572 = vmatprep.mubr.f32.mxu0 0.0
        %4573 = vmatmul.mubr.f32.gmra.mrb[0].mxu0 %v2904
        %v4574 = vpop.f32.mrb[0].mxu0
        %v4575 = vadd.f32 0.0, %v4574
        %v4576 = vpop.f32.mrb[0].mxu0
        %4577 = vmatprep.mubr.f32.mxu0 0.0
        %4578 = vmatmul.mubr.f32.gmra.mrb[0].mxu0 %v2907
        %v4579 = vpop.f32.mrb[0].mxu0
        %v4580 = vadd.f32 0.0, %v4579
        %v4581 = vpop.f32.mrb[0].mxu0
        %4582 = vmatprep.mubr.f32.mxu0 0.0
        %4583 = vmatmul.mubr.f32.gmra.mrb[0].mxu0 %v2910
        %v4584 = vpop.f32.mrb[0].mxu0
        %v4585 = vadd.f32 0.0, %v4584
        %v4586 = vpop.f32.mrb[0].mxu0
        %4587 = vmatprep.mubr.f32.mxu0 0.0
        %4588 = vmatmul.mubr.f32.gmra.mrb[0].mxu0 %v2913
        %v4589 = vpop.f32.mrb[0].mxu0
        %v4590 = vadd.f32 0.0, %v4589
        %v4591 = vpop.f32.mrb[0].mxu0
        %4592 = vdwg.mxu0
        %v4593 = vmul.f32 %v4515, %v3060
        %v4594 = vmul.f32 %v4520, %v3061
        %v4595 = vmul.f32 %v4525, %v3062
        %v4596 = vmul.f32 %v4530, %v3063
        %v4597 = vmul.f32 %v4535, %v3064
        %v4598 = vmul.f32 %v4540, %v3065
        %v4599 = vmul.f32 %v4545, %v3066
        %v4600 = vmul.f32 %v4550, %v3067
        %v4601 = vmul.f32 %v4555, %v3068
        %v4602 = vmul.f32 %v4560, %v3069
        %v4603 = vmul.f32 %v4565, %v3070
        %v4604 = vmul.f32 %v4570, %v3071
        %v4605 = vmul.f32 %v4575, %v3072
        %v4606 = vmul.f32 %v4580, %v3073
        %v4607 = vmul.f32 %v4585, %v3074
        %v4608 = vmul.f32 %v4590, %v3075
        %4609 = vmatprep.subr.mxu0 0.0
        %4610 = vmatpush1.msra.mxu0 %v4593
        %4611 = vmatprep.subr.mxu0 0.0
        %4612 = vmatpush1.msra.mxu0 %v4594
        %4613 = vmatprep.subr.mxu0 0.0
        %4614 = vmatpush1.msra.mxu0 %v4595
        %4615 = vmatprep.subr.mxu0 0.0
        %4616 = vmatpush1.msra.mxu0 %v4596
        %4617 = vmatprep.subr.mxu0 0.0
        %4618 = vmatpush1.msra.mxu0 %v4597
        %4619 = vmatprep.subr.mxu0 0.0
        %4620 = vmatpush1.msra.mxu0 %v4598
        %4621 = vmatprep.subr.mxu0 0.0
        %4622 = vmatpush1.msra.mxu0 %v4599
        %4623 = vmatprep.subr.mxu0 0.0
        %4624 = vmatpush1.msra.mxu0 %v4600
        %4625 = vmatprep.subr.mxu0 0.0
        %4626 = vmatpush1.msra.mxu0 %v4601
        %4627 = vmatprep.subr.mxu0 0.0
        %4628 = vmatpush1.msra.mxu0 %v4602
        %4629 = vmatprep.subr.mxu0 0.0
        %4630 = vmatpush1.msra.mxu0 %v4603
        %4631 = vmatprep.subr.mxu0 0.0
        %4632 = vmatpush1.msra.mxu0 %v4604
        %4633 = vmatprep.subr.mxu0 0.0
        %4634 = vmatpush1.msra.mxu0 %v4605
        %4635 = vmatprep.subr.mxu0 0.0
        %4636 = vmatpush1.msra.mxu0 %v4606
        %4637 = vmatprep.subr.mxu0 0.0
        %4638 = vmatpush1.msra.mxu0 %v4607
        %4639 = vmatprep.subr.mxu0 0.0
        %4640 = vmatpush1.msra.mxu0 %v4608
        %4641 = vmatprep.subr.mxu0 0.0
        %4642 = vmatpush1.msra.mxu0 0.0
        %4643 = vmatprep.subr.mxu0 0.0
        %4644 = vmatpush1.msra.mxu0 0.0
        %4645 = vmatprep.subr.mxu0 0.0
        %4646 = vmatpush1.msra.mxu0 0.0
        %4647 = vmatprep.subr.mxu0 0.0
        %4648 = vmatpush1.msra.mxu0 0.0
        %4649 = vmatprep.subr.mxu0 0.0
        %4650 = vmatpush1.msra.mxu0 0.0
        %4651 = vmatprep.subr.mxu0 0.0
        %4652 = vmatpush1.msra.mxu0 0.0
        %4653 = vmatprep.subr.mxu0 0.0
        %4654 = vmatpush1.msra.mxu0 0.0
        %4655 = vmatprep.subr.mxu0 0.0
        %4656 = vmatpush1.msra.mxu0 0.0
        %4657 = vmatprep.subr.mxu0 0.0
        %4658 = vmatpush1.msra.mxu0 0.0
        %4659 = vmatprep.subr.mxu0 0.0
        %4660 = vmatpush1.msra.mxu0 0.0
        %4661 = vmatprep.subr.mxu0 0.0
        %4662 = vmatpush1.msra.mxu0 0.0
        %4663 = vmatprep.subr.mxu0 0.0
        %4664 = vmatpush1.msra.mxu0 0.0
        %4665 = vmatprep.subr.mxu0 0.0
        %4666 = vmatpush1.msra.mxu0 0.0
        %4667 = vmatprep.subr.mxu0 0.0
        %4668 = vmatpush1.msra.mxu0 0.0
        %4669 = vmatprep.subr.mxu0 0.0
        %4670 = vmatpush1.msra.mxu0 0.0
        %4671 = vmatprep.subr.mxu0 0.0
        %4672 = vmatpush1.msra.mxu0 0.0
        %4673 = vmatprep.mubr.f32.mxu0 0.0
        %4674 = vmatmul.mubr.f32.gmra.mrb[0].mxu0 %v4432
        %v4675 = vpop.f32.mrb[0].mxu0
        %v4676 = vadd.f32 0.0, %v4675
        %v4677 = vpop.f32.mrb[0].mxu0
        %4678 = vmatprep.mubr.f32.mxu0 0.0
        %4679 = vmatmul.mubr.f32.gmra.mrb[0].mxu0 %v4433
        %v4680 = vpop.f32.mrb[0].mxu0
        %v4681 = vadd.f32 0.0, %v4680
        %v4682 = vpop.f32.mrb[0].mxu0
        %4683 = vdwg.mxu0
        %s4684 = scalar_lea.vmem %s7, 144
        %v4685 = vld [vmem:[%s4684] sm:$0xff]
        %v4686 = vld [vmem:[%s4684 + $0x8] sm:$0xff]
        %v4687 = vld [vmem:[%s4684 + $0x10] sm:$0xff]
        %v4688 = vld [vmem:[%s4684 + $0x18] sm:$0xff]
        %v4689 = vld [vmem:[%s4684 + $0x20] sm:$0xff]
        %v4690 = vld [vmem:[%s4684 + $0x28] sm:$0xff]
        %v4691 = vlaneseq
        %v4692 = vshrl.u32 %v4691, 7
        %v4693 = vsub.s32 0, %v4692
        %v4694 = vrot.slane %v3939, %v4693
        %v4696 = vsel %vm802, %v4676, 0
        %v4699 = vsel %vm802, %v4681, 0
        %4701 = vmatprep.subr.mxu0 0.0
        %4702 = vmatpush1.msra.mxu0 %v4685
        %4703 = vmatprep.subr.mxu0 0.0
        %4704 = vmatpush1.msra.mxu0 %v4686
        %4705 = vmatprep.subr.mxu0 0.0
        %4706 = vmatpush1.msra.mxu0 %v4687
        %4707 = vmatprep.subr.mxu0 0.0
        %4708 = vmatpush1.msra.mxu0 %v4688
        %4709 = vmatprep.subr.mxu0 0.0
        %4710 = vmatpush1.msra.mxu0 %v4689
        %4711 = vmatprep.subr.mxu0 0.0
        %4712 = vmatpush1.msra.mxu0 %v4690
        %4713 = vmatprep.subr.mxu0 0.0
        %4714 = vmatpush1.msra.mxu0 0.0
        %4715 = vmatprep.subr.mxu0 0.0
        %4716 = vmatpush1.msra.mxu0 0.0
        %4717 = vmatprep.subr.mxu0 0.0
        %4718 = vmatpush1.msra.mxu0 0.0
        %4719 = vmatprep.subr.mxu0 0.0
        %4720 = vmatpush1.msra.mxu0 0.0
        %4721 = vmatprep.subr.mxu0 0.0
        %4722 = vmatpush1.msra.mxu0 0.0
        %4723 = vmatprep.subr.mxu0 0.0
        %4724 = vmatpush1.msra.mxu0 0.0
        %4725 = vmatprep.subr.mxu0 0.0
        %4726 = vmatpush1.msra.mxu0 0.0
        %4727 = vmatprep.subr.mxu0 0.0
        %4728 = vmatpush1.msra.mxu0 0.0
        %4729 = vmatprep.subr.mxu0 0.0
        %4730 = vmatpush1.msra.mxu0 0.0
        %4731 = vmatprep.subr.mxu0 0.0
        %4732 = vmatpush1.msra.mxu0 0.0
        %4733 = vmatprep.subr.mxu0 0.0
        %4734 = vmatpush1.msra.mxu0 0.0
        %4735 = vmatprep.subr.mxu0 0.0
        %4736 = vmatpush1.msra.mxu0 0.0
        %4737 = vmatprep.subr.mxu0 0.0
        %4738 = vmatpush1.msra.mxu0 0.0
        %4739 = vmatprep.subr.mxu0 0.0
        %4740 = vmatpush1.msra.mxu0 0.0
        %4741 = vmatprep.subr.mxu0 0.0
        %4742 = vmatpush1.msra.mxu0 0.0
        %4743 = vmatprep.subr.mxu0 0.0
        %4744 = vmatpush1.msra.mxu0 0.0
        %4745 = vmatprep.subr.mxu0 0.0
        %4746 = vmatpush1.msra.mxu0 0.0
        %4747 = vmatprep.subr.mxu0 0.0
        %4748 = vmatpush1.msra.mxu0 0.0
        %4749 = vmatprep.subr.mxu0 0.0
        %4750 = vmatpush1.msra.mxu0 0.0
        %4751 = vmatprep.subr.mxu0 0.0
        %4752 = vmatpush1.msra.mxu0 0.0
        %4753 = vmatprep.subr.mxu0 0.0
        %4754 = vmatpush1.msra.mxu0 0.0
        %4755 = vmatprep.subr.mxu0 0.0
        %4756 = vmatpush1.msra.mxu0 0.0
        %4757 = vmatprep.subr.mxu0 0.0
        %4758 = vmatpush1.msra.mxu0 0.0
        %4759 = vmatprep.subr.mxu0 0.0
        %4760 = vmatpush1.msra.mxu0 0.0
        %4761 = vmatprep.subr.mxu0 0.0
        %4762 = vmatpush1.msra.mxu0 0.0
        %4763 = vmatprep.subr.mxu0 0.0
        %4764 = vmatpush1.msra.mxu0 0.0
        %4765 = vmatprep.mubr.f32.mxu0 0.0
        %4766 = vmatmul.mubr.f32.gmra.mrb[0].mxu0 %v4696
        %v4767 = vpop.f32.mrb[0].mxu0
        %v4768 = vadd.f32 %v4694, %v4767
        %v4769 = vpop.f32.mrb[0].mxu0
        %4770 = vmatprep.mubr.f32.mxu0 0.0
        %4771 = vmatmul.mubr.f32.gmra.mrb[0].mxu0 %v4699
        %v4772 = vpop.f32.mrb[0].mxu0
        %v4773 = vadd.f32 %v4694, %v4772
        %v4774 = vpop.f32.mrb[0].mxu0
        %4775 = vdwg.mxu0
        %v4776 = vadd.f32 %v3936, %v4768
        %v4777 = vadd.f32 %v3937, %v4773
        %v4778 = vsel %vm802, %v4776, 0.0
        %4779 = vadd.xlane.f32.xlu0 %v4778
        %v4780 = vpop.xlane.xlu0 %4779
        %v4781 = vsel %vm802, %v4777, 0.0
        %4782 = vadd.xlane.f32.xlu0 %v4781
        %v4783 = vpop.xlane.xlu0 %4782
        %v4784 = vmul.f32 %v4780, %v1502
        %v4785 = vmul.f32 %v4783, %v1502
        %v4786 = vsub.f32 %v4776, %v4784
        %v4787 = vsub.f32 %v4777, %v4785
        %v4788 = vmul.f32 %v4786, %v4786
        %v4789 = vmul.f32 %v4787, %v4787
        %v4790 = vsel %vm802, %v4788, 0.0
        %4791 = vadd.xlane.f32.xlu0 %v4790
        %v4792 = vpop.xlane.xlu0 %4791
        %v4793 = vsel %vm802, %v4789, 0.0
        %4794 = vadd.xlane.f32.xlu0 %v4793
        %v4795 = vpop.xlane.xlu0 %4794
        %v4796 = vmul.f32 %v4792, %v1502
        %v4797 = vmul.f32 %v4795, %v1502
        %v4798 = vadd.f32 %v4796, 1e-05
        %v4799 = vadd.f32 %v4797, 1e-05
        %v4800 = vrsqrt.pop %v4798
        %v4801 = vrsqrt.pop %v4799
        %v4802 = vmul.f32 %v4786, %v4800
        %v4803 = vmul.f32 %v4787, %v4801
        %v4804 = vlaneseq
        %v4805 = vshrl.u32 %v4804, 7
        %v4806 = vsub.s32 2, %v4805
        %v4807 = vrot.slane %v3939, %v4806
        %v4808 = vmul.f32 %v4802, %v4807
        %v4809 = vmul.f32 %v4803, %v4807
        %v4810 = vlaneseq
        %v4811 = vshrl.u32 %v4810, 7
        %v4812 = vsub.s32 3, %v4811
        %v4813 = vrot.slane %v3939, %v4812
        %v4814 = vadd.f32 %v4808, %v4813
        %v4815 = vadd.f32 %v4809, %v4813
        %s4816 = scalar_lea.vmem %s8, 144
        %v4817 = vld [vmem:[%s4816] sm:$0xff]
        %v4818 = vld [vmem:[%s4816 + $0x8] sm:$0xff]
        %v4819 = vld [vmem:[%s4816 + $0x10] sm:$0xff]
        %v4820 = vld [vmem:[%s4816 + $0x18] sm:$0xff]
        %v4821 = vld [vmem:[%s4816 + $0x20] sm:$0xff]
        %v4822 = vld [vmem:[%s4816 + $0x28] sm:$0xff]
        %s4823 = scalar_lea.vmem %s9, 3
        %v4824 = vld [vmem:[%s4823] sm:$0x1]
        %v4826 = vlaneseq
        %v4827 = vshrl.u32 %v4826, 7
        %v4828 = vsub.s32 0, %v4827
        %v4829 = vrot.slane %v4824, %v4828
        %v4832 = vsel %vm802, %v4814, 0
        %v4835 = vsel %vm802, %v4815, 0
        %4837 = vmatprep.subr.mxu0 0.0
        %4838 = vmatpush1.msra.mxu0 %v4817
        %4839 = vmatprep.subr.mxu0 0.0
        %4840 = vmatpush1.msra.mxu0 %v4818
        %4841 = vmatprep.subr.mxu0 0.0
        %4842 = vmatpush1.msra.mxu0 %v4819
        %4843 = vmatprep.subr.mxu0 0.0
        %4844 = vmatpush1.msra.mxu0 %v4820
        %4845 = vmatprep.subr.mxu0 0.0
        %4846 = vmatpush1.msra.mxu0 %v4821
        %4847 = vmatprep.subr.mxu0 0.0
        %4848 = vmatpush1.msra.mxu0 %v4822
        %4849 = vmatprep.subr.mxu0 0.0
        %4850 = vmatpush1.msra.mxu0 0.0
        %4851 = vmatprep.subr.mxu0 0.0
        %4852 = vmatpush1.msra.mxu0 0.0
        %4853 = vmatprep.subr.mxu0 0.0
        %4854 = vmatpush1.msra.mxu0 0.0
        %4855 = vmatprep.subr.mxu0 0.0
        %4856 = vmatpush1.msra.mxu0 0.0
        %4857 = vmatprep.subr.mxu0 0.0
        %4858 = vmatpush1.msra.mxu0 0.0
        %4859 = vmatprep.subr.mxu0 0.0
        %4860 = vmatpush1.msra.mxu0 0.0
        %4861 = vmatprep.subr.mxu0 0.0
        %4862 = vmatpush1.msra.mxu0 0.0
        %4863 = vmatprep.subr.mxu0 0.0
        %4864 = vmatpush1.msra.mxu0 0.0
        %4865 = vmatprep.subr.mxu0 0.0
        %4866 = vmatpush1.msra.mxu0 0.0
        %4867 = vmatprep.subr.mxu0 0.0
        %4868 = vmatpush1.msra.mxu0 0.0
        %4869 = vmatprep.subr.mxu0 0.0
        %4870 = vmatpush1.msra.mxu0 0.0
        %4871 = vmatprep.subr.mxu0 0.0
        %4872 = vmatpush1.msra.mxu0 0.0
        %4873 = vmatprep.subr.mxu0 0.0
        %4874 = vmatpush1.msra.mxu0 0.0
        %4875 = vmatprep.subr.mxu0 0.0
        %4876 = vmatpush1.msra.mxu0 0.0
        %4877 = vmatprep.subr.mxu0 0.0
        %4878 = vmatpush1.msra.mxu0 0.0
        %4879 = vmatprep.subr.mxu0 0.0
        %4880 = vmatpush1.msra.mxu0 0.0
        %4881 = vmatprep.subr.mxu0 0.0
        %4882 = vmatpush1.msra.mxu0 0.0
        %4883 = vmatprep.subr.mxu0 0.0
        %4884 = vmatpush1.msra.mxu0 0.0
        %4885 = vmatprep.subr.mxu0 0.0
        %4886 = vmatpush1.msra.mxu0 0.0
        %4887 = vmatprep.subr.mxu0 0.0
        %4888 = vmatpush1.msra.mxu0 0.0
        %4889 = vmatprep.subr.mxu0 0.0
        %4890 = vmatpush1.msra.mxu0 0.0
        %4891 = vmatprep.subr.mxu0 0.0
        %4892 = vmatpush1.msra.mxu0 0.0
        %4893 = vmatprep.subr.mxu0 0.0
        %4894 = vmatpush1.msra.mxu0 0.0
        %4895 = vmatprep.subr.mxu0 0.0
        %4896 = vmatpush1.msra.mxu0 0.0
        %4897 = vmatprep.subr.mxu0 0.0
        %4898 = vmatpush1.msra.mxu0 0.0
        %4899 = vmatprep.subr.mxu0 0.0
        %4900 = vmatpush1.msra.mxu0 0.0
        %4901 = vmatprep.mubr.f32.mxu0 0.0
        %4902 = vmatmul.mubr.f32.gmra.mrb[0].mxu0 %v4832
        %v4903 = vpop.f32.mrb[0].mxu0
        %v4904 = vadd.f32 %v4829, %v4903
        %v4905 = vpop.f32.mrb[0].mxu0
        %4906 = vmatprep.mubr.f32.mxu0 0.0
        %4907 = vmatmul.mubr.f32.gmra.mrb[0].mxu0 %v4835
        %v4908 = vpop.f32.mrb[0].mxu0
        %v4909 = vadd.f32 %v4829, %v4908
        %v4910 = vpop.f32.mrb[0].mxu0
        %4911 = vdwg.mxu0
        %v4912 = vmax.f32 %v4904, 0.0
        %v4913 = vmax.f32 %v4909, 0.0
        %s4914 = scalar_lea.vmem %s10, 192
        %v4915 = vld [vmem:[%s4914] sm:$0xff]
        %v4916 = vld [vmem:[%s4914 + $0x8] sm:$0xff]
        %v4917 = vld [vmem:[%s4914 + $0x10] sm:$0xff]
        %v4918 = vld [vmem:[%s4914 + $0x18] sm:$0xff]
        %v4919 = vld [vmem:[%s4914 + $0x20] sm:$0xff]
        %v4920 = vld [vmem:[%s4914 + $0x28] sm:$0xff]
        %v4921 = vld [vmem:[%s4914 + $0x30] sm:$0xff]
        %v4922 = vld [vmem:[%s4914 + $0x38] sm:$0xff]
        %v4923 = vlaneseq
        %v4924 = vshrl.u32 %v4923, 7
        %v4925 = vsub.s32 1, %v4924
        %v4926 = vrot.slane %v3939, %v4925
        %v4928 = vsel %vm1131, %v4912, 0
        %v4931 = vsel %vm1131, %v4913, 0
        %4933 = vmatprep.subr.mxu0 0.0
        %4934 = vmatpush1.msra.mxu0 %v4915
        %4935 = vmatprep.subr.mxu0 0.0
        %4936 = vmatpush1.msra.mxu0 %v4916
        %4937 = vmatprep.subr.mxu0 0.0
        %4938 = vmatpush1.msra.mxu0 %v4917
        %4939 = vmatprep.subr.mxu0 0.0
        %4940 = vmatpush1.msra.mxu0 %v4918
        %4941 = vmatprep.subr.mxu0 0.0
        %4942 = vmatpush1.msra.mxu0 %v4919
        %4943 = vmatprep.subr.mxu0 0.0
        %4944 = vmatpush1.msra.mxu0 %v4920
        %4945 = vmatprep.subr.mxu0 0.0
        %4946 = vmatpush1.msra.mxu0 %v4921
        %4947 = vmatprep.subr.mxu0 0.0
        %4948 = vmatpush1.msra.mxu0 %v4922
        %4949 = vmatprep.subr.mxu0 0.0
        %4950 = vmatpush1.msra.mxu0 0.0
        %4951 = vmatprep.subr.mxu0 0.0
        %4952 = vmatpush1.msra.mxu0 0.0
        %4953 = vmatprep.subr.mxu0 0.0
        %4954 = vmatpush1.msra.mxu0 0.0
        %4955 = vmatprep.subr.mxu0 0.0
        %4956 = vmatpush1.msra.mxu0 0.0
        %4957 = vmatprep.subr.mxu0 0.0
        %4958 = vmatpush1.msra.mxu0 0.0
        %4959 = vmatprep.subr.mxu0 0.0
        %4960 = vmatpush1.msra.mxu0 0.0
        %4961 = vmatprep.subr.mxu0 0.0
        %4962 = vmatpush1.msra.mxu0 0.0
        %4963 = vmatprep.subr.mxu0 0.0
        %4964 = vmatpush1.msra.mxu0 0.0
        %4965 = vmatprep.subr.mxu0 0.0
        %4966 = vmatpush1.msra.mxu0 0.0
        %4967 = vmatprep.subr.mxu0 0.0
        %4968 = vmatpush1.msra.mxu0 0.0
        %4969 = vmatprep.subr.mxu0 0.0
        %4970 = vmatpush1.msra.mxu0 0.0
        %4971 = vmatprep.subr.mxu0 0.0
        %4972 = vmatpush1.msra.mxu0 0.0
        %4973 = vmatprep.subr.mxu0 0.0
        %4974 = vmatpush1.msra.mxu0 0.0
        %4975 = vmatprep.subr.mxu0 0.0
        %4976 = vmatpush1.msra.mxu0 0.0
        %4977 = vmatprep.subr.mxu0 0.0
        %4978 = vmatpush1.msra.mxu0 0.0
        %4979 = vmatprep.subr.mxu0 0.0
        %4980 = vmatpush1.msra.mxu0 0.0
        %4981 = vmatprep.subr.mxu0 0.0
        %4982 = vmatpush1.msra.mxu0 0.0
        %4983 = vmatprep.subr.mxu0 0.0
        %4984 = vmatpush1.msra.mxu0 0.0
        %4985 = vmatprep.subr.mxu0 0.0
        %4986 = vmatpush1.msra.mxu0 0.0
        %4987 = vmatprep.subr.mxu0 0.0
        %4988 = vmatpush1.msra.mxu0 0.0
        %4989 = vmatprep.subr.mxu0 0.0
        %4990 = vmatpush1.msra.mxu0 0.0
        %4991 = vmatprep.subr.mxu0 0.0
        %4992 = vmatpush1.msra.mxu0 0.0
        %4993 = vmatprep.subr.mxu0 0.0
        %4994 = vmatpush1.msra.mxu0 0.0
        %4995 = vmatprep.subr.mxu0 0.0
        %4996 = vmatpush1.msra.mxu0 0.0
        %4997 = vmatprep.mubr.f32.mxu0 0.0
        %4998 = vmatmul.mubr.f32.gmra.mrb[0].mxu0 %v4928
        %v4999 = vpop.f32.mrb[0].mxu0
        %v5000 = vadd.f32 %v4926, %v4999
        %v5001 = vpop.f32.mrb[0].mxu0
        %5002 = vmatprep.mubr.f32.mxu0 0.0
        %5003 = vmatmul.mubr.f32.gmra.mrb[0].mxu0 %v4931
        %v5004 = vpop.f32.mrb[0].mxu0
        %v5005 = vadd.f32 %v4926, %v5004
        %v5006 = vpop.f32.mrb[0].mxu0
        %5007 = vdwg.mxu0
        %v5008 = vadd.f32 %v4814, %v5000
        %v5009 = vadd.f32 %v4815, %v5005
        %v5010 = vsel %vm802, %v5008, 0.0
        %5011 = vadd.xlane.f32.xlu0 %v5010
        %v5012 = vpop.xlane.xlu0 %5011
        %v5013 = vsel %vm802, %v5009, 0.0
        %5014 = vadd.xlane.f32.xlu0 %v5013
        %v5015 = vpop.xlane.xlu0 %5014
        %v5016 = vmul.f32 %v5012, %v1502
        %v5017 = vmul.f32 %v5015, %v1502
        %v5018 = vsub.f32 %v5008, %v5016
        %v5019 = vsub.f32 %v5009, %v5017
        %v5020 = vmul.f32 %v5018, %v5018
        %v5021 = vmul.f32 %v5019, %v5019
        %v5022 = vsel %vm802, %v5020, 0.0
        %5023 = vadd.xlane.f32.xlu0 %v5022
        %v5024 = vpop.xlane.xlu0 %5023
        %v5025 = vsel %vm802, %v5021, 0.0
        %5026 = vadd.xlane.f32.xlu0 %v5025
        %v5027 = vpop.xlane.xlu0 %5026
        %v5028 = vmul.f32 %v5024, %v1502
        %v5029 = vmul.f32 %v5027, %v1502
        %v5030 = vadd.f32 %v5028, 1e-05
        %v5031 = vadd.f32 %v5029, 1e-05
        %v5032 = vrsqrt.pop %v5030
        %v5033 = vrsqrt.pop %v5031
        %v5034 = vmul.f32 %v5018, %v5032
        %v5035 = vmul.f32 %v5019, %v5033
        %v5036 = vlaneseq
        %v5037 = vshrl.u32 %v5036, 7
        %v5038 = vsub.s32 4, %v5037
        %v5039 = vrot.slane %v3939, %v5038
        %v5040 = vmul.f32 %v5034, %v5039
        %v5041 = vmul.f32 %v5035, %v5039
        %v5042 = vlaneseq
        %v5043 = vshrl.u32 %v5042, 7
        %v5044 = vsub.s32 5, %v5043
        %v5045 = vrot.slane %v3939, %v5044
        %v5046 = vadd.f32 %v5040, %v5045
        %v5047 = vadd.f32 %v5041, %v5045
        %v5048 = vld [vmem:[#allocation13] sm:$0xff]
        %v5049 = vld [vmem:[#allocation13 + $0x8] sm:$0xff]
        %v5050 = vld [vmem:[#allocation13 + $0x10] sm:$0xff]
        %v5051 = vld [vmem:[#allocation13 + $0x18] sm:$0xff]
        %v5052 = vld [vmem:[#allocation13 + $0x20] sm:$0xff]
        %v5053 = vld [vmem:[#allocation13 + $0x28] sm:$0xff]
        %v5054 = vld [vmem:[#allocation14] sm:$0x1]
        %v5056 = vlaneseq
        %v5057 = vshrl.u32 %v5056, 7
        %v5058 = vsub.s32 0, %v5057
        %v5059 = vrot.slane %v5054, %v5058
        %v5062 = vsel %vm802, %v5046, 0
        %v5065 = vsel %vm802, %v5047, 0
        %5067 = vmatprep.subr.mxu0 0.0
        %5068 = vmatpush1.msra.mxu0 %v5048
        %5069 = vmatprep.subr.mxu0 0.0
        %5070 = vmatpush1.msra.mxu0 %v5049
        %5071 = vmatprep.subr.mxu0 0.0
        %5072 = vmatpush1.msra.mxu0 %v5050
        %5073 = vmatprep.subr.mxu0 0.0
        %5074 = vmatpush1.msra.mxu0 %v5051
        %5075 = vmatprep.subr.mxu0 0.0
        %5076 = vmatpush1.msra.mxu0 %v5052
        %5077 = vmatprep.subr.mxu0 0.0
        %5078 = vmatpush1.msra.mxu0 %v5053
        %5079 = vmatprep.subr.mxu0 0.0
        %5080 = vmatpush1.msra.mxu0 0.0
        %5081 = vmatprep.subr.mxu0 0.0
        %5082 = vmatpush1.msra.mxu0 0.0
        %5083 = vmatprep.subr.mxu0 0.0
        %5084 = vmatpush1.msra.mxu0 0.0
        %5085 = vmatprep.subr.mxu0 0.0
        %5086 = vmatpush1.msra.mxu0 0.0
        %5087 = vmatprep.subr.mxu0 0.0
        %5088 = vmatpush1.msra.mxu0 0.0
        %5089 = vmatprep.subr.mxu0 0.0
        %5090 = vmatpush1.msra.mxu0 0.0
        %5091 = vmatprep.subr.mxu0 0.0
        %5092 = vmatpush1.msra.mxu0 0.0
        %5093 = vmatprep.subr.mxu0 0.0
        %5094 = vmatpush1.msra.mxu0 0.0
        %5095 = vmatprep.subr.mxu0 0.0
        %5096 = vmatpush1.msra.mxu0 0.0
        %5097 = vmatprep.subr.mxu0 0.0
        %5098 = vmatpush1.msra.mxu0 0.0
        %5099 = vmatprep.subr.mxu0 0.0
        %5100 = vmatpush1.msra.mxu0 0.0
        %5101 = vmatprep.subr.mxu0 0.0
        %5102 = vmatpush1.msra.mxu0 0.0
        %5103 = vmatprep.subr.mxu0 0.0
        %5104 = vmatpush1.msra.mxu0 0.0
        %5105 = vmatprep.subr.mxu0 0.0
        %5106 = vmatpush1.msra.mxu0 0.0
        %5107 = vmatprep.subr.mxu0 0.0
        %5108 = vmatpush1.msra.mxu0 0.0
        %5109 = vmatprep.subr.mxu0 0.0
        %5110 = vmatpush1.msra.mxu0 0.0
        %5111 = vmatprep.subr.mxu0 0.0
        %5112 = vmatpush1.msra.mxu0 0.0
        %5113 = vmatprep.subr.mxu0 0.0
        %5114 = vmatpush1.msra.mxu0 0.0
        %5115 = vmatprep.subr.mxu0 0.0
        %5116 = vmatpush1.msra.mxu0 0.0
        %5117 = vmatprep.subr.mxu0 0.0
        %5118 = vmatpush1.msra.mxu0 0.0
        %5119 = vmatprep.subr.mxu0 0.0
        %5120 = vmatpush1.msra.mxu0 0.0
        %5121 = vmatprep.subr.mxu0 0.0
        %5122 = vmatpush1.msra.mxu0 0.0
        %5123 = vmatprep.subr.mxu0 0.0
        %5124 = vmatpush1.msra.mxu0 0.0
        %5125 = vmatprep.subr.mxu0 0.0
        %5126 = vmatpush1.msra.mxu0 0.0
        %5127 = vmatprep.subr.mxu0 0.0
        %5128 = vmatpush1.msra.mxu0 0.0
        %5129 = vmatprep.subr.mxu0 0.0
        %5130 = vmatpush1.msra.mxu0 0.0
        %5131 = vmatprep.mubr.f32.mxu0 0.0
        %5132 = vmatmul.mubr.f32.gmra.mrb[0].mxu0 %v5062
        %v5133 = vpop.f32.mrb[0].mxu0
        %v5134 = vadd.f32 %v5059, %v5133
        %v5135 = vpop.f32.mrb[0].mxu0
        %5136 = vmatprep.mubr.f32.mxu0 0.0
        %5137 = vmatmul.mubr.f32.gmra.mrb[0].mxu0 %v5065
        %v5138 = vpop.f32.mrb[0].mxu0
        %v5139 = vadd.f32 %v5059, %v5138
        %v5140 = vpop.f32.mrb[0].mxu0
        %5141 = vdwg.mxu0
        %5142 = vst [vmem:[%s773] sm:$0xff] %v5134
        %5143 = vst [vmem:[%s773 + $0x8] sm:$0xff] %v5139
        %s5144 = sand.u32 %s481, 1
        %s5145 = scalar_lea.sflag [#allocation4], %s5144
        %s5146 = sand.u32 %s481, 1
        %s5147 = smul.addr %s5146, 16
        %s5148 = scalar_lea.vmem [#allocation17], %s5147
        // Predicated region
        $region137: #{tpu_custom_call.1} parent=99 // pred_check
          %p5149 = pneg %p491
        $region138: #{tpu_custom_call.1} parent=99 // pred_check_branch
          %5151 = sbr.rel (%p5149) target = $region140
        $region139: #{tpu_custom_call.1} parent=99 // pred_region
          %s5153 = ssub.s32 256, 256
          %5154 = vsyncadd %s5145, %s5153
          %s5155 = smul.addr %s43, 2
          %s5156 = smul.addr %s5155, 128
          %s5157 = scalar_lea.hbm %s20, %s5156
          %s5158 = sshll.u32 %s5148, 4
          %s5159 = int_to_ptr.vmem [resolvable:$true] %s5158
          %5164 = dma.vmem_to_hbm [thread:$0]  %s5159, 256, %s5157, %s5145, 128, 128, 8
        $region140: #{tpu_custom_call.1} parent=99 // pred_fallthru
          _
      $region100: #{tpu_custom_call.1} parent=5 // pred_fallthru
        _
      %p5165 = scmp.le.s32.totalorder 2, %s38
      // Predicated region
      $region141: #{tpu_custom_call.1} parent=5 // pred_check
        %p5166 = pneg %p5165
      $region142: #{tpu_custom_call.1} parent=5 // pred_check_branch
        %5168 = sbr.rel (%p5166) target = $region144
      $region143: #{tpu_custom_call.1} parent=5 // pred_region
        %s5169 = ssub.s32 %s38, 2
        // Predicated region
        $region145: #{tpu_custom_call.1} parent=143 // pred_check
          %p5170 = pneg %p497
        $region146: #{tpu_custom_call.1} parent=143 // pred_check_branch
          %5172 = sbr.rel (%p5170) target = $region148
        $region147: #{tpu_custom_call.1} parent=143 // pred_region
          %s5173 = sand.u32 %s482, 1
          %s5174 = scalar_lea.sflag [#allocation4], %s5173
          %s5175 = sand.u32 %s482, 1
          %s5176 = smul.addr %s5175, 16
          %s5177 = scalar_lea.vmem [#allocation17], %s5176
          %5178 = dma.done %s5174, 256
        $region148: #{tpu_custom_call.1} parent=143 // pred_fallthru
          _
      $region144: #{tpu_custom_call.1} parent=5 // pred_fallthru
        _
    $region6: #{tpu_custom_call.1} parent=1 // loop_footer
      %s42 = sadd.s32 1, %s38
    $region7: #{tpu_custom_call.1} parent=1 // loop_footer_branch
      %37 = sbr.rel target = $region3
    $region8: #{tpu_custom_call.1} parent=1 // loop_exit
      _
    %5179 = vsyncpa [#allocation3], 1
    %s5180 = scalar_lea.sflag [#allocation3], 1
    %5181 = vsyncpa %s5180, 1
    %5182 = vsyncpa [#allocation6], 1
    %s5183 = scalar_lea.sflag [#allocation6], 1
    %5184 = vsyncpa %s5183, 1
    %5185 = vsyncpa [#allocation9], 1
    %5186 = vsyncpa [#allocation12], 1
    %5187 = vsyncpa [#allocation15], 1
    %5188 = vsyncpa [#allocation4], 1
    %s5189 = scalar_lea.sflag [#allocation4], 1
    %5190 = vsyncpa %s5189, 1

</llo_original>
